<compile_context>
chip_gen: v6e
topology: v6e:2x2x1
jax: 0.10.0
libtpu: 0.0.40
codegen_flags: <defaults>
</compile_context>

<pallas_src>
import functools

import jax
import jax.numpy as jnp
from jax.experimental import pallas as pl
from jax.experimental.pallas import tpu as pltpu


def fused_cnn_kernel(x_ref, w1_ref, b1_ref, w2_ref, b2_ref, w3_ref, b3_ref,
                     o_ref,
                     pad1, col1, pad2, col2, pad3, col3,
                     *, NB, H, W, C0, C1, C2, C3):
    """All three conv3x3(pad=1)+bias+ReLU+maxpool2x2 stages for NB batch elems.

    x_ref  : (NB, H, W, C0)           input tile (NHWC)
    w*_ref : (9*Cin, Cout)            conv weights, im2col-flattened (kh,kw,ci)
    b*_ref : (1, Cout)                biases
    o_ref  : (NB, H//8, W//8, C3)     final output tile
    pad*   : VMEM (NB, h+2, w+2, cin) zero-padded per-stage activations
    col*   : VMEM (NB, h, w, 9*cin)   im2col staging buffers
    """

    def conv_relu_pool(act, pad_ref, col_ref, w_ref, b_ref, h, w, cin, cout):
        # ---- zero-pad into VMEM scratch: only the 1-px border is zeroed; the
        # interior is fully overwritten each step.  Border is re-zeroed every
        # step so megacore ("parallel") grid splitting stays correct. ---------
        zrow = jnp.zeros((NB, 1, w + 2, cin), jnp.float32)
        pad_ref[:, 0:1, :, :] = zrow
        pad_ref[:, h + 1:h + 2, :, :] = zrow
        zcol = jnp.zeros((NB, h + 2, 1, cin), jnp.float32)
        pad_ref[:, :, 0:1, :] = zcol
        pad_ref[:, :, w + 1:w + 2, :] = zcol
        pad_ref[:, 1:h + 1, 1:w + 1, :] = act.astype(jnp.float32)

        # ---- im2col: pack the 9 shifted taps into col (NB, h, w, 9*cin). ----
        # The w (sublane) shift happens once per kw; the kh shift is a
        # leading-dim slice (free); no per-tap reshape.
        for kw in range(3):
            slab = pad_ref[:, :, kw:kw + w, :]            # (NB, h+2, w, cin)
            for kh in range(3):
                t = kh * 3 + kw
                col_ref[:, :, :, t * cin:(t + 1) * cin] = slab[:, kh:kh + h, :, :]

        # ---- one MXU matmul with K = 9*cin, f32 accumulation. ----
        # w % 8 == 0 for stages 1/2 -> the reshape only merges leading dims.
        lhs = col_ref[...].reshape(NB * h * w, 9 * cin)
        y = jnp.dot(lhs, w_ref[...], preferred_element_type=jnp.float32)
        y = jnp.maximum(y + b_ref[...], 0.0)              # bias + ReLU (VPU)

        # ---- 2x2 maxpool, stride 2: sublane-pair max + leading-dim max. ----
        y = y.reshape(NB, h // 2, 2, w // 2, 2, cout)
        return jnp.max(y, axis=(2, 4))                    # (NB, h//2, w//2, cout)

    # Stage 1 reads the input tile; stages 2/3 consume VMEM-resident values.
    a1 = conv_relu_pool(x_ref[...], pad1, col1, w1_ref, b1_ref, H, W, C0, C1)
    a2 = conv_relu_pool(a1, pad2, col2, w2_ref, b2_ref, H // 2, W // 2, C1, C2)
    a3 = conv_relu_pool(a2, pad3, col3, w3_ref, b3_ref, H // 4, W // 4, C2, C3)
    o_ref[...] = a3.astype(o_ref.dtype)


def _tpu_padded_bytes(shape, itemsize=4):
    """Rough VMEM footprint of an f32 buffer after (8, 128) tile padding."""
    lead = 1
    for d in shape[:-2]:
        lead *= d
    sub = -(-shape[-2] // 8) * 8
    lane = -(-shape[-1] // 128) * 128
    return lead * sub * lane * itemsize


def _scratch_shapes(nb, H, W, C0, C1, C2):
    H2, W2, H4, W4 = H // 2, W // 2, H // 4, W // 4
    return [
        (nb, H + 2, W + 2, C0), (nb, H, W, 9 * C0),        # pad1, col1
        (nb, H2 + 2, W2 + 2, C1), (nb, H2, W2, 9 * C1),    # pad2, col2
        (nb, H4 + 2, W4 + 2, C2), (nb, H4, W4, 9 * C2),    # pad3, col3
    ]


def _pick_block_n(n, per_elem_bytes, budget=20 * 2**20):
    """Batch elements per grid step: amortize per-step overhead, but keep the
    grid >= 2 steps (both v7x TensorCores get work) and fit a scratch budget."""
    bn = n // 2 if n >= 2 else n
    bn = max(bn, 1)
    while bn > 1 and (n % bn != 0 or bn * per_elem_bytes > budget):
        bn -= 1
    return bn


def cnn_forward_impl(x_nchw, params):
    """Full CNN forward: NCHW in, NCHW out, one fused pallas_call."""
    # NCHW -> NHWC glue (tiny at these shapes). For large inputs keep the model
    # NHWC end-to-end to avoid this extra HBM pass.
    x = jnp.transpose(x_nchw, (0, 2, 3, 1))
    N, H, W, C0 = x.shape
    assert H % 8 == 0 and W % 8 == 0, "spatial dims must survive 3 maxpools"
    (w1, b1), (w2, b2), (w3, b3) = params
    C1, C2, C3 = w1.shape[-1], w2.shape[-1], w3.shape[-1]

    # Pre-flatten HWIO weights to the im2col layout (9*cin, cout); the row
    # order (kh, kw, ci) matches the in-kernel tap order t = kh*3 + kw.
    w1f = w1.reshape(9 * C0, C1)
    w2f = w2.reshape(9 * C1, C2)
    w3f = w3.reshape(9 * C2, C3)

    per_elem = sum(_tpu_padded_bytes(s)
                   for s in _scratch_shapes(1, H, W, C0, C1, C2))
    bn = _pick_block_n(N, per_elem)
    grid_n = N // bn

    # Estimated in-kernel VMEM (scratch + double-buffered I/O blocks + weights);
    # raise the scoped limit only when the default 32 MiB would be exceeded.
    vmem_est = (bn * per_elem
                + 2 * _tpu_padded_bytes((bn, H, W, C0))
                + 2 * _tpu_padded_bytes((bn, H // 8, W // 8, C3))
                + 2 * (_tpu_padded_bytes((9 * C0, C1))
                       + _tpu_padded_bytes((9 * C1, C2))
                       + _tpu_padded_bytes((9 * C2, C3))))
    vmem_limit = (int(min(vmem_est * 5 // 4, 127 * 2**20))
                  if vmem_est > 30 * 2**20 else None)

    kernel = functools.partial(
        fused_cnn_kernel, NB=bn, H=H, W=W, C0=C0, C1=C1, C2=C2, C3=C3
    )

    out_nhwc = pl.pallas_call(
        kernel,
        out_shape=jax.ShapeDtypeStruct((N, H // 8, W // 8, C3), x.dtype),
        grid_spec=pltpu.PrefetchScalarGridSpec(
            num_scalar_prefetch=0,
            grid=(grid_n,),
            in_specs=[
                pl.BlockSpec((bn, H, W, C0), lambda n: (n, 0, 0, 0)),
                pl.BlockSpec((9 * C0, C1), lambda n: (0, 0)),
                pl.BlockSpec((1, C1), lambda n: (0, 0)),
                pl.BlockSpec((9 * C1, C2), lambda n: (0, 0)),
                pl.BlockSpec((1, C2), lambda n: (0, 0)),
                pl.BlockSpec((9 * C2, C3), lambda n: (0, 0)),
                pl.BlockSpec((1, C3), lambda n: (0, 0)),
            ],
            out_specs=pl.BlockSpec(
                (bn, H // 8, W // 8, C3), lambda n: (n, 0, 0, 0)
            ),
            scratch_shapes=[pltpu.VMEM(s, jnp.float32)
                            for s in _scratch_shapes(bn, H, W, C0, C1, C2)],
        ),
        compiler_params=pltpu.CompilerParams(
            dimension_semantics=("parallel",),
            vmem_limit_bytes=vmem_limit,
        ),
    )(x, w1f, b1.reshape(1, C1), w2f, b2.reshape(1, C2), w3f, b3.reshape(1, C3))

    return jnp.transpose(out_nhwc, (0, 3, 1, 2))  # NHWC -> NCHW


cnn_forward = jax.jit(cnn_forward_impl)


def init_conv_params(key, c_in, c_out):
    """Deterministic init mimicking nn.Conv2d defaults (uniform +/- 1/sqrt(fan_in))."""
    kw_key, kb_key = jax.random.split(key)
    fan_in = c_in * 3 * 3
    bound = 1.0 / jnp.sqrt(jnp.float32(fan_in))
    w_oihw = jax.random.uniform(
        kw_key, (c_out, c_in, 3, 3), jnp.float32, minval=-bound, maxval=bound
    )
    b = jax.random.uniform(
        kb_key, (c_out,), jnp.float32, minval=-bound, maxval=bound
    )
    # OIHW (PyTorch) -> HWIO (kernel layout)
    return jnp.transpose(w_oihw, (2, 3, 1, 0)), b


def cnn_reference(x_nchw, params):
    """Pure-JAX reference (lax conv + reduce_window) for correctness check."""
    x = jnp.transpose(x_nchw, (0, 2, 3, 1))
    for w, b in params:
        y = jax.lax.conv_general_dilated(
            x, w, window_strides=(1, 1), padding=((1, 1), (1, 1)),
            dimension_numbers=("NHWC", "HWIO", "NHWC"),
        ) + b[None, None, None, :]
        y = jnp.maximum(y, 0.0)
        x = jax.lax.reduce_window(
            y, -jnp.inf, jax.lax.max, (1, 2, 2, 1), (1, 2, 2, 1), "VALID"
        )
    return jnp.transpose(x, (0, 3, 1, 2))


if __name__ == "__main__":
    # Small shapes consistent with the module: input_channels=3, output_channels=8.
    batch, c_in, spatial, c_out = 2, 3, 16, 8

    key = jax.random.PRNGKey(0)
    kx, k1, k2, k3 = jax.random.split(key, 4)

    # Matches `0.1 * torch.rand(...)` style input (uniform [0, 0.1)).
    x = 0.1 * jax.random.uniform(kx, (batch, c_in, spatial, spatial), jnp.float32)

    params = (
        init_conv_params(k1, c_in, 16),   # conv1: 3 -> 16
        init_conv_params(k2, 16, 32),     # conv2: 16 -> 32
        init_conv_params(k3, 32, c_out),  # conv3: 32 -> output_channels
    )

    out = cnn_forward(x, params)
    out = jax.block_until_ready(out)

    ref = cnn_reference(x, params)
    assert out.shape == (batch, c_out, spatial // 8, spatial // 8), out.shape
    assert jnp.allclose(out, ref, atol=1e-5, rtol=1e-5), "mismatch vs reference"

    print("KERNEL_OK")
</pallas_src>

<mosaic_0001>
module attributes {stable_mosaic.version = 11 : i64} {
  func.func @fused_cnn_kernel(%arg0: i32, %arg1: memref<1x16x16x3xf32, #tpu.memory_space<vmem>>, %arg2: memref<27x16xf32, #tpu.memory_space<vmem>>, %arg3: memref<1x16xf32, #tpu.memory_space<vmem>>, %arg4: memref<144x32xf32, #tpu.memory_space<vmem>>, %arg5: memref<1x32xf32, #tpu.memory_space<vmem>>, %arg6: memref<288x8xf32, #tpu.memory_space<vmem>>, %arg7: memref<1x8xf32, #tpu.memory_space<vmem>>, %arg8: memref<1x2x2x8xf32, #tpu.memory_space<vmem>>, %arg9: memref<1x18x18x3xf32, #tpu.memory_space<vmem>>, %arg10: memref<1x16x16x27xf32, #tpu.memory_space<vmem>>, %arg11: memref<1x10x10x16xf32, #tpu.memory_space<vmem>>, %arg12: memref<1x8x8x144xf32, #tpu.memory_space<vmem>>, %arg13: memref<1x6x6x32xf32, #tpu.memory_space<vmem>>, %arg14: memref<1x4x4x288xf32, #tpu.memory_space<vmem>>) attributes {dimension_semantics = [#tpu.dimension_semantics<parallel>], iteration_bounds = array<i64: 2>, scalar_prefetch = 0 : i64, scratch_operands = 6 : i64, tpu.core_type = #tpu.core_type<tc>, window_params = [{transform_indices = @transform_0, window_bounds = array<i64: 1, 16, 16, 3>}, {pipeline_mode = #tpu.pipeline_mode<synchronous>, transform_indices = @transform_1, window_bounds = array<i64: 27, 16>}, {pipeline_mode = #tpu.pipeline_mode<synchronous>, transform_indices = @transform_2, window_bounds = array<i64: 1, 16>}, {pipeline_mode = #tpu.pipeline_mode<synchronous>, transform_indices = @transform_3, window_bounds = array<i64: 144, 32>}, {pipeline_mode = #tpu.pipeline_mode<synchronous>, transform_indices = @transform_4, window_bounds = array<i64: 1, 32>}, {pipeline_mode = #tpu.pipeline_mode<synchronous>, transform_indices = @transform_5, window_bounds = array<i64: 288, 8>}, {pipeline_mode = #tpu.pipeline_mode<synchronous>, transform_indices = @transform_6, window_bounds = array<i64: 1, 8>}, {transform_indices = @transform_7, window_bounds = array<i64: 1, 2, 2, 8>}]} {
    %c0 = arith.constant 0 : index
    %c0_0 = arith.constant 0 : index
    %c0_1 = arith.constant 0 : index
    %c0_2 = arith.constant 0 : index
    %0 = vector.load %arg1[%c0, %c0_0, %c0_1, %c0_2] : memref<1x16x16x3xf32, #tpu.memory_space<vmem>>, vector<1x16x16x3xf32>
    %cst = arith.constant 0.000000e+00 : f32
    %1 = vector.broadcast %cst : f32 to vector<1x1x18x3xf32>
    %c0_3 = arith.constant 0 : index
    %c0_4 = arith.constant 0 : index
    %c0_5 = arith.constant 0 : index
    %c0_6 = arith.constant 0 : index
    %2 = vector.load %arg9[%c0_3, %c0_4, %c0_5, %c0_6] : memref<1x18x18x3xf32, #tpu.memory_space<vmem>>, vector<1x1x18x3xf32>
    tpu.vector_store %arg9[%c0_3, %c0_4, %c0_5, %c0_6], %1 {strides = array<i32>} : memref<1x18x18x3xf32, #tpu.memory_space<vmem>>, vector<1x1x18x3xf32>,
    %c0_7 = arith.constant 0 : index
    %c17 = arith.constant 17 : index
    %c0_8 = arith.constant 0 : index
    %c0_9 = arith.constant 0 : index
    %3 = vector.load %arg9[%c0_7, %c17, %c0_8, %c0_9] : memref<1x18x18x3xf32, #tpu.memory_space<vmem>>, vector<1x1x18x3xf32>
    tpu.vector_store %arg9[%c0_7, %c17, %c0_8, %c0_9], %1 {strides = array<i32>} : memref<1x18x18x3xf32, #tpu.memory_space<vmem>>, vector<1x1x18x3xf32>,
    %cst_10 = arith.constant 0.000000e+00 : f32
    %4 = vector.broadcast %cst_10 : f32 to vector<1x18x1x3xf32>
    %c0_11 = arith.constant 0 : index
    %c0_12 = arith.constant 0 : index
    %c0_13 = arith.constant 0 : index
    %c0_14 = arith.constant 0 : index
    %5 = vector.load %arg9[%c0_11, %c0_12, %c0_13, %c0_14] : memref<1x18x18x3xf32, #tpu.memory_space<vmem>>, vector<1x18x1x3xf32>
    tpu.vector_store %arg9[%c0_11, %c0_12, %c0_13, %c0_14], %4 {strides = array<i32>} : memref<1x18x18x3xf32, #tpu.memory_space<vmem>>, vector<1x18x1x3xf32>,
    %c0_15 = arith.constant 0 : index
    %c0_16 = arith.constant 0 : index
    %c17_17 = arith.constant 17 : index
    %c0_18 = arith.constant 0 : index
    %6 = vector.load %arg9[%c0_15, %c0_16, %c17_17, %c0_18] : memref<1x18x18x3xf32, #tpu.memory_space<vmem>>, vector<1x18x1x3xf32>
    tpu.vector_store %arg9[%c0_15, %c0_16, %c17_17, %c0_18], %4 {strides = array<i32>} : memref<1x18x18x3xf32, #tpu.memory_space<vmem>>, vector<1x18x1x3xf32>,
    %c0_19 = arith.constant 0 : index
    %c1 = arith.constant 1 : index
    %c1_20 = arith.constant 1 : index
    %c0_21 = arith.constant 0 : index
    %7 = vector.load %arg9[%c0_19, %c1, %c1_20, %c0_21] : memref<1x18x18x3xf32, #tpu.memory_space<vmem>>, vector<1x16x16x3xf32>
    tpu.vector_store %arg9[%c0_19, %c1, %c1_20, %c0_21], %0 {strides = array<i32>} : memref<1x18x18x3xf32, #tpu.memory_space<vmem>>, vector<1x16x16x3xf32>,
    %c0_22 = arith.constant 0 : index
    %c0_23 = arith.constant 0 : index
    %c0_24 = arith.constant 0 : index
    %c0_25 = arith.constant 0 : index
    %8 = vector.load %arg9[%c0_22, %c0_23, %c0_24, %c0_25] : memref<1x18x18x3xf32, #tpu.memory_space<vmem>>, vector<1x18x16x3xf32>
    %9 = vector.extract_strided_slice %8 {offsets = [0, 0, 0, 0], sizes = [1, 16, 16, 3], strides = [1, 1, 1, 1]} : vector<1x18x16x3xf32> to vector<1x16x16x3xf32>
    %c0_26 = arith.constant 0 : index
    %c0_27 = arith.constant 0 : index
    %c0_28 = arith.constant 0 : index
    %c0_29 = arith.constant 0 : index
    %10 = vector.load %arg10[%c0_26, %c0_27, %c0_28, %c0_29] : memref<1x16x16x27xf32, #tpu.memory_space<vmem>>, vector<1x16x16x3xf32>
    tpu.vector_store %arg10[%c0_26, %c0_27, %c0_28, %c0_29], %9 {strides = array<i32>} : memref<1x16x16x27xf32, #tpu.memory_space<vmem>>, vector<1x16x16x3xf32>,
    %11 = vector.extract_strided_slice %8 {offsets = [0, 1, 0, 0], sizes = [1, 16, 16, 3], strides = [1, 1, 1, 1]} : vector<1x18x16x3xf32> to vector<1x16x16x3xf32>
    %c0_30 = arith.constant 0 : index
    %c0_31 = arith.constant 0 : index
    %c0_32 = arith.constant 0 : index
    %c9 = arith.constant 9 : index
    %12 = vector.load %arg10[%c0_30, %c0_31, %c0_32, %c9] : memref<1x16x16x27xf32, #tpu.memory_space<vmem>>, vector<1x16x16x3xf32>
    tpu.vector_store %arg10[%c0_30, %c0_31, %c0_32, %c9], %11 {strides = array<i32>} : memref<1x16x16x27xf32, #tpu.memory_space<vmem>>, vector<1x16x16x3xf32>,
    %13 = vector.extract_strided_slice %8 {offsets = [0, 2, 0, 0], sizes = [1, 16, 16, 3], strides = [1, 1, 1, 1]} : vector<1x18x16x3xf32> to vector<1x16x16x3xf32>
    %c0_33 = arith.constant 0 : index
    %c0_34 = arith.constant 0 : index
    %c0_35 = arith.constant 0 : index
    %c18 = arith.constant 18 : index
    %14 = vector.load %arg10[%c0_33, %c0_34, %c0_35, %c18] : memref<1x16x16x27xf32, #tpu.memory_space<vmem>>, vector<1x16x16x3xf32>
    tpu.vector_store %arg10[%c0_33, %c0_34, %c0_35, %c18], %13 {strides = array<i32>} : memref<1x16x16x27xf32, #tpu.memory_space<vmem>>, vector<1x16x16x3xf32>,
    %c0_36 = arith.constant 0 : index
    %c0_37 = arith.constant 0 : index
    %c1_38 = arith.constant 1 : index
    %c0_39 = arith.constant 0 : index
    %15 = vector.load %arg9[%c0_36, %c0_37, %c1_38, %c0_39] : memref<1x18x18x3xf32, #tpu.memory_space<vmem>>, vector<1x18x16x3xf32>
    %16 = vector.extract_strided_slice %15 {offsets = [0, 0, 0, 0], sizes = [1, 16, 16, 3], strides = [1, 1, 1, 1]} : vector<1x18x16x3xf32> to vector<1x16x16x3xf32>
    %c0_40 = arith.constant 0 : index
    %c0_41 = arith.constant 0 : index
    %c0_42 = arith.constant 0 : index
    %c3 = arith.constant 3 : index
    %17 = vector.load %arg10[%c0_40, %c0_41, %c0_42, %c3] : memref<1x16x16x27xf32, #tpu.memory_space<vmem>>, vector<1x16x16x3xf32>
    tpu.vector_store %arg10[%c0_40, %c0_41, %c0_42, %c3], %16 {strides = array<i32>} : memref<1x16x16x27xf32, #tpu.memory_space<vmem>>, vector<1x16x16x3xf32>,
    %18 = vector.extract_strided_slice %15 {offsets = [0, 1, 0, 0], sizes = [1, 16, 16, 3], strides = [1, 1, 1, 1]} : vector<1x18x16x3xf32> to vector<1x16x16x3xf32>
    %c0_43 = arith.constant 0 : index
    %c0_44 = arith.constant 0 : index
    %c0_45 = arith.constant 0 : index
    %c12 = arith.constant 12 : index
    %19 = vector.load %arg10[%c0_43, %c0_44, %c0_45, %c12] : memref<1x16x16x27xf32, #tpu.memory_space<vmem>>, vector<1x16x16x3xf32>
    tpu.vector_store %arg10[%c0_43, %c0_44, %c0_45, %c12], %18 {strides = array<i32>} : memref<1x16x16x27xf32, #tpu.memory_space<vmem>>, vector<1x16x16x3xf32>,
    %20 = vector.extract_strided_slice %15 {offsets = [0, 2, 0, 0], sizes = [1, 16, 16, 3], strides = [1, 1, 1, 1]} : vector<1x18x16x3xf32> to vector<1x16x16x3xf32>
    %c0_46 = arith.constant 0 : index
    %c0_47 = arith.constant 0 : index
    %c0_48 = arith.constant 0 : index
    %c21 = arith.constant 21 : index
    %21 = vector.load %arg10[%c0_46, %c0_47, %c0_48, %c21] : memref<1x16x16x27xf32, #tpu.memory_space<vmem>>, vector<1x16x16x3xf32>
    tpu.vector_store %arg10[%c0_46, %c0_47, %c0_48, %c21], %20 {strides = array<i32>} : memref<1x16x16x27xf32, #tpu.memory_space<vmem>>, vector<1x16x16x3xf32>,
    %c0_49 = arith.constant 0 : index
    %c0_50 = arith.constant 0 : index
    %c2 = arith.constant 2 : index
    %c0_51 = arith.constant 0 : index
    %22 = vector.load %arg9[%c0_49, %c0_50, %c2, %c0_51] : memref<1x18x18x3xf32, #tpu.memory_space<vmem>>, vector<1x18x16x3xf32>
    %23 = vector.extract_strided_slice %22 {offsets = [0, 0, 0, 0], sizes = [1, 16, 16, 3], strides = [1, 1, 1, 1]} : vector<1x18x16x3xf32> to vector<1x16x16x3xf32>
    %c0_52 = arith.constant 0 : index
    %c0_53 = arith.constant 0 : index
    %c0_54 = arith.constant 0 : index
    %c6 = arith.constant 6 : index
    %24 = vector.load %arg10[%c0_52, %c0_53, %c0_54, %c6] : memref<1x16x16x27xf32, #tpu.memory_space<vmem>>, vector<1x16x16x3xf32>
    tpu.vector_store %arg10[%c0_52, %c0_53, %c0_54, %c6], %23 {strides = array<i32>} : memref<1x16x16x27xf32, #tpu.memory_space<vmem>>, vector<1x16x16x3xf32>,
    %25 = vector.extract_strided_slice %22 {offsets = [0, 1, 0, 0], sizes = [1, 16, 16, 3], strides = [1, 1, 1, 1]} : vector<1x18x16x3xf32> to vector<1x16x16x3xf32>
    %c0_55 = arith.constant 0 : index
    %c0_56 = arith.constant 0 : index
    %c0_57 = arith.constant 0 : index
    %c15 = arith.constant 15 : index
    %26 = vector.load %arg10[%c0_55, %c0_56, %c0_57, %c15] : memref<1x16x16x27xf32, #tpu.memory_space<vmem>>, vector<1x16x16x3xf32>
    tpu.vector_store %arg10[%c0_55, %c0_56, %c0_57, %c15], %25 {strides = array<i32>} : memref<1x16x16x27xf32, #tpu.memory_space<vmem>>, vector<1x16x16x3xf32>,
    %27 = vector.extract_strided_slice %22 {offsets = [0, 2, 0, 0], sizes = [1, 16, 16, 3], strides = [1, 1, 1, 1]} : vector<1x18x16x3xf32> to vector<1x16x16x3xf32>
    %c0_58 = arith.constant 0 : index
    %c0_59 = arith.constant 0 : index
    %c0_60 = arith.constant 0 : index
    %c24 = arith.constant 24 : index
    %28 = vector.load %arg10[%c0_58, %c0_59, %c0_60, %c24] : memref<1x16x16x27xf32, #tpu.memory_space<vmem>>, vector<1x16x16x3xf32>
    tpu.vector_store %arg10[%c0_58, %c0_59, %c0_60, %c24], %27 {strides = array<i32>} : memref<1x16x16x27xf32, #tpu.memory_space<vmem>>, vector<1x16x16x3xf32>,
    %c0_61 = arith.constant 0 : index
    %c0_62 = arith.constant 0 : index
    %c0_63 = arith.constant 0 : index
    %c0_64 = arith.constant 0 : index
    %29 = vector.load %arg10[%c0_61, %c0_62, %c0_63, %c0_64] : memref<1x16x16x27xf32, #tpu.memory_space<vmem>>, vector<1x16x16x27xf32>
    %30 = vector.shape_cast %29 : vector<1x16x16x27xf32> to vector<256x27xf32>
    %c0_65 = arith.constant 0 : index
    %c0_66 = arith.constant 0 : index
    %31 = vector.load %arg2[%c0_65, %c0_66] : memref<27x16xf32, #tpu.memory_space<vmem>>, vector<27x16xf32>
    %cst_67 = arith.constant dense<0.000000e+00> : vector<256x16xf32>
    %32 = tpu.matmul %30, %31, %cst_67 {dimension_numbers = #tpu.dot_dimension_numbers<[1], [0], [0], [1], [0, 0, 1, 1], [], []>} : vector<256x27xf32>, vector<27x16xf32>, vector<256x16xf32> -> vector<256x16xf32>
    %c0_68 = arith.constant 0 : index
    %c0_69 = arith.constant 0 : index
    %33 = vector.load %arg3[%c0_68, %c0_69] : memref<1x16xf32, #tpu.memory_space<vmem>>, vector<1x16xf32>
    %34 = vector.broadcast %33 : vector<1x16xf32> to vector<256x16xf32>
    %35 = arith.addf %32, %34 : vector<256x16xf32>
    %cst_70 = arith.constant 0.000000e+00 : f32
    %36 = vector.broadcast %cst_70 : f32 to vector<256x16xf32>
    %37 = arith.maximumf %35, %36 : vector<256x16xf32>
    %38 = vector.shape_cast %37 : vector<256x16xf32> to vector<1x8x2x8x2x16xf32>
    %cst_71 = arith.constant dense<0xFF800000> : vector<1x8x8x16xf32>
    %39 = vector.multi_reduction <maximumf>, %38, %cst_71 [2, 4] : vector<1x8x2x8x2x16xf32> to vector<1x8x8x16xf32>
    %cst_72 = arith.constant 0.000000e+00 : f32
    %40 = vector.broadcast %cst_72 : f32 to vector<1x1x10x16xf32>
    %c0_73 = arith.constant 0 : index
    %c0_74 = arith.constant 0 : index
    %c0_75 = arith.constant 0 : index
    %c0_76 = arith.constant 0 : index
    %41 = vector.load %arg11[%c0_73, %c0_74, %c0_75, %c0_76] : memref<1x10x10x16xf32, #tpu.memory_space<vmem>>, vector<1x1x10x16xf32>
    tpu.vector_store %arg11[%c0_73, %c0_74, %c0_75, %c0_76], %40 {strides = array<i32>} : memref<1x10x10x16xf32, #tpu.memory_space<vmem>>, vector<1x1x10x16xf32>,
    %c0_77 = arith.constant 0 : index
    %c9_78 = arith.constant 9 : index
    %c0_79 = arith.constant 0 : index
    %c0_80 = arith.constant 0 : index
    %42 = vector.load %arg11[%c0_77, %c9_78, %c0_79, %c0_80] : memref<1x10x10x16xf32, #tpu.memory_space<vmem>>, vector<1x1x10x16xf32>
    tpu.vector_store %arg11[%c0_77, %c9_78, %c0_79, %c0_80], %40 {strides = array<i32>} : memref<1x10x10x16xf32, #tpu.memory_space<vmem>>, vector<1x1x10x16xf32>,
    %cst_81 = arith.constant 0.000000e+00 : f32
    %43 = vector.broadcast %cst_81 : f32 to vector<1x10x1x16xf32>
    %c0_82 = arith.constant 0 : index
    %c0_83 = arith.constant 0 : index
    %c0_84 = arith.constant 0 : index
    %c0_85 = arith.constant 0 : index
    %44 = vector.load %arg11[%c0_82, %c0_83, %c0_84, %c0_85] : memref<1x10x10x16xf32, #tpu.memory_space<vmem>>, vector<1x10x1x16xf32>
    tpu.vector_store %arg11[%c0_82, %c0_83, %c0_84, %c0_85], %43 {strides = array<i32>} : memref<1x10x10x16xf32, #tpu.memory_space<vmem>>, vector<1x10x1x16xf32>,
    %c0_86 = arith.constant 0 : index
    %c0_87 = arith.constant 0 : index
    %c9_88 = arith.constant 9 : index
    %c0_89 = arith.constant 0 : index
    %45 = vector.load %arg11[%c0_86, %c0_87, %c9_88, %c0_89] : memref<1x10x10x16xf32, #tpu.memory_space<vmem>>, vector<1x10x1x16xf32>
    tpu.vector_store %arg11[%c0_86, %c0_87, %c9_88, %c0_89], %43 {strides = array<i32>} : memref<1x10x10x16xf32, #tpu.memory_space<vmem>>, vector<1x10x1x16xf32>,
    %c0_90 = arith.constant 0 : index
    %c1_91 = arith.constant 1 : index
    %c1_92 = arith.constant 1 : index
    %c0_93 = arith.constant 0 : index
    %46 = vector.load %arg11[%c0_90, %c1_91, %c1_92, %c0_93] : memref<1x10x10x16xf32, #tpu.memory_space<vmem>>, vector<1x8x8x16xf32>
    tpu.vector_store %arg11[%c0_90, %c1_91, %c1_92, %c0_93], %39 {strides = array<i32>} : memref<1x10x10x16xf32, #tpu.memory_space<vmem>>, vector<1x8x8x16xf32>,
    %c0_94 = arith.constant 0 : index
    %c0_95 = arith.constant 0 : index
    %c0_96 = arith.constant 0 : index
    %c0_97 = arith.constant 0 : index
    %47 = vector.load %arg11[%c0_94, %c0_95, %c0_96, %c0_97] : memref<1x10x10x16xf32, #tpu.memory_space<vmem>>, vector<1x10x8x16xf32>
    %48 = vector.extract_strided_slice %47 {offsets = [0, 0, 0, 0], sizes = [1, 8, 8, 16], strides = [1, 1, 1, 1]} : vector<1x10x8x16xf32> to vector<1x8x8x16xf32>
    %c0_98 = arith.constant 0 : index
    %c0_99 = arith.constant 0 : index
    %c0_100 = arith.constant 0 : index
    %c0_101 = arith.constant 0 : index
    %49 = vector.load %arg12[%c0_98, %c0_99, %c0_100, %c0_101] : memref<1x8x8x144xf32, #tpu.memory_space<vmem>>, vector<1x8x8x16xf32>
    tpu.vector_store %arg12[%c0_98, %c0_99, %c0_100, %c0_101], %48 {strides = array<i32>} : memref<1x8x8x144xf32, #tpu.memory_space<vmem>>, vector<1x8x8x16xf32>,
    %50 = vector.extract_strided_slice %47 {offsets = [0, 1, 0, 0], sizes = [1, 8, 8, 16], strides = [1, 1, 1, 1]} : vector<1x10x8x16xf32> to vector<1x8x8x16xf32>
    %c0_102 = arith.constant 0 : index
    %c0_103 = arith.constant 0 : index
    %c0_104 = arith.constant 0 : index
    %c48 = arith.constant 48 : index
    %51 = vector.load %arg12[%c0_102, %c0_103, %c0_104, %c48] : memref<1x8x8x144xf32, #tpu.memory_space<vmem>>, vector<1x8x8x16xf32>
    tpu.vector_store %arg12[%c0_102, %c0_103, %c0_104, %c48], %50 {strides = array<i32>} : memref<1x8x8x144xf32, #tpu.memory_space<vmem>>, vector<1x8x8x16xf32>,
    %52 = vector.extract_strided_slice %47 {offsets = [0, 2, 0, 0], sizes = [1, 8, 8, 16], strides = [1, 1, 1, 1]} : vector<1x10x8x16xf32> to vector<1x8x8x16xf32>
    %c0_105 = arith.constant 0 : index
    %c0_106 = arith.constant 0 : index
    %c0_107 = arith.constant 0 : index
    %c96 = arith.constant 96 : index
    %53 = vector.load %arg12[%c0_105, %c0_106, %c0_107, %c96] : memref<1x8x8x144xf32, #tpu.memory_space<vmem>>, vector<1x8x8x16xf32>
    tpu.vector_store %arg12[%c0_105, %c0_106, %c0_107, %c96], %52 {strides = array<i32>} : memref<1x8x8x144xf32, #tpu.memory_space<vmem>>, vector<1x8x8x16xf32>,
    %c0_108 = arith.constant 0 : index
    %c0_109 = arith.constant 0 : index
    %c1_110 = arith.constant 1 : index
    %c0_111 = arith.constant 0 : index
    %54 = vector.load %arg11[%c0_108, %c0_109, %c1_110, %c0_111] : memref<1x10x10x16xf32, #tpu.memory_space<vmem>>, vector<1x10x8x16xf32>
    %55 = vector.extract_strided_slice %54 {offsets = [0, 0, 0, 0], sizes = [1, 8, 8, 16], strides = [1, 1, 1, 1]} : vector<1x10x8x16xf32> to vector<1x8x8x16xf32>
    %c0_112 = arith.constant 0 : index
    %c0_113 = arith.constant 0 : index
    %c0_114 = arith.constant 0 : index
    %c16 = arith.constant 16 : index
    %56 = vector.load %arg12[%c0_112, %c0_113, %c0_114, %c16] : memref<1x8x8x144xf32, #tpu.memory_space<vmem>>, vector<1x8x8x16xf32>
    tpu.vector_store %arg12[%c0_112, %c0_113, %c0_114, %c16], %55 {strides = array<i32>} : memref<1x8x8x144xf32, #tpu.memory_space<vmem>>, vector<1x8x8x16xf32>,
    %57 = vector.extract_strided_slice %54 {offsets = [0, 1, 0, 0], sizes = [1, 8, 8, 16], strides = [1, 1, 1, 1]} : vector<1x10x8x16xf32> to vector<1x8x8x16xf32>
    %c0_115 = arith.constant 0 : index
    %c0_116 = arith.constant 0 : index
    %c0_117 = arith.constant 0 : index
    %c64 = arith.constant 64 : index
    %58 = vector.load %arg12[%c0_115, %c0_116, %c0_117, %c64] : memref<1x8x8x144xf32, #tpu.memory_space<vmem>>, vector<1x8x8x16xf32>
    tpu.vector_store %arg12[%c0_115, %c0_116, %c0_117, %c64], %57 {strides = array<i32>} : memref<1x8x8x144xf32, #tpu.memory_space<vmem>>, vector<1x8x8x16xf32>,
    %59 = vector.extract_strided_slice %54 {offsets = [0, 2, 0, 0], sizes = [1, 8, 8, 16], strides = [1, 1, 1, 1]} : vector<1x10x8x16xf32> to vector<1x8x8x16xf32>
    %c0_118 = arith.constant 0 : index
    %c0_119 = arith.constant 0 : index
    %c0_120 = arith.constant 0 : index
    %c112 = arith.constant 112 : index
    %60 = vector.load %arg12[%c0_118, %c0_119, %c0_120, %c112] : memref<1x8x8x144xf32, #tpu.memory_space<vmem>>, vector<1x8x8x16xf32>
    tpu.vector_store %arg12[%c0_118, %c0_119, %c0_120, %c112], %59 {strides = array<i32>} : memref<1x8x8x144xf32, #tpu.memory_space<vmem>>, vector<1x8x8x16xf32>,
    %c0_121 = arith.constant 0 : index
    %c0_122 = arith.constant 0 : index
    %c2_123 = arith.constant 2 : index
    %c0_124 = arith.constant 0 : index
    %61 = vector.load %arg11[%c0_121, %c0_122, %c2_123, %c0_124] : memref<1x10x10x16xf32, #tpu.memory_space<vmem>>, vector<1x10x8x16xf32>
    %62 = vector.extract_strided_slice %61 {offsets = [0, 0, 0, 0], sizes = [1, 8, 8, 16], strides = [1, 1, 1, 1]} : vector<1x10x8x16xf32> to vector<1x8x8x16xf32>
    %c0_125 = arith.constant 0 : index
    %c0_126 = arith.constant 0 : index
    %c0_127 = arith.constant 0 : index
    %c32 = arith.constant 32 : index
    %63 = vector.load %arg12[%c0_125, %c0_126, %c0_127, %c32] : memref<1x8x8x144xf32, #tpu.memory_space<vmem>>, vector<1x8x8x16xf32>
    tpu.vector_store %arg12[%c0_125, %c0_126, %c0_127, %c32], %62 {strides = array<i32>} : memref<1x8x8x144xf32, #tpu.memory_space<vmem>>, vector<1x8x8x16xf32>,
    %64 = vector.extract_strided_slice %61 {offsets = [0, 1, 0, 0], sizes = [1, 8, 8, 16], strides = [1, 1, 1, 1]} : vector<1x10x8x16xf32> to vector<1x8x8x16xf32>
    %c0_128 = arith.constant 0 : index
    %c0_129 = arith.constant 0 : index
    %c0_130 = arith.constant 0 : index
    %c80 = arith.constant 80 : index
    %65 = vector.load %arg12[%c0_128, %c0_129, %c0_130, %c80] : memref<1x8x8x144xf32, #tpu.memory_space<vmem>>, vector<1x8x8x16xf32>
    tpu.vector_store %arg12[%c0_128, %c0_129, %c0_130, %c80], %64 {strides = array<i32>} : memref<1x8x8x144xf32, #tpu.memory_space<vmem>>, vector<1x8x8x16xf32>,
    %66 = vector.extract_strided_slice %61 {offsets = [0, 2, 0, 0], sizes = [1, 8, 8, 16], strides = [1, 1, 1, 1]} : vector<1x10x8x16xf32> to vector<1x8x8x16xf32>
    %c0_131 = arith.constant 0 : index
    %c0_132 = arith.constant 0 : index
    %c0_133 = arith.constant 0 : index
    %c128 = arith.constant 128 : index
    %67 = vector.load %arg12[%c0_131, %c0_132, %c0_133, %c128] : memref<1x8x8x144xf32, #tpu.memory_space<vmem>>, vector<1x8x8x16xf32>
    tpu.vector_store %arg12[%c0_131, %c0_132, %c0_133, %c128], %66 {strides = array<i32>} : memref<1x8x8x144xf32, #tpu.memory_space<vmem>>, vector<1x8x8x16xf32>,
    %c0_134 = arith.constant 0 : index
    %c0_135 = arith.constant 0 : index
    %c0_136 = arith.constant 0 : index
    %c0_137 = arith.constant 0 : index
    %68 = vector.load %arg12[%c0_134, %c0_135, %c0_136, %c0_137] : memref<1x8x8x144xf32, #tpu.memory_space<vmem>>, vector<1x8x8x144xf32>
    %69 = vector.shape_cast %68 : vector<1x8x8x144xf32> to vector<64x144xf32>
    %c0_138 = arith.constant 0 : index
    %c0_139 = arith.constant 0 : index
    %70 = vector.load %arg4[%c0_138, %c0_139] : memref<144x32xf32, #tpu.memory_space<vmem>>, vector<144x32xf32>
    %cst_140 = arith.constant dense<0.000000e+00> : vector<64x32xf32>
    %71 = tpu.matmul %69, %70, %cst_140 {dimension_numbers = #tpu.dot_dimension_numbers<[1], [0], [0], [1], [0, 0, 1, 1], [], []>} : vector<64x144xf32>, vector<144x32xf32>, vector<64x32xf32> -> vector<64x32xf32>
    %c0_141 = arith.constant 0 : index
    %c0_142 = arith.constant 0 : index
    %72 = vector.load %arg5[%c0_141, %c0_142] : memref<1x32xf32, #tpu.memory_space<vmem>>, vector<1x32xf32>
    %73 = vector.broadcast %72 : vector<1x32xf32> to vector<64x32xf32>
    %74 = arith.addf %71, %73 : vector<64x32xf32>
    %cst_143 = arith.constant 0.000000e+00 : f32
    %75 = vector.broadcast %cst_143 : f32 to vector<64x32xf32>
    %76 = arith.maximumf %74, %75 : vector<64x32xf32>
    %77 = vector.shape_cast %76 : vector<64x32xf32> to vector<1x4x2x4x2x32xf32>
    %cst_144 = arith.constant dense<0xFF800000> : vector<1x4x4x32xf32>
    %78 = vector.multi_reduction <maximumf>, %77, %cst_144 [2, 4] : vector<1x4x2x4x2x32xf32> to vector<1x4x4x32xf32>
    %cst_145 = arith.constant 0.000000e+00 : f32
    %79 = vector.broadcast %cst_145 : f32 to vector<1x1x6x32xf32>
    %c0_146 = arith.constant 0 : index
    %c0_147 = arith.constant 0 : index
    %c0_148 = arith.constant 0 : index
    %c0_149 = arith.constant 0 : index
    %80 = vector.load %arg13[%c0_146, %c0_147, %c0_148, %c0_149] : memref<1x6x6x32xf32, #tpu.memory_space<vmem>>, vector<1x1x6x32xf32>
    tpu.vector_store %arg13[%c0_146, %c0_147, %c0_148, %c0_149], %79 {strides = array<i32>} : memref<1x6x6x32xf32, #tpu.memory_space<vmem>>, vector<1x1x6x32xf32>,
    %c0_150 = arith.constant 0 : index
    %c5 = arith.constant 5 : index
    %c0_151 = arith.constant 0 : index
    %c0_152 = arith.constant 0 : index
    %81 = vector.load %arg13[%c0_150, %c5, %c0_151, %c0_152] : memref<1x6x6x32xf32, #tpu.memory_space<vmem>>, vector<1x1x6x32xf32>
    tpu.vector_store %arg13[%c0_150, %c5, %c0_151, %c0_152], %79 {strides = array<i32>} : memref<1x6x6x32xf32, #tpu.memory_space<vmem>>, vector<1x1x6x32xf32>,
    %cst_153 = arith.constant 0.000000e+00 : f32
    %82 = vector.broadcast %cst_153 : f32 to vector<1x6x1x32xf32>
    %c0_154 = arith.constant 0 : index
    %c0_155 = arith.constant 0 : index
    %c0_156 = arith.constant 0 : index
    %c0_157 = arith.constant 0 : index
    %83 = vector.load %arg13[%c0_154, %c0_155, %c0_156, %c0_157] : memref<1x6x6x32xf32, #tpu.memory_space<vmem>>, vector<1x6x1x32xf32>
    tpu.vector_store %arg13[%c0_154, %c0_155, %c0_156, %c0_157], %82 {strides = array<i32>} : memref<1x6x6x32xf32, #tpu.memory_space<vmem>>, vector<1x6x1x32xf32>,
    %c0_158 = arith.constant 0 : index
    %c0_159 = arith.constant 0 : index
    %c5_160 = arith.constant 5 : index
    %c0_161 = arith.constant 0 : index
    %84 = vector.load %arg13[%c0_158, %c0_159, %c5_160, %c0_161] : memref<1x6x6x32xf32, #tpu.memory_space<vmem>>, vector<1x6x1x32xf32>
    tpu.vector_store %arg13[%c0_158, %c0_159, %c5_160, %c0_161], %82 {strides = array<i32>} : memref<1x6x6x32xf32, #tpu.memory_space<vmem>>, vector<1x6x1x32xf32>,
    %c0_162 = arith.constant 0 : index
    %c1_163 = arith.constant 1 : index
    %c1_164 = arith.constant 1 : index
    %c0_165 = arith.constant 0 : index
    %85 = vector.load %arg13[%c0_162, %c1_163, %c1_164, %c0_165] : memref<1x6x6x32xf32, #tpu.memory_space<vmem>>, vector<1x4x4x32xf32>
    tpu.vector_store %arg13[%c0_162, %c1_163, %c1_164, %c0_165], %78 {strides = array<i32>} : memref<1x6x6x32xf32, #tpu.memory_space<vmem>>, vector<1x4x4x32xf32>,
    %c0_166 = arith.constant 0 : index
    %c0_167 = arith.constant 0 : index
    %c0_168 = arith.constant 0 : index
    %c0_169 = arith.constant 0 : index
    %86 = vector.load %arg13[%c0_166, %c0_167, %c0_168, %c0_169] : memref<1x6x6x32xf32, #tpu.memory_space<vmem>>, vector<1x6x4x32xf32>
    %87 = vector.extract_strided_slice %86 {offsets = [0, 0, 0, 0], sizes = [1, 4, 4, 32], strides = [1, 1, 1, 1]} : vector<1x6x4x32xf32> to vector<1x4x4x32xf32>
    %c0_170 = arith.constant 0 : index
    %c0_171 = arith.constant 0 : index
    %c0_172 = arith.constant 0 : index
    %c0_173 = arith.constant 0 : index
    %88 = vector.load %arg14[%c0_170, %c0_171, %c0_172, %c0_173] : memref<1x4x4x288xf32, #tpu.memory_space<vmem>>, vector<1x4x4x32xf32>
    tpu.vector_store %arg14[%c0_170, %c0_171, %c0_172, %c0_173], %87 {strides = array<i32>} : memref<1x4x4x288xf32, #tpu.memory_space<vmem>>, vector<1x4x4x32xf32>,
    %89 = vector.extract_strided_slice %86 {offsets = [0, 1, 0, 0], sizes = [1, 4, 4, 32], strides = [1, 1, 1, 1]} : vector<1x6x4x32xf32> to vector<1x4x4x32xf32>
    %c0_174 = arith.constant 0 : index
    %c0_175 = arith.constant 0 : index
    %c0_176 = arith.constant 0 : index
    %c96_177 = arith.constant 96 : index
    %90 = vector.load %arg14[%c0_174, %c0_175, %c0_176, %c96_177] : memref<1x4x4x288xf32, #tpu.memory_space<vmem>>, vector<1x4x4x32xf32>
    tpu.vector_store %arg14[%c0_174, %c0_175, %c0_176, %c96_177], %89 {strides = array<i32>} : memref<1x4x4x288xf32, #tpu.memory_space<vmem>>, vector<1x4x4x32xf32>,
    %91 = vector.extract_strided_slice %86 {offsets = [0, 2, 0, 0], sizes = [1, 4, 4, 32], strides = [1, 1, 1, 1]} : vector<1x6x4x32xf32> to vector<1x4x4x32xf32>
    %c0_178 = arith.constant 0 : index
    %c0_179 = arith.constant 0 : index
    %c0_180 = arith.constant 0 : index
    %c192 = arith.constant 192 : index
    %92 = vector.load %arg14[%c0_178, %c0_179, %c0_180, %c192] : memref<1x4x4x288xf32, #tpu.memory_space<vmem>>, vector<1x4x4x32xf32>
    tpu.vector_store %arg14[%c0_178, %c0_179, %c0_180, %c192], %91 {strides = array<i32>} : memref<1x4x4x288xf32, #tpu.memory_space<vmem>>, vector<1x4x4x32xf32>,
    %c0_181 = arith.constant 0 : index
    %c0_182 = arith.constant 0 : index
    %c1_183 = arith.constant 1 : index
    %c0_184 = arith.constant 0 : index
    %93 = vector.load %arg13[%c0_181, %c0_182, %c1_183, %c0_184] : memref<1x6x6x32xf32, #tpu.memory_space<vmem>>, vector<1x6x4x32xf32>
    %94 = vector.extract_strided_slice %93 {offsets = [0, 0, 0, 0], sizes = [1, 4, 4, 32], strides = [1, 1, 1, 1]} : vector<1x6x4x32xf32> to vector<1x4x4x32xf32>
    %c0_185 = arith.constant 0 : index
    %c0_186 = arith.constant 0 : index
    %c0_187 = arith.constant 0 : index
    %c32_188 = arith.constant 32 : index
    %95 = vector.load %arg14[%c0_185, %c0_186, %c0_187, %c32_188] : memref<1x4x4x288xf32, #tpu.memory_space<vmem>>, vector<1x4x4x32xf32>
    tpu.vector_store %arg14[%c0_185, %c0_186, %c0_187, %c32_188], %94 {strides = array<i32>} : memref<1x4x4x288xf32, #tpu.memory_space<vmem>>, vector<1x4x4x32xf32>,
    %96 = vector.extract_strided_slice %93 {offsets = [0, 1, 0, 0], sizes = [1, 4, 4, 32], strides = [1, 1, 1, 1]} : vector<1x6x4x32xf32> to vector<1x4x4x32xf32>
    %c0_189 = arith.constant 0 : index
    %c0_190 = arith.constant 0 : index
    %c0_191 = arith.constant 0 : index
    %c128_192 = arith.constant 128 : index
    %97 = vector.load %arg14[%c0_189, %c0_190, %c0_191, %c128_192] : memref<1x4x4x288xf32, #tpu.memory_space<vmem>>, vector<1x4x4x32xf32>
    tpu.vector_store %arg14[%c0_189, %c0_190, %c0_191, %c128_192], %96 {strides = array<i32>} : memref<1x4x4x288xf32, #tpu.memory_space<vmem>>, vector<1x4x4x32xf32>,
    %98 = vector.extract_strided_slice %93 {offsets = [0, 2, 0, 0], sizes = [1, 4, 4, 32], strides = [1, 1, 1, 1]} : vector<1x6x4x32xf32> to vector<1x4x4x32xf32>
    %c0_193 = arith.constant 0 : index
    %c0_194 = arith.constant 0 : index
    %c0_195 = arith.constant 0 : index
    %c224 = arith.constant 224 : index
    %99 = vector.load %arg14[%c0_193, %c0_194, %c0_195, %c224] : memref<1x4x4x288xf32, #tpu.memory_space<vmem>>, vector<1x4x4x32xf32>
    tpu.vector_store %arg14[%c0_193, %c0_194, %c0_195, %c224], %98 {strides = array<i32>} : memref<1x4x4x288xf32, #tpu.memory_space<vmem>>, vector<1x4x4x32xf32>,
    %c0_196 = arith.constant 0 : index
    %c0_197 = arith.constant 0 : index
    %c2_198 = arith.constant 2 : index
    %c0_199 = arith.constant 0 : index
    %100 = vector.load %arg13[%c0_196, %c0_197, %c2_198, %c0_199] : memref<1x6x6x32xf32, #tpu.memory_space<vmem>>, vector<1x6x4x32xf32>
    %101 = vector.extract_strided_slice %100 {offsets = [0, 0, 0, 0], sizes = [1, 4, 4, 32], strides = [1, 1, 1, 1]} : vector<1x6x4x32xf32> to vector<1x4x4x32xf32>
    %c0_200 = arith.constant 0 : index
    %c0_201 = arith.constant 0 : index
    %c0_202 = arith.constant 0 : index
    %c64_203 = arith.constant 64 : index
    %102 = vector.load %arg14[%c0_200, %c0_201, %c0_202, %c64_203] : memref<1x4x4x288xf32, #tpu.memory_space<vmem>>, vector<1x4x4x32xf32>
    tpu.vector_store %arg14[%c0_200, %c0_201, %c0_202, %c64_203], %101 {strides = array<i32>} : memref<1x4x4x288xf32, #tpu.memory_space<vmem>>, vector<1x4x4x32xf32>,
    %103 = vector.extract_strided_slice %100 {offsets = [0, 1, 0, 0], sizes = [1, 4, 4, 32], strides = [1, 1, 1, 1]} : vector<1x6x4x32xf32> to vector<1x4x4x32xf32>
    %c0_204 = arith.constant 0 : index
    %c0_205 = arith.constant 0 : index
    %c0_206 = arith.constant 0 : index
    %c160 = arith.constant 160 : index
    %104 = vector.load %arg14[%c0_204, %c0_205, %c0_206, %c160] : memref<1x4x4x288xf32, #tpu.memory_space<vmem>>, vector<1x4x4x32xf32>
    tpu.vector_store %arg14[%c0_204, %c0_205, %c0_206, %c160], %103 {strides = array<i32>} : memref<1x4x4x288xf32, #tpu.memory_space<vmem>>, vector<1x4x4x32xf32>,
    %105 = vector.extract_strided_slice %100 {offsets = [0, 2, 0, 0], sizes = [1, 4, 4, 32], strides = [1, 1, 1, 1]} : vector<1x6x4x32xf32> to vector<1x4x4x32xf32>
    %c0_207 = arith.constant 0 : index
    %c0_208 = arith.constant 0 : index
    %c0_209 = arith.constant 0 : index
    %c256 = arith.constant 256 : index
    %106 = vector.load %arg14[%c0_207, %c0_208, %c0_209, %c256] : memref<1x4x4x288xf32, #tpu.memory_space<vmem>>, vector<1x4x4x32xf32>
    tpu.vector_store %arg14[%c0_207, %c0_208, %c0_209, %c256], %105 {strides = array<i32>} : memref<1x4x4x288xf32, #tpu.memory_space<vmem>>, vector<1x4x4x32xf32>,
    %c0_210 = arith.constant 0 : index
    %c0_211 = arith.constant 0 : index
    %c0_212 = arith.constant 0 : index
    %c0_213 = arith.constant 0 : index
    %107 = vector.load %arg14[%c0_210, %c0_211, %c0_212, %c0_213] : memref<1x4x4x288xf32, #tpu.memory_space<vmem>>, vector<1x4x4x288xf32>
    %108 = vector.shape_cast %107 : vector<1x4x4x288xf32> to vector<16x288xf32>
    %c0_214 = arith.constant 0 : index
    %c0_215 = arith.constant 0 : index
    %109 = vector.load %arg6[%c0_214, %c0_215] : memref<288x8xf32, #tpu.memory_space<vmem>>, vector<288x8xf32>
    %cst_216 = arith.constant dense<0.000000e+00> : vector<16x8xf32>
    %110 = tpu.matmul %108, %109, %cst_216 {dimension_numbers = #tpu.dot_dimension_numbers<[1], [0], [0], [1], [0, 0, 1, 1], [], []>} : vector<16x288xf32>, vector<288x8xf32>, vector<16x8xf32> -> vector<16x8xf32>
    %c0_217 = arith.constant 0 : index
    %c0_218 = arith.constant 0 : index
    %111 = vector.load %arg7[%c0_217, %c0_218] : memref<1x8xf32, #tpu.memory_space<vmem>>, vector<1x8xf32>
    %112 = vector.broadcast %111 : vector<1x8xf32> to vector<16x8xf32>
    %113 = arith.addf %110, %112 : vector<16x8xf32>
    %cst_219 = arith.constant 0.000000e+00 : f32
    %114 = vector.broadcast %cst_219 : f32 to vector<16x8xf32>
    %115 = arith.maximumf %113, %114 : vector<16x8xf32>
    %116 = vector.shape_cast %115 : vector<16x8xf32> to vector<1x2x2x2x2x8xf32>
    %cst_220 = arith.constant dense<0xFF800000> : vector<1x2x2x8xf32>
    %117 = vector.multi_reduction <maximumf>, %116, %cst_220 [2, 4] : vector<1x2x2x2x2x8xf32> to vector<1x2x2x8xf32>
    %c0_221 = arith.constant 0 : index
    %c0_222 = arith.constant 0 : index
    %c0_223 = arith.constant 0 : index
    %c0_224 = arith.constant 0 : index
    %118 = vector.load %arg8[%c0_221, %c0_222, %c0_223, %c0_224] : memref<1x2x2x8xf32, #tpu.memory_space<vmem>>, vector<1x2x2x8xf32>
    tpu.vector_store %arg8[%c0_221, %c0_222, %c0_223, %c0_224], %117 {strides = array<i32>} : memref<1x2x2x8xf32, #tpu.memory_space<vmem>>, vector<1x2x2x8xf32>,
    return
  }
  func.func @transform_0(%arg0: i32) -> (i32, i32, i32, i32) {
    %c0_i32 = arith.constant 0 : i32
    %c0_i32_0 = arith.constant 0 : i32
    %c0_i32_1 = arith.constant 0 : i32
    %c0_i32_2 = arith.constant 0 : i32
    return %arg0, %c0_i32, %c0_i32_0, %c0_i32_1 : i32, i32, i32, i32
  }
  func.func @transform_1(%arg0: i32) -> (i32, i32) {
    %c0_i32 = arith.constant 0 : i32
    %c0_i32_0 = arith.constant 0 : i32
    %c0_i32_1 = arith.constant 0 : i32
    return %c0_i32, %c0_i32_0 : i32, i32
  }
  func.func @transform_2(%arg0: i32) -> (i32, i32) {
    %c0_i32 = arith.constant 0 : i32
    %c0_i32_0 = arith.constant 0 : i32
    %c0_i32_1 = arith.constant 0 : i32
    return %c0_i32, %c0_i32_0 : i32, i32
  }
  func.func @transform_3(%arg0: i32) -> (i32, i32) {
    %c0_i32 = arith.constant 0 : i32
    %c0_i32_0 = arith.constant 0 : i32
    %c0_i32_1 = arith.constant 0 : i32
    return %c0_i32, %c0_i32_0 : i32, i32
  }
  func.func @transform_4(%arg0: i32) -> (i32, i32) {
    %c0_i32 = arith.constant 0 : i32
    %c0_i32_0 = arith.constant 0 : i32
    %c0_i32_1 = arith.constant 0 : i32
    return %c0_i32, %c0_i32_0 : i32, i32
  }
  func.func @transform_5(%arg0: i32) -> (i32, i32) {
    %c0_i32 = arith.constant 0 : i32
    %c0_i32_0 = arith.constant 0 : i32
    %c0_i32_1 = arith.constant 0 : i32
    return %c0_i32, %c0_i32_0 : i32, i32
  }
  func.func @transform_6(%arg0: i32) -> (i32, i32) {
    %c0_i32 = arith.constant 0 : i32
    %c0_i32_0 = arith.constant 0 : i32
    %c0_i32_1 = arith.constant 0 : i32
    return %c0_i32, %c0_i32_0 : i32, i32
  }
  func.func @transform_7(%arg0: i32) -> (i32, i32, i32, i32) {
    %c0_i32 = arith.constant 0 : i32
    %c0_i32_0 = arith.constant 0 : i32
    %c0_i32_1 = arith.constant 0 : i32
    %c0_i32_2 = arith.constant 0 : i32
    return %arg0, %c0_i32, %c0_i32_0, %c0_i32_1 : i32, i32, i32, i32
  }
}

</mosaic_0001>

<llo_original>
// kernel: cnn_forward_impl.1
$region0: #{cnn_forward_impl.1}
  #allocation0 [shape = 'u32[]', space=smem, size = 0x4, offset = 0x4, fixed_abs, tag = 'smem constant byte address 0x4 - core index']
  #allocation1 [shape = 'u32[144,128]{1,0:T(1,128)}', space=vmem, size = 0x12000, scoped, tag = 'internal scratch']
  #allocation2 [shape = 'f32[1,18,18,3]{3,2,1,0:T(8,128)}', space=vmem, size = 0x36000, scoped, tag = 'scratch operand']
  #allocation3 [shape = 'f32[1,16,16,27]{3,2,1,0:T(8,128)}', space=vmem, size = 0x20000, scoped, tag = 'scratch operand']
  #allocation4 [shape = 'f32[1,10,10,16]{3,2,1,0:T(8,128)}', space=vmem, size = 0x14000, scoped, tag = 'scratch operand']
  #allocation5 [shape = 'f32[1,8,8,144]{3,2,1,0:T(8,128)}', space=vmem, size = 0x10000, scoped, tag = 'scratch operand']
  #allocation6 [shape = 'f32[1,6,6,32]{3,2,1,0:T(8,128)}', space=vmem, size = 0x6000, scoped, tag = 'scratch operand']
  #allocation7 [shape = 'f32[1,4,4,288]{3,2,1,0:T(4,128)}', space=vmem, size = 0x6000, scoped, tag = 'scratch operand']
  %s0 = inlined_call_operand.vmem [shape: f32[2,16,16,3], index: 0, kind: input, shape index: {}]
  %s1 = inlined_call_operand.vmem [shape: f32[27,16], index: 1, kind: input, shape index: {}]
  %s2 = inlined_call_operand.vmem [shape: f32[1,16], index: 2, kind: input, shape index: {}]
  %s3 = inlined_call_operand.vmem [shape: f32[144,32], index: 3, kind: input, shape index: {}]
  %s4 = inlined_call_operand.vmem [shape: f32[1,32], index: 4, kind: input, shape index: {}]
  %s5 = inlined_call_operand.vmem [shape: f32[288,8], index: 5, kind: input, shape index: {}]
  %s6 = inlined_call_operand.vmem [shape: f32[1,8], index: 6, kind: input, shape index: {}]
  %s7 = inlined_call_operand.hbm [shape: f32[2,2,2,8], index: 7, kind: output, shape index: {}]
  %s8 = sld [smem:[#allocation0]]
  $region61: #{cnn_forward_impl.1} parent=0
    _
  %s10 = ssub.s32 1, %s8
  %s11 = scalar_select 0, %s10, %s8
  $region1: #{cnn_forward_impl.1} parent=0
    #allocation8 [shape = 'u8[4096]{0}', space=vmem, size = 0x1000, scoped, tag = 'output window, operand 0']
    #allocation9 [shape = 's32[2]{0}', space=sflag, size = 0x8, scoped, tag = 'scoped memory for cnn_forward_impl.1']
    %12 = vsyncpa [#allocation9], 0
    %s13 = scalar_lea.sflag [#allocation9], 1
    %14 = vsyncpa %s13, 0
    loop: start=0, step=1, limit=4
    $region2: #{cnn_forward_impl.1} parent=1 // loop_pre_header
      _
    $region3: #{cnn_forward_impl.1} parent=1 // loop_header
      %s16 = sphi 0, %s20
      %p17 = scmp.ge.s32.totalorder %s16, 4
      %s26 = sphi 0, %s28
      %s29 = sphi 0, %s26
      %s30 = sphi 0, %s29
      %s46 = sphi 0, %s30
      %s50 = sphi 0, %s50
      %s52 = sphi 0, %s50
      %s53 = sphi 0, %s52
      %s67 = sphi 0, %s53
      %s71 = sphi 0, %s71
      %s73 = sphi 0, %s71
      %s74 = sphi 0, %s73
      %s88 = sphi 0, %s74
      %s92 = sphi 0, %s92
      %s94 = sphi 0, %s92
      %s95 = sphi 0, %s94
      %s109 = sphi 0, %s95
      %s113 = sphi 0, %s113
      %s115 = sphi 0, %s113
      %s116 = sphi 0, %s115
      %s130 = sphi 0, %s116
      %s134 = sphi 0, %s134
      %s136 = sphi 0, %s134
      %s137 = sphi 0, %s136
      %s151 = sphi 0, %s137
      %s155 = sphi 0, %s155
      %s157 = sphi 0, %s155
      %s158 = sphi 0, %s157
      %s172 = sphi 0, %s158
      %s178 = sphi 0, %s180
      %s181 = sphi 0, %s178
      %s182 = sphi 0, %s181
      %s198 = sphi 0, %s182
    $region4: #{cnn_forward_impl.1} parent=1 // loop_header_branch
      %19 = sbr.rel (%p17) target = $region8
    $region5: #{cnn_forward_impl.1} parent=1 // loop_body
      %s21 = ssub.s32 %s16, 1
      %s22 = ssub.s32 %s16, 2
      %s23 = sadd.s32 %s16, 1
      %s24 = ssub.s32 %s16, %s23
      %p25 = scmp.eq.s32.totalorder %s24, 0
      %s27 = sadd.s32 %s26, 1
      %s28 = scalar_select %p25, %s26, %s27
      %p31 = pneg %p25
      %p32 = scmp.eq.s32.totalorder %s16, 1
      %p33 = por %p31, %p32
      %p34 = scmp.ne.s32.totalorder %s26, %s29
      %p35 = scmp.eq.s32.totalorder %s16, 0
      %p36 = por %p34, %p35
      %p37 = scmp.ne.s32.totalorder %s26, %s29
      %p38 = scmp.eq.s32.totalorder %s21, 1
      %p39 = por %p37, %p38
      %p40 = scmp.ne.s32.totalorder %s29, %s30
      %p41 = scmp.eq.s32.totalorder %s21, 0
      %p42 = por %p40, %p41
      %p43 = scmp.ne.s32.totalorder %s29, %s30
      %p44 = scmp.eq.s32.totalorder %s22, 1
      %p45 = por %p43, %p44
      %p47 = scmp.ne.s32.totalorder %s30, %s46
      %p48 = scmp.eq.s32.totalorder %s22, 0
      %p49 = por %p47, %p48
      %s51 = sadd.s32 %s50, 1
      %p54 = scmp.eq.s32.totalorder %s16, 1
      %p55 = scmp.ne.s32.totalorder %s50, %s52
      %p56 = scmp.eq.s32.totalorder %s16, 0
      %p57 = por %p55, %p56
      %p58 = scmp.ne.s32.totalorder %s50, %s52
      %p59 = scmp.eq.s32.totalorder %s21, 1
      %p60 = por %p58, %p59
      %p61 = scmp.ne.s32.totalorder %s52, %s53
      %p62 = scmp.eq.s32.totalorder %s21, 0
      %p63 = por %p61, %p62
      %p64 = scmp.ne.s32.totalorder %s52, %s53
      %p65 = scmp.eq.s32.totalorder %s22, 1
      %p66 = por %p64, %p65
      %p68 = scmp.ne.s32.totalorder %s53, %s67
      %p69 = scmp.eq.s32.totalorder %s22, 0
      %p70 = por %p68, %p69
      %s72 = sadd.s32 %s71, 1
      %p75 = scmp.eq.s32.totalorder %s16, 1
      %p76 = scmp.ne.s32.totalorder %s71, %s73
      %p77 = scmp.eq.s32.totalorder %s16, 0
      %p78 = por %p76, %p77
      %p79 = scmp.ne.s32.totalorder %s71, %s73
      %p80 = scmp.eq.s32.totalorder %s21, 1
      %p81 = por %p79, %p80
      %p82 = scmp.ne.s32.totalorder %s73, %s74
      %p83 = scmp.eq.s32.totalorder %s21, 0
      %p84 = por %p82, %p83
      %p85 = scmp.ne.s32.totalorder %s73, %s74
      %p86 = scmp.eq.s32.totalorder %s22, 1
      %p87 = por %p85, %p86
      %p89 = scmp.ne.s32.totalorder %s74, %s88
      %p90 = scmp.eq.s32.totalorder %s22, 0
      %p91 = por %p89, %p90
      %s93 = sadd.s32 %s92, 1
      %p96 = scmp.eq.s32.totalorder %s16, 1
      %p97 = scmp.ne.s32.totalorder %s92, %s94
      %p98 = scmp.eq.s32.totalorder %s16, 0
      %p99 = por %p97, %p98
      %p100 = scmp.ne.s32.totalorder %s92, %s94
      %p101 = scmp.eq.s32.totalorder %s21, 1
      %p102 = por %p100, %p101
      %p103 = scmp.ne.s32.totalorder %s94, %s95
      %p104 = scmp.eq.s32.totalorder %s21, 0
      %p105 = por %p103, %p104
      %p106 = scmp.ne.s32.totalorder %s94, %s95
      %p107 = scmp.eq.s32.totalorder %s22, 1
      %p108 = por %p106, %p107
      %p110 = scmp.ne.s32.totalorder %s95, %s109
      %p111 = scmp.eq.s32.totalorder %s22, 0
      %p112 = por %p110, %p111
      %s114 = sadd.s32 %s113, 1
      %p117 = scmp.eq.s32.totalorder %s16, 1
      %p118 = scmp.ne.s32.totalorder %s113, %s115
      %p119 = scmp.eq.s32.totalorder %s16, 0
      %p120 = por %p118, %p119
      %p121 = scmp.ne.s32.totalorder %s113, %s115
      %p122 = scmp.eq.s32.totalorder %s21, 1
      %p123 = por %p121, %p122
      %p124 = scmp.ne.s32.totalorder %s115, %s116
      %p125 = scmp.eq.s32.totalorder %s21, 0
      %p126 = por %p124, %p125
      %p127 = scmp.ne.s32.totalorder %s115, %s116
      %p128 = scmp.eq.s32.totalorder %s22, 1
      %p129 = por %p127, %p128
      %p131 = scmp.ne.s32.totalorder %s116, %s130
      %p132 = scmp.eq.s32.totalorder %s22, 0
      %p133 = por %p131, %p132
      %s135 = sadd.s32 %s134, 1
      %p138 = scmp.eq.s32.totalorder %s16, 1
      %p139 = scmp.ne.s32.totalorder %s134, %s136
      %p140 = scmp.eq.s32.totalorder %s16, 0
      %p141 = por %p139, %p140
      %p142 = scmp.ne.s32.totalorder %s134, %s136
      %p143 = scmp.eq.s32.totalorder %s21, 1
      %p144 = por %p142, %p143
      %p145 = scmp.ne.s32.totalorder %s136, %s137
      %p146 = scmp.eq.s32.totalorder %s21, 0
      %p147 = por %p145, %p146
      %p148 = scmp.ne.s32.totalorder %s136, %s137
      %p149 = scmp.eq.s32.totalorder %s22, 1
      %p150 = por %p148, %p149
      %p152 = scmp.ne.s32.totalorder %s137, %s151
      %p153 = scmp.eq.s32.totalorder %s22, 0
      %p154 = por %p152, %p153
      %s156 = sadd.s32 %s155, 1
      %p159 = scmp.eq.s32.totalorder %s16, 1
      %p160 = scmp.ne.s32.totalorder %s155, %s157
      %p161 = scmp.eq.s32.totalorder %s16, 0
      %p162 = por %p160, %p161
      %p163 = scmp.ne.s32.totalorder %s155, %s157
      %p164 = scmp.eq.s32.totalorder %s21, 1
      %p165 = por %p163, %p164
      %p166 = scmp.ne.s32.totalorder %s157, %s158
      %p167 = scmp.eq.s32.totalorder %s21, 0
      %p168 = por %p166, %p167
      %p169 = scmp.ne.s32.totalorder %s157, %s158
      %p170 = scmp.eq.s32.totalorder %s22, 1
      %p171 = por %p169, %p170
      %p173 = scmp.ne.s32.totalorder %s158, %s172
      %p174 = scmp.eq.s32.totalorder %s22, 0
      %p175 = por %p173, %p174
      %s176 = ssub.s32 %s16, %s23
      %p177 = scmp.eq.s32.totalorder %s176, 0
      %s179 = sadd.s32 %s178, 1
      %s180 = scalar_select %p177, %s178, %s179
      %p183 = pneg %p177
      %p184 = scmp.eq.s32.totalorder %s16, 1
      %p185 = por %p183, %p184
      %p186 = scmp.ne.s32.totalorder %s178, %s181
      %p187 = scmp.eq.s32.totalorder %s16, 0
      %p188 = por %p186, %p187
      %p189 = scmp.ne.s32.totalorder %s178, %s181
      %p190 = scmp.eq.s32.totalorder %s21, 1
      %p191 = por %p189, %p190
      %p192 = scmp.ne.s32.totalorder %s181, %s182
      %p193 = scmp.eq.s32.totalorder %s21, 0
      %p194 = por %p192, %p193
      %p195 = scmp.ne.s32.totalorder %s181, %s182
      %p196 = scmp.eq.s32.totalorder %s22, 1
      %p197 = por %p195, %p196
      %p199 = scmp.ne.s32.totalorder %s182, %s198
      %p200 = scmp.eq.s32.totalorder %s22, 0
      %p201 = por %p199, %p200
      %p202 = scmp.le.s32.totalorder 1, %s16
      %p203 = scmp.lt.s32.totalorder %s16, 3
      %p204 = pnand %p202, %p203
      %p205 = pneg %p204
      // Predicated region
      $region9: #{cnn_forward_impl.1} parent=5 // pred_check
        _
      $region10: #{cnn_forward_impl.1} parent=5 // pred_check_branch
        %207 = sbr.rel (%p204) target = $region12
      $region11: #{cnn_forward_impl.1} parent=5 // pred_region
        %s208 = ssub.s32 %s16, 1
        // Predicated region
        $region13: #{cnn_forward_impl.1} parent=11 // pred_check
          %p209 = pneg %p63
        $region14: #{cnn_forward_impl.1} parent=11 // pred_check_branch
          %211 = sbr.rel (%p209) target = $region16
        $region15: #{cnn_forward_impl.1} parent=11 // pred_region
          _
        $region16: #{cnn_forward_impl.1} parent=11 // pred_fallthru
          _
        // Predicated region
        $region17: #{cnn_forward_impl.1} parent=11 // pred_check
          %p212 = pneg %p84
        $region18: #{cnn_forward_impl.1} parent=11 // pred_check_branch
          %214 = sbr.rel (%p212) target = $region20
        $region19: #{cnn_forward_impl.1} parent=11 // pred_region
          _
        $region20: #{cnn_forward_impl.1} parent=11 // pred_fallthru
          _
        // Predicated region
        $region21: #{cnn_forward_impl.1} parent=11 // pred_check
          %p215 = pneg %p105
        $region22: #{cnn_forward_impl.1} parent=11 // pred_check_branch
          %217 = sbr.rel (%p215) target = $region24
        $region23: #{cnn_forward_impl.1} parent=11 // pred_region
          _
        $region24: #{cnn_forward_impl.1} parent=11 // pred_fallthru
          _
        // Predicated region
        $region25: #{cnn_forward_impl.1} parent=11 // pred_check
          %p218 = pneg %p126
        $region26: #{cnn_forward_impl.1} parent=11 // pred_check_branch
          %220 = sbr.rel (%p218) target = $region28
        $region27: #{cnn_forward_impl.1} parent=11 // pred_region
          _
        $region28: #{cnn_forward_impl.1} parent=11 // pred_fallthru
          _
        // Predicated region
        $region29: #{cnn_forward_impl.1} parent=11 // pred_check
          %p221 = pneg %p147
        $region30: #{cnn_forward_impl.1} parent=11 // pred_check_branch
          %223 = sbr.rel (%p221) target = $region32
        $region31: #{cnn_forward_impl.1} parent=11 // pred_region
          _
        $region32: #{cnn_forward_impl.1} parent=11 // pred_fallthru
          _
        // Predicated region
        $region33: #{cnn_forward_impl.1} parent=11 // pred_check
          %p224 = pneg %p168
        $region34: #{cnn_forward_impl.1} parent=11 // pred_check_branch
          %226 = sbr.rel (%p224) target = $region36
        $region35: #{cnn_forward_impl.1} parent=11 // pred_region
          _
        $region36: #{cnn_forward_impl.1} parent=11 // pred_fallthru
          _
      $region12: #{cnn_forward_impl.1} parent=5 // pred_fallthru
        _
      %p227 = scmp.lt.s32.totalorder %s16, 2
      // Predicated region
      $region37: #{cnn_forward_impl.1} parent=5 // pred_check
        %p228 = pneg %p227
      $region38: #{cnn_forward_impl.1} parent=5 // pred_check_branch
        %230 = sbr.rel (%p228) target = $region40
      $region39: #{cnn_forward_impl.1} parent=5 // pred_region
        // Predicated region
        $region41: #{cnn_forward_impl.1} parent=39 // pred_check
          %p231 = pneg %p36
        $region42: #{cnn_forward_impl.1} parent=39 // pred_check_branch
          %233 = sbr.rel (%p231) target = $region44
        $region43: #{cnn_forward_impl.1} parent=39 // pred_region
          %p234 = scmp.lt.s32.totalorder %s16, 1
          %s235 = scalar_select %p234, %s16, 1
          %s236 = smul.addr %s235, 32
          %s237 = smul.addr %s236, 8
          %s238 = scalar_lea.vmem %s0, %s237
        $region44: #{cnn_forward_impl.1} parent=39 // pred_fallthru
          _
      $region40: #{cnn_forward_impl.1} parent=5 // pred_fallthru
        _
      %p239 = scmp.le.s32.totalorder 1, %s16
      %p240 = scmp.lt.s32.totalorder %s16, 3
      %p241 = pnand %p239, %p240
      %p242 = pneg %p241
      // Predicated region
      $region45: #{cnn_forward_impl.1} parent=5 // pred_check
        _
      $region46: #{cnn_forward_impl.1} parent=5 // pred_check_branch
        %244 = sbr.rel (%p241) target = $region48
      $region47: #{cnn_forward_impl.1} parent=5 // pred_region
        %s245 = ssub.s32 %s16, 1
        %p246 = scmp.lt.s32.totalorder %s21, 1
        %s247 = scalar_select %p246, %s21, 1
        %s248 = smul.addr %s247, 32
        %s249 = smul.addr %s248, 8
        %s250 = scalar_lea.vmem %s0, %s249
        %p251 = pneg %p42
        %p252 = pneg %p39
        %p253 = pneg %p63
        %p254 = pneg %p60
        %p255 = pneg %p84
        %p256 = pneg %p81
        %p257 = pneg %p105
        %p258 = pneg %p102
        %p259 = pneg %p126
        %p260 = pneg %p123
        %p261 = pneg %p147
        %p262 = pneg %p144
        %p263 = pneg %p168
        %p264 = pneg %p165
        %p265 = pneg %p194
        %p266 = pneg %p191
        %s267 = sand.u32 %s181, 1
        %s268 = scalar_lea.sflag [#allocation9], %s267
        %s269 = sand.u32 %s181, 1
        %s270 = smul.addr %s269, 4
        %s271 = scalar_lea.vmem [#allocation8], %s270
        %p272 = scmp.lt.s32.totalorder %s21, 1
        %s273 = scalar_select %p272, %s21, 1
        %s274 = smul.addr %s273, 32
        %s275 = smul.addr %s274, 8
        %s276 = scalar_lea.vmem %s0, %s275
        %v277 = vld [vmem:[%s276] sm:$0xff]
        %v278 = vld [vmem:[%s276 + $0x8] sm:$0xff]
        %v279 = vld [vmem:[%s276 + $0x10] sm:$0xff]
        %v280 = vld [vmem:[%s276 + $0x18] sm:$0xff]
        %v281 = vld [vmem:[%s276 + $0x20] sm:$0xff]
        %v282 = vld [vmem:[%s276 + $0x28] sm:$0xff]
        %v283 = vld [vmem:[%s276 + $0x30] sm:$0xff]
        %v284 = vld [vmem:[%s276 + $0x38] sm:$0xff]
        %v285 = vld [vmem:[%s276 + $0x40] sm:$0xff]
        %v286 = vld [vmem:[%s276 + $0x48] sm:$0xff]
        %v287 = vld [vmem:[%s276 + $0x50] sm:$0xff]
        %v288 = vld [vmem:[%s276 + $0x58] sm:$0xff]
        %v289 = vld [vmem:[%s276 + $0x60] sm:$0xff]
        %v290 = vld [vmem:[%s276 + $0x68] sm:$0xff]
        %v291 = vld [vmem:[%s276 + $0x70] sm:$0xff]
        %v292 = vld [vmem:[%s276 + $0x78] sm:$0xff]
        %v293 = vld [vmem:[%s276 + $0x80] sm:$0xff]
        %v294 = vld [vmem:[%s276 + $0x88] sm:$0xff]
        %v295 = vld [vmem:[%s276 + $0x90] sm:$0xff]
        %v296 = vld [vmem:[%s276 + $0x98] sm:$0xff]
        %v297 = vld [vmem:[%s276 + $0xa0] sm:$0xff]
        %v298 = vld [vmem:[%s276 + $0xa8] sm:$0xff]
        %v299 = vld [vmem:[%s276 + $0xb0] sm:$0xff]
        %v300 = vld [vmem:[%s276 + $0xb8] sm:$0xff]
        %v301 = vld [vmem:[%s276 + $0xc0] sm:$0xff]
        %v302 = vld [vmem:[%s276 + $0xc8] sm:$0xff]
        %v303 = vld [vmem:[%s276 + $0xd0] sm:$0xff]
        %v304 = vld [vmem:[%s276 + $0xd8] sm:$0xff]
        %v305 = vld [vmem:[%s276 + $0xe0] sm:$0xff]
        %v306 = vld [vmem:[%s276 + $0xe8] sm:$0xff]
        %v307 = vld [vmem:[%s276 + $0xf0] sm:$0xff]
        %v308 = vld [vmem:[%s276 + $0xf8] sm:$0xff]
        %vm309 = vcmask 23552
        %310 = vst.msk [vmem:[#allocation2] sm:$0xff] %vm309, 0.0
        %311 = vst.msk [vmem:[#allocation2 + $0x8] sm:$0xff] %vm309, 0.0
        %vm312 = vcmask 17408
        %313 = vst.msk [vmem:[#allocation2 + $0x10] sm:$0x3] %vm312, 0.0
        %s314 = scalar_lea.vmem [#allocation2], 408
        %315 = vst.msk [vmem:[%s314] sm:$0xff] %vm309, 0.0
        %316 = vst.msk [vmem:[%s314 + $0x8] sm:$0xff] %vm309, 0.0
        %317 = vst.msk [vmem:[%s314 + $0x10] sm:$0x3] %vm312, 0.0
        %vm318 = vcmask 16384
        %319 = vst.msk [vmem:[#allocation2] sm:$0x1] %vm318, 0.0
        %320 = vst.msk [vmem:[#allocation2 + $0x18] sm:$0x1] %vm318, 0.0
        %321 = vst.msk [vmem:[#allocation2 + $0x30] sm:$0x1] %vm318, 0.0
        %322 = vst.msk [vmem:[#allocation2 + $0x48] sm:$0x1] %vm318, 0.0
        %323 = vst.msk [vmem:[#allocation2 + $0x60] sm:$0x1] %vm318, 0.0
        %324 = vst.msk [vmem:[#allocation2 + $0x78] sm:$0x1] %vm318, 0.0
        %325 = vst.msk [vmem:[#allocation2 + $0x90] sm:$0x1] %vm318, 0.0
        %326 = vst.msk [vmem:[#allocation2 + $0xa8] sm:$0x1] %vm318, 0.0
        %327 = vst.msk [vmem:[#allocation2 + $0xc0] sm:$0x1] %vm318, 0.0
        %328 = vst.msk [vmem:[#allocation2 + $0xd8] sm:$0x1] %vm318, 0.0
        %329 = vst.msk [vmem:[#allocation2 + $0xf0] sm:$0x1] %vm318, 0.0
        %330 = vst.msk [vmem:[#allocation2 + $0x108] sm:$0x1] %vm318, 0.0
        %331 = vst.msk [vmem:[#allocation2 + $0x120] sm:$0x1] %vm318, 0.0
        %332 = vst.msk [vmem:[#allocation2 + $0x138] sm:$0x1] %vm318, 0.0
        %333 = vst.msk [vmem:[#allocation2 + $0x150] sm:$0x1] %vm318, 0.0
        %334 = vst.msk [vmem:[#allocation2 + $0x168] sm:$0x1] %vm318, 0.0
        %335 = vst.msk [vmem:[#allocation2 + $0x180] sm:$0x1] %vm318, 0.0
        %336 = vst.msk [vmem:[#allocation2 + $0x198] sm:$0x1] %vm318, 0.0
        %337 = vst.msk [vmem:[#allocation2 + $0x11] sm:$0x1] %vm318, 0.0
        %338 = vst.msk [vmem:[#allocation2 + $0x29] sm:$0x1] %vm318, 0.0
        %339 = vst.msk [vmem:[#allocation2 + $0x41] sm:$0x1] %vm318, 0.0
        %340 = vst.msk [vmem:[#allocation2 + $0x59] sm:$0x1] %vm318, 0.0
        %341 = vst.msk [vmem:[#allocation2 + $0x71] sm:$0x1] %vm318, 0.0
        %342 = vst.msk [vmem:[#allocation2 + $0x89] sm:$0x1] %vm318, 0.0
        %343 = vst.msk [vmem:[#allocation2 + $0xa1] sm:$0x1] %vm318, 0.0
        %344 = vst.msk [vmem:[#allocation2 + $0xb9] sm:$0x1] %vm318, 0.0
        %345 = vst.msk [vmem:[#allocation2 + $0xd1] sm:$0x1] %vm318, 0.0
        %346 = vst.msk [vmem:[#allocation2 + $0xe9] sm:$0x1] %vm318, 0.0
        %347 = vst.msk [vmem:[#allocation2 + $0x101] sm:$0x1] %vm318, 0.0
        %348 = vst.msk [vmem:[#allocation2 + $0x119] sm:$0x1] %vm318, 0.0
        %349 = vst.msk [vmem:[#allocation2 + $0x131] sm:$0x1] %vm318, 0.0
        %350 = vst.msk [vmem:[#allocation2 + $0x149] sm:$0x1] %vm318, 0.0
        %351 = vst.msk [vmem:[#allocation2 + $0x161] sm:$0x1] %vm318, 0.0
        %352 = vst.msk [vmem:[#allocation2 + $0x179] sm:$0x1] %vm318, 0.0
        %353 = vst.msk [vmem:[#allocation2 + $0x191] sm:$0x1] %vm318, 0.0
        %354 = vst.msk [vmem:[#allocation2 + $0x1a9] sm:$0x1] %vm318, 0.0
        %s355 = scalar_lea.vmem [#allocation2], 24
        %356 = vst.msk [vmem:[%s355 + $0x1] sm:$0xff] %vm309, %v277
        %357 = vst.msk [vmem:[%s355 + $0x9] sm:$0xff] %vm309, %v278
        %358 = vst.msk [vmem:[%s355 + $0x19] sm:$0xff] %vm309, %v279
        %359 = vst.msk [vmem:[%s355 + $0x21] sm:$0xff] %vm309, %v280
        %360 = vst.msk [vmem:[%s355 + $0x31] sm:$0xff] %vm309, %v281
        %361 = vst.msk [vmem:[%s355 + $0x39] sm:$0xff] %vm309, %v282
        %362 = vst.msk [vmem:[%s355 + $0x49] sm:$0xff] %vm309, %v283
        %363 = vst.msk [vmem:[%s355 + $0x51] sm:$0xff] %vm309, %v284
        %364 = vst.msk [vmem:[%s355 + $0x61] sm:$0xff] %vm309, %v285
        %365 = vst.msk [vmem:[%s355 + $0x69] sm:$0xff] %vm309, %v286
        %366 = vst.msk [vmem:[%s355 + $0x79] sm:$0xff] %vm309, %v287
        %367 = vst.msk [vmem:[%s355 + $0x81] sm:$0xff] %vm309, %v288
        %368 = vst.msk [vmem:[%s355 + $0x91] sm:$0xff] %vm309, %v289
        %369 = vst.msk [vmem:[%s355 + $0x99] sm:$0xff] %vm309, %v290
        %370 = vst.msk [vmem:[%s355 + $0xa9] sm:$0xff] %vm309, %v291
        %371 = vst.msk [vmem:[%s355 + $0xb1] sm:$0xff] %vm309, %v292
        %372 = vst.msk [vmem:[%s355 + $0xc1] sm:$0xff] %vm309, %v293
        %373 = vst.msk [vmem:[%s355 + $0xc9] sm:$0xff] %vm309, %v294
        %374 = vst.msk [vmem:[%s355 + $0xd9] sm:$0xff] %vm309, %v295
        %375 = vst.msk [vmem:[%s355 + $0xe1] sm:$0xff] %vm309, %v296
        %376 = vst.msk [vmem:[%s355 + $0xf1] sm:$0xff] %vm309, %v297
        %377 = vst.msk [vmem:[%s355 + $0xf9] sm:$0xff] %vm309, %v298
        %378 = vst.msk [vmem:[%s355 + $0x109] sm:$0xff] %vm309, %v299
        %379 = vst.msk [vmem:[%s355 + $0x111] sm:$0xff] %vm309, %v300
        %380 = vst.msk [vmem:[%s355 + $0x121] sm:$0xff] %vm309, %v301
        %381 = vst.msk [vmem:[%s355 + $0x129] sm:$0xff] %vm309, %v302
        %382 = vst.msk [vmem:[%s355 + $0x139] sm:$0xff] %vm309, %v303
        %383 = vst.msk [vmem:[%s355 + $0x141] sm:$0xff] %vm309, %v304
        %384 = vst.msk [vmem:[%s355 + $0x151] sm:$0xff] %vm309, %v305
        %385 = vst.msk [vmem:[%s355 + $0x159] sm:$0xff] %vm309, %v306
        %386 = vst.msk [vmem:[%s355 + $0x169] sm:$0xff] %vm309, %v307
        %387 = vst.msk [vmem:[%s355 + $0x171] sm:$0xff] %vm309, %v308
        %v388 = vld [vmem:[#allocation2] sm:$0xff]
        %v389 = vld [vmem:[#allocation2 + $0x8] sm:$0xff]
        %v390 = vld [vmem:[#allocation2 + $0x18] sm:$0xff]
        %v391 = vld [vmem:[#allocation2 + $0x20] sm:$0xff]
        %v392 = vld [vmem:[#allocation2 + $0x30] sm:$0xff]
        %v393 = vld [vmem:[#allocation2 + $0x38] sm:$0xff]
        %v394 = vld [vmem:[#allocation2 + $0x48] sm:$0xff]
        %v395 = vld [vmem:[#allocation2 + $0x50] sm:$0xff]
        %v396 = vld [vmem:[#allocation2 + $0x60] sm:$0xff]
        %v397 = vld [vmem:[#allocation2 + $0x68] sm:$0xff]
        %v398 = vld [vmem:[#allocation2 + $0x78] sm:$0xff]
        %v399 = vld [vmem:[#allocation2 + $0x80] sm:$0xff]
        %v400 = vld [vmem:[#allocation2 + $0x90] sm:$0xff]
        %v401 = vld [vmem:[#allocation2 + $0x98] sm:$0xff]
        %v402 = vld [vmem:[#allocation2 + $0xa8] sm:$0xff]
        %v403 = vld [vmem:[#allocation2 + $0xb0] sm:$0xff]
        %v404 = vld [vmem:[#allocation2 + $0xc0] sm:$0xff]
        %v405 = vld [vmem:[#allocation2 + $0xc8] sm:$0xff]
        %v406 = vld [vmem:[#allocation2 + $0xd8] sm:$0xff]
        %v407 = vld [vmem:[#allocation2 + $0xe0] sm:$0xff]
        %v408 = vld [vmem:[#allocation2 + $0xf0] sm:$0xff]
        %v409 = vld [vmem:[#allocation2 + $0xf8] sm:$0xff]
        %v410 = vld [vmem:[#allocation2 + $0x108] sm:$0xff]
        %v411 = vld [vmem:[#allocation2 + $0x110] sm:$0xff]
        %v412 = vld [vmem:[#allocation2 + $0x120] sm:$0xff]
        %v413 = vld [vmem:[#allocation2 + $0x128] sm:$0xff]
        %v414 = vld [vmem:[#allocation2 + $0x138] sm:$0xff]
        %v415 = vld [vmem:[#allocation2 + $0x140] sm:$0xff]
        %v416 = vld [vmem:[#allocation2 + $0x150] sm:$0xff]
        %v417 = vld [vmem:[#allocation2 + $0x158] sm:$0xff]
        %v418 = vld [vmem:[#allocation2 + $0x168] sm:$0xff]
        %v419 = vld [vmem:[#allocation2 + $0x170] sm:$0xff]
        %v420 = vld [vmem:[#allocation2 + $0x180] sm:$0xff]
        %v421 = vld [vmem:[#allocation2 + $0x188] sm:$0xff]
        %v422 = vld [vmem:[#allocation2 + $0x198] sm:$0xff]
        %v423 = vld [vmem:[#allocation2 + $0x1a0] sm:$0xff]
        %424 = vst.msk [vmem:[#allocation3] sm:$0xff] %vm309, %v388
        %425 = vst.msk [vmem:[#allocation3 + $0x8] sm:$0xff] %vm309, %v389
        %426 = vst.msk [vmem:[#allocation3 + $0x10] sm:$0xff] %vm309, %v390
        %427 = vst.msk [vmem:[#allocation3 + $0x18] sm:$0xff] %vm309, %v391
        %428 = vst.msk [vmem:[#allocation3 + $0x20] sm:$0xff] %vm309, %v392
        %429 = vst.msk [vmem:[#allocation3 + $0x28] sm:$0xff] %vm309, %v393
        %430 = vst.msk [vmem:[#allocation3 + $0x30] sm:$0xff] %vm309, %v394
        %431 = vst.msk [vmem:[#allocation3 + $0x38] sm:$0xff] %vm309, %v395
        %432 = vst.msk [vmem:[#allocation3 + $0x40] sm:$0xff] %vm309, %v396
        %433 = vst.msk [vmem:[#allocation3 + $0x48] sm:$0xff] %vm309, %v397
        %434 = vst.msk [vmem:[#allocation3 + $0x50] sm:$0xff] %vm309, %v398
        %435 = vst.msk [vmem:[#allocation3 + $0x58] sm:$0xff] %vm309, %v399
        %436 = vst.msk [vmem:[#allocation3 + $0x60] sm:$0xff] %vm309, %v400
        %437 = vst.msk [vmem:[#allocation3 + $0x68] sm:$0xff] %vm309, %v401
        %438 = vst.msk [vmem:[#allocation3 + $0x70] sm:$0xff] %vm309, %v402
        %439 = vst.msk [vmem:[#allocation3 + $0x78] sm:$0xff] %vm309, %v403
        %440 = vst.msk [vmem:[#allocation3 + $0x80] sm:$0xff] %vm309, %v404
        %441 = vst.msk [vmem:[#allocation3 + $0x88] sm:$0xff] %vm309, %v405
        %442 = vst.msk [vmem:[#allocation3 + $0x90] sm:$0xff] %vm309, %v406
        %443 = vst.msk [vmem:[#allocation3 + $0x98] sm:$0xff] %vm309, %v407
        %444 = vst.msk [vmem:[#allocation3 + $0xa0] sm:$0xff] %vm309, %v408
        %445 = vst.msk [vmem:[#allocation3 + $0xa8] sm:$0xff] %vm309, %v409
        %446 = vst.msk [vmem:[#allocation3 + $0xb0] sm:$0xff] %vm309, %v410
        %447 = vst.msk [vmem:[#allocation3 + $0xb8] sm:$0xff] %vm309, %v411
        %448 = vst.msk [vmem:[#allocation3 + $0xc0] sm:$0xff] %vm309, %v412
        %449 = vst.msk [vmem:[#allocation3 + $0xc8] sm:$0xff] %vm309, %v413
        %450 = vst.msk [vmem:[#allocation3 + $0xd0] sm:$0xff] %vm309, %v414
        %451 = vst.msk [vmem:[#allocation3 + $0xd8] sm:$0xff] %vm309, %v415
        %452 = vst.msk [vmem:[#allocation3 + $0xe0] sm:$0xff] %vm309, %v416
        %453 = vst.msk [vmem:[#allocation3 + $0xe8] sm:$0xff] %vm309, %v417
        %454 = vst.msk [vmem:[#allocation3 + $0xf0] sm:$0xff] %vm309, %v418
        %455 = vst.msk [vmem:[#allocation3 + $0xf8] sm:$0xff] %vm309, %v419
        %488 = vrot.lane.b32.xlu0 %v390, 9
        %v489 = vpop.permute.xlu0 %488
        %490 = vrot.lane.b32.xlu0 %v391, 9
        %v491 = vpop.permute.xlu0 %490
        %492 = vrot.lane.b32.xlu0 %v392, 9
        %v493 = vpop.permute.xlu0 %492
        %494 = vrot.lane.b32.xlu0 %v393, 9
        %v495 = vpop.permute.xlu0 %494
        %496 = vrot.lane.b32.xlu0 %v394, 9
        %v497 = vpop.permute.xlu0 %496
        %498 = vrot.lane.b32.xlu0 %v395, 9
        %v499 = vpop.permute.xlu0 %498
        %500 = vrot.lane.b32.xlu0 %v396, 9
        %v501 = vpop.permute.xlu0 %500
        %502 = vrot.lane.b32.xlu0 %v397, 9
        %v503 = vpop.permute.xlu0 %502
        %504 = vrot.lane.b32.xlu0 %v398, 9
        %v505 = vpop.permute.xlu0 %504
        %506 = vrot.lane.b32.xlu0 %v399, 9
        %v507 = vpop.permute.xlu0 %506
        %508 = vrot.lane.b32.xlu0 %v400, 9
        %v509 = vpop.permute.xlu0 %508
        %510 = vrot.lane.b32.xlu0 %v401, 9
        %v511 = vpop.permute.xlu0 %510
        %512 = vrot.lane.b32.xlu0 %v402, 9
        %v513 = vpop.permute.xlu0 %512
        %514 = vrot.lane.b32.xlu0 %v403, 9
        %v515 = vpop.permute.xlu0 %514
        %516 = vrot.lane.b32.xlu0 %v404, 9
        %v517 = vpop.permute.xlu0 %516
        %518 = vrot.lane.b32.xlu0 %v405, 9
        %v519 = vpop.permute.xlu0 %518
        %520 = vrot.lane.b32.xlu0 %v406, 9
        %v521 = vpop.permute.xlu0 %520
        %522 = vrot.lane.b32.xlu0 %v407, 9
        %v523 = vpop.permute.xlu0 %522
        %524 = vrot.lane.b32.xlu0 %v408, 9
        %v525 = vpop.permute.xlu0 %524
        %526 = vrot.lane.b32.xlu0 %v409, 9
        %v527 = vpop.permute.xlu0 %526
        %528 = vrot.lane.b32.xlu0 %v410, 9
        %v529 = vpop.permute.xlu0 %528
        %530 = vrot.lane.b32.xlu0 %v411, 9
        %v531 = vpop.permute.xlu0 %530
        %532 = vrot.lane.b32.xlu0 %v412, 9
        %v533 = vpop.permute.xlu0 %532
        %534 = vrot.lane.b32.xlu0 %v413, 9
        %v535 = vpop.permute.xlu0 %534
        %536 = vrot.lane.b32.xlu0 %v414, 9
        %v537 = vpop.permute.xlu0 %536
        %538 = vrot.lane.b32.xlu0 %v415, 9
        %v539 = vpop.permute.xlu0 %538
        %540 = vrot.lane.b32.xlu0 %v416, 9
        %v541 = vpop.permute.xlu0 %540
        %542 = vrot.lane.b32.xlu0 %v417, 9
        %v543 = vpop.permute.xlu0 %542
        %544 = vrot.lane.b32.xlu0 %v418, 9
        %v545 = vpop.permute.xlu0 %544
        %546 = vrot.lane.b32.xlu0 %v419, 9
        %v547 = vpop.permute.xlu0 %546
        %548 = vrot.lane.b32.xlu0 %v420, 9
        %v549 = vpop.permute.xlu0 %548
        %550 = vrot.lane.b32.xlu0 %v421, 9
        %v551 = vpop.permute.xlu0 %550
        %vm584 = vcmask 97352
        %585 = vst.msk [vmem:[#allocation3] sm:$0xff] %vm584, %v489
        %586 = vst.msk [vmem:[#allocation3 + $0x8] sm:$0xff] %vm584, %v491
        %587 = vst.msk [vmem:[#allocation3 + $0x10] sm:$0xff] %vm584, %v493
        %588 = vst.msk [vmem:[#allocation3 + $0x18] sm:$0xff] %vm584, %v495
        %589 = vst.msk [vmem:[#allocation3 + $0x20] sm:$0xff] %vm584, %v497
        %590 = vst.msk [vmem:[#allocation3 + $0x28] sm:$0xff] %vm584, %v499
        %591 = vst.msk [vmem:[#allocation3 + $0x30] sm:$0xff] %vm584, %v501
        %592 = vst.msk [vmem:[#allocation3 + $0x38] sm:$0xff] %vm584, %v503
        %593 = vst.msk [vmem:[#allocation3 + $0x40] sm:$0xff] %vm584, %v505
        %594 = vst.msk [vmem:[#allocation3 + $0x48] sm:$0xff] %vm584, %v507
        %595 = vst.msk [vmem:[#allocation3 + $0x50] sm:$0xff] %vm584, %v509
        %596 = vst.msk [vmem:[#allocation3 + $0x58] sm:$0xff] %vm584, %v511
        %597 = vst.msk [vmem:[#allocation3 + $0x60] sm:$0xff] %vm584, %v513
        %598 = vst.msk [vmem:[#allocation3 + $0x68] sm:$0xff] %vm584, %v515
        %599 = vst.msk [vmem:[#allocation3 + $0x70] sm:$0xff] %vm584, %v517
        %600 = vst.msk [vmem:[#allocation3 + $0x78] sm:$0xff] %vm584, %v519
        %601 = vst.msk [vmem:[#allocation3 + $0x80] sm:$0xff] %vm584, %v521
        %602 = vst.msk [vmem:[#allocation3 + $0x88] sm:$0xff] %vm584, %v523
        %603 = vst.msk [vmem:[#allocation3 + $0x90] sm:$0xff] %vm584, %v525
        %604 = vst.msk [vmem:[#allocation3 + $0x98] sm:$0xff] %vm584, %v527
        %605 = vst.msk [vmem:[#allocation3 + $0xa0] sm:$0xff] %vm584, %v529
        %606 = vst.msk [vmem:[#allocation3 + $0xa8] sm:$0xff] %vm584, %v531
        %607 = vst.msk [vmem:[#allocation3 + $0xb0] sm:$0xff] %vm584, %v533
        %608 = vst.msk [vmem:[#allocation3 + $0xb8] sm:$0xff] %vm584, %v535
        %609 = vst.msk [vmem:[#allocation3 + $0xc0] sm:$0xff] %vm584, %v537
        %610 = vst.msk [vmem:[#allocation3 + $0xc8] sm:$0xff] %vm584, %v539
        %611 = vst.msk [vmem:[#allocation3 + $0xd0] sm:$0xff] %vm584, %v541
        %612 = vst.msk [vmem:[#allocation3 + $0xd8] sm:$0xff] %vm584, %v543
        %613 = vst.msk [vmem:[#allocation3 + $0xe0] sm:$0xff] %vm584, %v545
        %614 = vst.msk [vmem:[#allocation3 + $0xe8] sm:$0xff] %vm584, %v547
        %615 = vst.msk [vmem:[#allocation3 + $0xf0] sm:$0xff] %vm584, %v549
        %616 = vst.msk [vmem:[#allocation3 + $0xf8] sm:$0xff] %vm584, %v551
        %619 = vrot.lane.b32.xlu0 %v392, 18
        %v620 = vpop.permute.xlu0 %619
        %621 = vrot.lane.b32.xlu0 %v393, 18
        %v622 = vpop.permute.xlu0 %621
        %623 = vrot.lane.b32.xlu0 %v394, 18
        %v624 = vpop.permute.xlu0 %623
        %625 = vrot.lane.b32.xlu0 %v395, 18
        %v626 = vpop.permute.xlu0 %625
        %627 = vrot.lane.b32.xlu0 %v396, 18
        %v628 = vpop.permute.xlu0 %627
        %629 = vrot.lane.b32.xlu0 %v397, 18
        %v630 = vpop.permute.xlu0 %629
        %631 = vrot.lane.b32.xlu0 %v398, 18
        %v632 = vpop.permute.xlu0 %631
        %633 = vrot.lane.b32.xlu0 %v399, 18
        %v634 = vpop.permute.xlu0 %633
        %635 = vrot.lane.b32.xlu0 %v400, 18
        %v636 = vpop.permute.xlu0 %635
        %637 = vrot.lane.b32.xlu0 %v401, 18
        %v638 = vpop.permute.xlu0 %637
        %639 = vrot.lane.b32.xlu0 %v402, 18
        %v640 = vpop.permute.xlu0 %639
        %641 = vrot.lane.b32.xlu0 %v403, 18
        %v642 = vpop.permute.xlu0 %641
        %643 = vrot.lane.b32.xlu0 %v404, 18
        %v644 = vpop.permute.xlu0 %643
        %645 = vrot.lane.b32.xlu0 %v405, 18
        %v646 = vpop.permute.xlu0 %645
        %647 = vrot.lane.b32.xlu0 %v406, 18
        %v648 = vpop.permute.xlu0 %647
        %649 = vrot.lane.b32.xlu0 %v407, 18
        %v650 = vpop.permute.xlu0 %649
        %651 = vrot.lane.b32.xlu0 %v408, 18
        %v652 = vpop.permute.xlu0 %651
        %653 = vrot.lane.b32.xlu0 %v409, 18
        %v654 = vpop.permute.xlu0 %653
        %655 = vrot.lane.b32.xlu0 %v410, 18
        %v656 = vpop.permute.xlu0 %655
        %657 = vrot.lane.b32.xlu0 %v411, 18
        %v658 = vpop.permute.xlu0 %657
        %659 = vrot.lane.b32.xlu0 %v412, 18
        %v660 = vpop.permute.xlu0 %659
        %661 = vrot.lane.b32.xlu0 %v413, 18
        %v662 = vpop.permute.xlu0 %661
        %663 = vrot.lane.b32.xlu0 %v414, 18
        %v664 = vpop.permute.xlu0 %663
        %665 = vrot.lane.b32.xlu0 %v415, 18
        %v666 = vpop.permute.xlu0 %665
        %667 = vrot.lane.b32.xlu0 %v416, 18
        %v668 = vpop.permute.xlu0 %667
        %669 = vrot.lane.b32.xlu0 %v417, 18
        %v670 = vpop.permute.xlu0 %669
        %671 = vrot.lane.b32.xlu0 %v418, 18
        %v672 = vpop.permute.xlu0 %671
        %673 = vrot.lane.b32.xlu0 %v419, 18
        %v674 = vpop.permute.xlu0 %673
        %675 = vrot.lane.b32.xlu0 %v420, 18
        %v676 = vpop.permute.xlu0 %675
        %677 = vrot.lane.b32.xlu0 %v421, 18
        %v678 = vpop.permute.xlu0 %677
        %679 = vrot.lane.b32.xlu0 %v422, 18
        %v680 = vpop.permute.xlu0 %679
        %681 = vrot.lane.b32.xlu0 %v423, 18
        %v682 = vpop.permute.xlu0 %681
        %vm715 = vcmask 171152
        %716 = vst.msk [vmem:[#allocation3] sm:$0xff] %vm715, %v620
        %717 = vst.msk [vmem:[#allocation3 + $0x8] sm:$0xff] %vm715, %v622
        %718 = vst.msk [vmem:[#allocation3 + $0x10] sm:$0xff] %vm715, %v624
        %719 = vst.msk [vmem:[#allocation3 + $0x18] sm:$0xff] %vm715, %v626
        %720 = vst.msk [vmem:[#allocation3 + $0x20] sm:$0xff] %vm715, %v628
        %721 = vst.msk [vmem:[#allocation3 + $0x28] sm:$0xff] %vm715, %v630
        %722 = vst.msk [vmem:[#allocation3 + $0x30] sm:$0xff] %vm715, %v632
        %723 = vst.msk [vmem:[#allocation3 + $0x38] sm:$0xff] %vm715, %v634
        %724 = vst.msk [vmem:[#allocation3 + $0x40] sm:$0xff] %vm715, %v636
        %725 = vst.msk [vmem:[#allocation3 + $0x48] sm:$0xff] %vm715, %v638
        %726 = vst.msk [vmem:[#allocation3 + $0x50] sm:$0xff] %vm715, %v640
        %727 = vst.msk [vmem:[#allocation3 + $0x58] sm:$0xff] %vm715, %v642
        %728 = vst.msk [vmem:[#allocation3 + $0x60] sm:$0xff] %vm715, %v644
        %729 = vst.msk [vmem:[#allocation3 + $0x68] sm:$0xff] %vm715, %v646
        %730 = vst.msk [vmem:[#allocation3 + $0x70] sm:$0xff] %vm715, %v648
        %731 = vst.msk [vmem:[#allocation3 + $0x78] sm:$0xff] %vm715, %v650
        %732 = vst.msk [vmem:[#allocation3 + $0x80] sm:$0xff] %vm715, %v652
        %733 = vst.msk [vmem:[#allocation3 + $0x88] sm:$0xff] %vm715, %v654
        %734 = vst.msk [vmem:[#allocation3 + $0x90] sm:$0xff] %vm715, %v656
        %735 = vst.msk [vmem:[#allocation3 + $0x98] sm:$0xff] %vm715, %v658
        %736 = vst.msk [vmem:[#allocation3 + $0xa0] sm:$0xff] %vm715, %v660
        %737 = vst.msk [vmem:[#allocation3 + $0xa8] sm:$0xff] %vm715, %v662
        %738 = vst.msk [vmem:[#allocation3 + $0xb0] sm:$0xff] %vm715, %v664
        %739 = vst.msk [vmem:[#allocation3 + $0xb8] sm:$0xff] %vm715, %v666
        %740 = vst.msk [vmem:[#allocation3 + $0xc0] sm:$0xff] %vm715, %v668
        %741 = vst.msk [vmem:[#allocation3 + $0xc8] sm:$0xff] %vm715, %v670
        %742 = vst.msk [vmem:[#allocation3 + $0xd0] sm:$0xff] %vm715, %v672
        %743 = vst.msk [vmem:[#allocation3 + $0xd8] sm:$0xff] %vm715, %v674
        %744 = vst.msk [vmem:[#allocation3 + $0xe0] sm:$0xff] %vm715, %v676
        %745 = vst.msk [vmem:[#allocation3 + $0xe8] sm:$0xff] %vm715, %v678
        %746 = vst.msk [vmem:[#allocation3 + $0xf0] sm:$0xff] %vm715, %v680
        %747 = vst.msk [vmem:[#allocation3 + $0xf8] sm:$0xff] %vm715, %v682
        %v748 = vld [vmem:[#allocation2 + $0x1] sm:$0xff]
        %v749 = vld [vmem:[#allocation2 + $0x9] sm:$0xff]
        %v750 = vld [vmem:[#allocation2 + $0x19] sm:$0xff]
        %v751 = vld [vmem:[#allocation2 + $0x21] sm:$0xff]
        %v752 = vld [vmem:[#allocation2 + $0x31] sm:$0xff]
        %v753 = vld [vmem:[#allocation2 + $0x39] sm:$0xff]
        %v754 = vld [vmem:[#allocation2 + $0x49] sm:$0xff]
        %v755 = vld [vmem:[#allocation2 + $0x51] sm:$0xff]
        %v756 = vld [vmem:[#allocation2 + $0x61] sm:$0xff]
        %v757 = vld [vmem:[#allocation2 + $0x69] sm:$0xff]
        %v758 = vld [vmem:[#allocation2 + $0x79] sm:$0xff]
        %v759 = vld [vmem:[#allocation2 + $0x81] sm:$0xff]
        %v760 = vld [vmem:[#allocation2 + $0x91] sm:$0xff]
        %v761 = vld [vmem:[#allocation2 + $0x99] sm:$0xff]
        %v762 = vld [vmem:[#allocation2 + $0xa9] sm:$0xff]
        %v763 = vld [vmem:[#allocation2 + $0xb1] sm:$0xff]
        %v764 = vld [vmem:[#allocation2 + $0xc1] sm:$0xff]
        %v765 = vld [vmem:[#allocation2 + $0xc9] sm:$0xff]
        %v766 = vld [vmem:[#allocation2 + $0xd9] sm:$0xff]
        %v767 = vld [vmem:[#allocation2 + $0xe1] sm:$0xff]
        %v768 = vld [vmem:[#allocation2 + $0xf1] sm:$0xff]
        %v769 = vld [vmem:[#allocation2 + $0xf9] sm:$0xff]
        %v770 = vld [vmem:[#allocation2 + $0x109] sm:$0xff]
        %v771 = vld [vmem:[#allocation2 + $0x111] sm:$0xff]
        %v772 = vld [vmem:[#allocation2 + $0x121] sm:$0xff]
        %v773 = vld [vmem:[#allocation2 + $0x129] sm:$0xff]
        %v774 = vld [vmem:[#allocation2 + $0x139] sm:$0xff]
        %v775 = vld [vmem:[#allocation2 + $0x141] sm:$0xff]
        %v776 = vld [vmem:[#allocation2 + $0x151] sm:$0xff]
        %v777 = vld [vmem:[#allocation2 + $0x159] sm:$0xff]
        %v778 = vld [vmem:[#allocation2 + $0x169] sm:$0xff]
        %v779 = vld [vmem:[#allocation2 + $0x171] sm:$0xff]
        %v780 = vld [vmem:[#allocation2 + $0x181] sm:$0xff]
        %v781 = vld [vmem:[#allocation2 + $0x189] sm:$0xff]
        %v782 = vld [vmem:[#allocation2 + $0x199] sm:$0xff]
        %v783 = vld [vmem:[#allocation2 + $0x1a1] sm:$0xff]
        %816 = vrot.lane.b32.xlu0 %v748, 3
        %v817 = vpop.permute.xlu0 %816
        %818 = vrot.lane.b32.xlu0 %v749, 3
        %v819 = vpop.permute.xlu0 %818
        %820 = vrot.lane.b32.xlu0 %v750, 3
        %v821 = vpop.permute.xlu0 %820
        %822 = vrot.lane.b32.xlu0 %v751, 3
        %v823 = vpop.permute.xlu0 %822
        %824 = vrot.lane.b32.xlu0 %v752, 3
        %v825 = vpop.permute.xlu0 %824
        %826 = vrot.lane.b32.xlu0 %v753, 3
        %v827 = vpop.permute.xlu0 %826
        %828 = vrot.lane.b32.xlu0 %v754, 3
        %v829 = vpop.permute.xlu0 %828
        %830 = vrot.lane.b32.xlu0 %v755, 3
        %v831 = vpop.permute.xlu0 %830
        %832 = vrot.lane.b32.xlu0 %v756, 3
        %v833 = vpop.permute.xlu0 %832
        %834 = vrot.lane.b32.xlu0 %v757, 3
        %v835 = vpop.permute.xlu0 %834
        %836 = vrot.lane.b32.xlu0 %v758, 3
        %v837 = vpop.permute.xlu0 %836
        %838 = vrot.lane.b32.xlu0 %v759, 3
        %v839 = vpop.permute.xlu0 %838
        %840 = vrot.lane.b32.xlu0 %v760, 3
        %v841 = vpop.permute.xlu0 %840
        %842 = vrot.lane.b32.xlu0 %v761, 3
        %v843 = vpop.permute.xlu0 %842
        %844 = vrot.lane.b32.xlu0 %v762, 3
        %v845 = vpop.permute.xlu0 %844
        %846 = vrot.lane.b32.xlu0 %v763, 3
        %v847 = vpop.permute.xlu0 %846
        %848 = vrot.lane.b32.xlu0 %v764, 3
        %v849 = vpop.permute.xlu0 %848
        %850 = vrot.lane.b32.xlu0 %v765, 3
        %v851 = vpop.permute.xlu0 %850
        %852 = vrot.lane.b32.xlu0 %v766, 3
        %v853 = vpop.permute.xlu0 %852
        %854 = vrot.lane.b32.xlu0 %v767, 3
        %v855 = vpop.permute.xlu0 %854
        %856 = vrot.lane.b32.xlu0 %v768, 3
        %v857 = vpop.permute.xlu0 %856
        %858 = vrot.lane.b32.xlu0 %v769, 3
        %v859 = vpop.permute.xlu0 %858
        %860 = vrot.lane.b32.xlu0 %v770, 3
        %v861 = vpop.permute.xlu0 %860
        %862 = vrot.lane.b32.xlu0 %v771, 3
        %v863 = vpop.permute.xlu0 %862
        %864 = vrot.lane.b32.xlu0 %v772, 3
        %v865 = vpop.permute.xlu0 %864
        %866 = vrot.lane.b32.xlu0 %v773, 3
        %v867 = vpop.permute.xlu0 %866
        %868 = vrot.lane.b32.xlu0 %v774, 3
        %v869 = vpop.permute.xlu0 %868
        %870 = vrot.lane.b32.xlu0 %v775, 3
        %v871 = vpop.permute.xlu0 %870
        %872 = vrot.lane.b32.xlu0 %v776, 3
        %v873 = vpop.permute.xlu0 %872
        %874 = vrot.lane.b32.xlu0 %v777, 3
        %v875 = vpop.permute.xlu0 %874
        %876 = vrot.lane.b32.xlu0 %v778, 3
        %v877 = vpop.permute.xlu0 %876
        %878 = vrot.lane.b32.xlu0 %v779, 3
        %v879 = vpop.permute.xlu0 %878
        %vm912 = vcmask 48152
        %913 = vst.msk [vmem:[#allocation3] sm:$0xff] %vm912, %v817
        %914 = vst.msk [vmem:[#allocation3 + $0x8] sm:$0xff] %vm912, %v819
        %915 = vst.msk [vmem:[#allocation3 + $0x10] sm:$0xff] %vm912, %v821
        %916 = vst.msk [vmem:[#allocation3 + $0x18] sm:$0xff] %vm912, %v823
        %917 = vst.msk [vmem:[#allocation3 + $0x20] sm:$0xff] %vm912, %v825
        %918 = vst.msk [vmem:[#allocation3 + $0x28] sm:$0xff] %vm912, %v827
        %919 = vst.msk [vmem:[#allocation3 + $0x30] sm:$0xff] %vm912, %v829
        %920 = vst.msk [vmem:[#allocation3 + $0x38] sm:$0xff] %vm912, %v831
        %921 = vst.msk [vmem:[#allocation3 + $0x40] sm:$0xff] %vm912, %v833
        %922 = vst.msk [vmem:[#allocation3 + $0x48] sm:$0xff] %vm912, %v835
        %923 = vst.msk [vmem:[#allocation3 + $0x50] sm:$0xff] %vm912, %v837
        %924 = vst.msk [vmem:[#allocation3 + $0x58] sm:$0xff] %vm912, %v839
        %925 = vst.msk [vmem:[#allocation3 + $0x60] sm:$0xff] %vm912, %v841
        %926 = vst.msk [vmem:[#allocation3 + $0x68] sm:$0xff] %vm912, %v843
        %927 = vst.msk [vmem:[#allocation3 + $0x70] sm:$0xff] %vm912, %v845
        %928 = vst.msk [vmem:[#allocation3 + $0x78] sm:$0xff] %vm912, %v847
        %929 = vst.msk [vmem:[#allocation3 + $0x80] sm:$0xff] %vm912, %v849
        %930 = vst.msk [vmem:[#allocation3 + $0x88] sm:$0xff] %vm912, %v851
        %931 = vst.msk [vmem:[#allocation3 + $0x90] sm:$0xff] %vm912, %v853
        %932 = vst.msk [vmem:[#allocation3 + $0x98] sm:$0xff] %vm912, %v855
        %933 = vst.msk [vmem:[#allocation3 + $0xa0] sm:$0xff] %vm912, %v857
        %934 = vst.msk [vmem:[#allocation3 + $0xa8] sm:$0xff] %vm912, %v859
        %935 = vst.msk [vmem:[#allocation3 + $0xb0] sm:$0xff] %vm912, %v861
        %936 = vst.msk [vmem:[#allocation3 + $0xb8] sm:$0xff] %vm912, %v863
        %937 = vst.msk [vmem:[#allocation3 + $0xc0] sm:$0xff] %vm912, %v865
        %938 = vst.msk [vmem:[#allocation3 + $0xc8] sm:$0xff] %vm912, %v867
        %939 = vst.msk [vmem:[#allocation3 + $0xd0] sm:$0xff] %vm912, %v869
        %940 = vst.msk [vmem:[#allocation3 + $0xd8] sm:$0xff] %vm912, %v871
        %941 = vst.msk [vmem:[#allocation3 + $0xe0] sm:$0xff] %vm912, %v873
        %942 = vst.msk [vmem:[#allocation3 + $0xe8] sm:$0xff] %vm912, %v875
        %943 = vst.msk [vmem:[#allocation3 + $0xf0] sm:$0xff] %vm912, %v877
        %944 = vst.msk [vmem:[#allocation3 + $0xf8] sm:$0xff] %vm912, %v879
        %947 = vrot.lane.b32.xlu0 %v750, 12
        %v948 = vpop.permute.xlu0 %947
        %949 = vrot.lane.b32.xlu0 %v751, 12
        %v950 = vpop.permute.xlu0 %949
        %951 = vrot.lane.b32.xlu0 %v752, 12
        %v952 = vpop.permute.xlu0 %951
        %953 = vrot.lane.b32.xlu0 %v753, 12
        %v954 = vpop.permute.xlu0 %953
        %955 = vrot.lane.b32.xlu0 %v754, 12
        %v956 = vpop.permute.xlu0 %955
        %957 = vrot.lane.b32.xlu0 %v755, 12
        %v958 = vpop.permute.xlu0 %957
        %959 = vrot.lane.b32.xlu0 %v756, 12
        %v960 = vpop.permute.xlu0 %959
        %961 = vrot.lane.b32.xlu0 %v757, 12
        %v962 = vpop.permute.xlu0 %961
        %963 = vrot.lane.b32.xlu0 %v758, 12
        %v964 = vpop.permute.xlu0 %963
        %965 = vrot.lane.b32.xlu0 %v759, 12
        %v966 = vpop.permute.xlu0 %965
        %967 = vrot.lane.b32.xlu0 %v760, 12
        %v968 = vpop.permute.xlu0 %967
        %969 = vrot.lane.b32.xlu0 %v761, 12
        %v970 = vpop.permute.xlu0 %969
        %971 = vrot.lane.b32.xlu0 %v762, 12
        %v972 = vpop.permute.xlu0 %971
        %973 = vrot.lane.b32.xlu0 %v763, 12
        %v974 = vpop.permute.xlu0 %973
        %975 = vrot.lane.b32.xlu0 %v764, 12
        %v976 = vpop.permute.xlu0 %975
        %977 = vrot.lane.b32.xlu0 %v765, 12
        %v978 = vpop.permute.xlu0 %977
        %979 = vrot.lane.b32.xlu0 %v766, 12
        %v980 = vpop.permute.xlu0 %979
        %981 = vrot.lane.b32.xlu0 %v767, 12
        %v982 = vpop.permute.xlu0 %981
        %983 = vrot.lane.b32.xlu0 %v768, 12
        %v984 = vpop.permute.xlu0 %983
        %985 = vrot.lane.b32.xlu0 %v769, 12
        %v986 = vpop.permute.xlu0 %985
        %987 = vrot.lane.b32.xlu0 %v770, 12
        %v988 = vpop.permute.xlu0 %987
        %989 = vrot.lane.b32.xlu0 %v771, 12
        %v990 = vpop.permute.xlu0 %989
        %991 = vrot.lane.b32.xlu0 %v772, 12
        %v992 = vpop.permute.xlu0 %991
        %993 = vrot.lane.b32.xlu0 %v773, 12
        %v994 = vpop.permute.xlu0 %993
        %995 = vrot.lane.b32.xlu0 %v774, 12
        %v996 = vpop.permute.xlu0 %995
        %997 = vrot.lane.b32.xlu0 %v775, 12
        %v998 = vpop.permute.xlu0 %997
        %999 = vrot.lane.b32.xlu0 %v776, 12
        %v1000 = vpop.permute.xlu0 %999
        %1001 = vrot.lane.b32.xlu0 %v777, 12
        %v1002 = vpop.permute.xlu0 %1001
        %1003 = vrot.lane.b32.xlu0 %v778, 12
        %v1004 = vpop.permute.xlu0 %1003
        %1005 = vrot.lane.b32.xlu0 %v779, 12
        %v1006 = vpop.permute.xlu0 %1005
        %1007 = vrot.lane.b32.xlu0 %v780, 12
        %v1008 = vpop.permute.xlu0 %1007
        %1009 = vrot.lane.b32.xlu0 %v781, 12
        %v1010 = vpop.permute.xlu0 %1009
        %vm1043 = vcmask 121952
        %1044 = vst.msk [vmem:[#allocation3] sm:$0xff] %vm1043, %v948
        %1045 = vst.msk [vmem:[#allocation3 + $0x8] sm:$0xff] %vm1043, %v950
        %1046 = vst.msk [vmem:[#allocation3 + $0x10] sm:$0xff] %vm1043, %v952
        %1047 = vst.msk [vmem:[#allocation3 + $0x18] sm:$0xff] %vm1043, %v954
        %1048 = vst.msk [vmem:[#allocation3 + $0x20] sm:$0xff] %vm1043, %v956
        %1049 = vst.msk [vmem:[#allocation3 + $0x28] sm:$0xff] %vm1043, %v958
        %1050 = vst.msk [vmem:[#allocation3 + $0x30] sm:$0xff] %vm1043, %v960
        %1051 = vst.msk [vmem:[#allocation3 + $0x38] sm:$0xff] %vm1043, %v962
        %1052 = vst.msk [vmem:[#allocation3 + $0x40] sm:$0xff] %vm1043, %v964
        %1053 = vst.msk [vmem:[#allocation3 + $0x48] sm:$0xff] %vm1043, %v966
        %1054 = vst.msk [vmem:[#allocation3 + $0x50] sm:$0xff] %vm1043, %v968
        %1055 = vst.msk [vmem:[#allocation3 + $0x58] sm:$0xff] %vm1043, %v970
        %1056 = vst.msk [vmem:[#allocation3 + $0x60] sm:$0xff] %vm1043, %v972
        %1057 = vst.msk [vmem:[#allocation3 + $0x68] sm:$0xff] %vm1043, %v974
        %1058 = vst.msk [vmem:[#allocation3 + $0x70] sm:$0xff] %vm1043, %v976
        %1059 = vst.msk [vmem:[#allocation3 + $0x78] sm:$0xff] %vm1043, %v978
        %1060 = vst.msk [vmem:[#allocation3 + $0x80] sm:$0xff] %vm1043, %v980
        %1061 = vst.msk [vmem:[#allocation3 + $0x88] sm:$0xff] %vm1043, %v982
        %1062 = vst.msk [vmem:[#allocation3 + $0x90] sm:$0xff] %vm1043, %v984
        %1063 = vst.msk [vmem:[#allocation3 + $0x98] sm:$0xff] %vm1043, %v986
        %1064 = vst.msk [vmem:[#allocation3 + $0xa0] sm:$0xff] %vm1043, %v988
        %1065 = vst.msk [vmem:[#allocation3 + $0xa8] sm:$0xff] %vm1043, %v990
        %1066 = vst.msk [vmem:[#allocation3 + $0xb0] sm:$0xff] %vm1043, %v992
        %1067 = vst.msk [vmem:[#allocation3 + $0xb8] sm:$0xff] %vm1043, %v994
        %1068 = vst.msk [vmem:[#allocation3 + $0xc0] sm:$0xff] %vm1043, %v996
        %1069 = vst.msk [vmem:[#allocation3 + $0xc8] sm:$0xff] %vm1043, %v998
        %1070 = vst.msk [vmem:[#allocation3 + $0xd0] sm:$0xff] %vm1043, %v1000
        %1071 = vst.msk [vmem:[#allocation3 + $0xd8] sm:$0xff] %vm1043, %v1002
        %1072 = vst.msk [vmem:[#allocation3 + $0xe0] sm:$0xff] %vm1043, %v1004
        %1073 = vst.msk [vmem:[#allocation3 + $0xe8] sm:$0xff] %vm1043, %v1006
        %1074 = vst.msk [vmem:[#allocation3 + $0xf0] sm:$0xff] %vm1043, %v1008
        %1075 = vst.msk [vmem:[#allocation3 + $0xf8] sm:$0xff] %vm1043, %v1010
        %1078 = vrot.lane.b32.xlu0 %v752, 21
        %v1079 = vpop.permute.xlu0 %1078
        %1080 = vrot.lane.b32.xlu0 %v753, 21
        %v1081 = vpop.permute.xlu0 %1080
        %1082 = vrot.lane.b32.xlu0 %v754, 21
        %v1083 = vpop.permute.xlu0 %1082
        %1084 = vrot.lane.b32.xlu0 %v755, 21
        %v1085 = vpop.permute.xlu0 %1084
        %1086 = vrot.lane.b32.xlu0 %v756, 21
        %v1087 = vpop.permute.xlu0 %1086
        %1088 = vrot.lane.b32.xlu0 %v757, 21
        %v1089 = vpop.permute.xlu0 %1088
        %1090 = vrot.lane.b32.xlu0 %v758, 21
        %v1091 = vpop.permute.xlu0 %1090
        %1092 = vrot.lane.b32.xlu0 %v759, 21
        %v1093 = vpop.permute.xlu0 %1092
        %1094 = vrot.lane.b32.xlu0 %v760, 21
        %v1095 = vpop.permute.xlu0 %1094
        %1096 = vrot.lane.b32.xlu0 %v761, 21
        %v1097 = vpop.permute.xlu0 %1096
        %1098 = vrot.lane.b32.xlu0 %v762, 21
        %v1099 = vpop.permute.xlu0 %1098
        %1100 = vrot.lane.b32.xlu0 %v763, 21
        %v1101 = vpop.permute.xlu0 %1100
        %1102 = vrot.lane.b32.xlu0 %v764, 21
        %v1103 = vpop.permute.xlu0 %1102
        %1104 = vrot.lane.b32.xlu0 %v765, 21
        %v1105 = vpop.permute.xlu0 %1104
        %1106 = vrot.lane.b32.xlu0 %v766, 21
        %v1107 = vpop.permute.xlu0 %1106
        %1108 = vrot.lane.b32.xlu0 %v767, 21
        %v1109 = vpop.permute.xlu0 %1108
        %1110 = vrot.lane.b32.xlu0 %v768, 21
        %v1111 = vpop.permute.xlu0 %1110
        %1112 = vrot.lane.b32.xlu0 %v769, 21
        %v1113 = vpop.permute.xlu0 %1112
        %1114 = vrot.lane.b32.xlu0 %v770, 21
        %v1115 = vpop.permute.xlu0 %1114
        %1116 = vrot.lane.b32.xlu0 %v771, 21
        %v1117 = vpop.permute.xlu0 %1116
        %1118 = vrot.lane.b32.xlu0 %v772, 21
        %v1119 = vpop.permute.xlu0 %1118
        %1120 = vrot.lane.b32.xlu0 %v773, 21
        %v1121 = vpop.permute.xlu0 %1120
        %1122 = vrot.lane.b32.xlu0 %v774, 21
        %v1123 = vpop.permute.xlu0 %1122
        %1124 = vrot.lane.b32.xlu0 %v775, 21
        %v1125 = vpop.permute.xlu0 %1124
        %1126 = vrot.lane.b32.xlu0 %v776, 21
        %v1127 = vpop.permute.xlu0 %1126
        %1128 = vrot.lane.b32.xlu0 %v777, 21
        %v1129 = vpop.permute.xlu0 %1128
        %1130 = vrot.lane.b32.xlu0 %v778, 21
        %v1131 = vpop.permute.xlu0 %1130
        %1132 = vrot.lane.b32.xlu0 %v779, 21
        %v1133 = vpop.permute.xlu0 %1132
        %1134 = vrot.lane.b32.xlu0 %v780, 21
        %v1135 = vpop.permute.xlu0 %1134
        %1136 = vrot.lane.b32.xlu0 %v781, 21
        %v1137 = vpop.permute.xlu0 %1136
        %1138 = vrot.lane.b32.xlu0 %v782, 21
        %v1139 = vpop.permute.xlu0 %1138
        %1140 = vrot.lane.b32.xlu0 %v783, 21
        %v1141 = vpop.permute.xlu0 %1140
        %vm1174 = vcmask 195752
        %1175 = vst.msk [vmem:[#allocation3] sm:$0xff] %vm1174, %v1079
        %1176 = vst.msk [vmem:[#allocation3 + $0x8] sm:$0xff] %vm1174, %v1081
        %1177 = vst.msk [vmem:[#allocation3 + $0x10] sm:$0xff] %vm1174, %v1083
        %1178 = vst.msk [vmem:[#allocation3 + $0x18] sm:$0xff] %vm1174, %v1085
        %1179 = vst.msk [vmem:[#allocation3 + $0x20] sm:$0xff] %vm1174, %v1087
        %1180 = vst.msk [vmem:[#allocation3 + $0x28] sm:$0xff] %vm1174, %v1089
        %1181 = vst.msk [vmem:[#allocation3 + $0x30] sm:$0xff] %vm1174, %v1091
        %1182 = vst.msk [vmem:[#allocation3 + $0x38] sm:$0xff] %vm1174, %v1093
        %1183 = vst.msk [vmem:[#allocation3 + $0x40] sm:$0xff] %vm1174, %v1095
        %1184 = vst.msk [vmem:[#allocation3 + $0x48] sm:$0xff] %vm1174, %v1097
        %1185 = vst.msk [vmem:[#allocation3 + $0x50] sm:$0xff] %vm1174, %v1099
        %1186 = vst.msk [vmem:[#allocation3 + $0x58] sm:$0xff] %vm1174, %v1101
        %1187 = vst.msk [vmem:[#allocation3 + $0x60] sm:$0xff] %vm1174, %v1103
        %1188 = vst.msk [vmem:[#allocation3 + $0x68] sm:$0xff] %vm1174, %v1105
        %1189 = vst.msk [vmem:[#allocation3 + $0x70] sm:$0xff] %vm1174, %v1107
        %1190 = vst.msk [vmem:[#allocation3 + $0x78] sm:$0xff] %vm1174, %v1109
        %1191 = vst.msk [vmem:[#allocation3 + $0x80] sm:$0xff] %vm1174, %v1111
        %1192 = vst.msk [vmem:[#allocation3 + $0x88] sm:$0xff] %vm1174, %v1113
        %1193 = vst.msk [vmem:[#allocation3 + $0x90] sm:$0xff] %vm1174, %v1115
        %1194 = vst.msk [vmem:[#allocation3 + $0x98] sm:$0xff] %vm1174, %v1117
        %1195 = vst.msk [vmem:[#allocation3 + $0xa0] sm:$0xff] %vm1174, %v1119
        %1196 = vst.msk [vmem:[#allocation3 + $0xa8] sm:$0xff] %vm1174, %v1121
        %1197 = vst.msk [vmem:[#allocation3 + $0xb0] sm:$0xff] %vm1174, %v1123
        %1198 = vst.msk [vmem:[#allocation3 + $0xb8] sm:$0xff] %vm1174, %v1125
        %1199 = vst.msk [vmem:[#allocation3 + $0xc0] sm:$0xff] %vm1174, %v1127
        %1200 = vst.msk [vmem:[#allocation3 + $0xc8] sm:$0xff] %vm1174, %v1129
        %1201 = vst.msk [vmem:[#allocation3 + $0xd0] sm:$0xff] %vm1174, %v1131
        %1202 = vst.msk [vmem:[#allocation3 + $0xd8] sm:$0xff] %vm1174, %v1133
        %1203 = vst.msk [vmem:[#allocation3 + $0xe0] sm:$0xff] %vm1174, %v1135
        %1204 = vst.msk [vmem:[#allocation3 + $0xe8] sm:$0xff] %vm1174, %v1137
        %1205 = vst.msk [vmem:[#allocation3 + $0xf0] sm:$0xff] %vm1174, %v1139
        %1206 = vst.msk [vmem:[#allocation3 + $0xf8] sm:$0xff] %vm1174, %v1141
        %v1207 = vld [vmem:[#allocation2 + $0x2] sm:$0xff]
        %v1208 = vld [vmem:[#allocation2 + $0xa] sm:$0xff]
        %v1209 = vld [vmem:[#allocation2 + $0x1a] sm:$0xff]
        %v1210 = vld [vmem:[#allocation2 + $0x22] sm:$0xff]
        %v1211 = vld [vmem:[#allocation2 + $0x32] sm:$0xff]
        %v1212 = vld [vmem:[#allocation2 + $0x3a] sm:$0xff]
        %v1213 = vld [vmem:[#allocation2 + $0x4a] sm:$0xff]
        %v1214 = vld [vmem:[#allocation2 + $0x52] sm:$0xff]
        %v1215 = vld [vmem:[#allocation2 + $0x62] sm:$0xff]
        %v1216 = vld [vmem:[#allocation2 + $0x6a] sm:$0xff]
        %v1217 = vld [vmem:[#allocation2 + $0x7a] sm:$0xff]
        %v1218 = vld [vmem:[#allocation2 + $0x82] sm:$0xff]
        %v1219 = vld [vmem:[#allocation2 + $0x92] sm:$0xff]
        %v1220 = vld [vmem:[#allocation2 + $0x9a] sm:$0xff]
        %v1221 = vld [vmem:[#allocation2 + $0xaa] sm:$0xff]
        %v1222 = vld [vmem:[#allocation2 + $0xb2] sm:$0xff]
        %v1223 = vld [vmem:[#allocation2 + $0xc2] sm:$0xff]
        %v1224 = vld [vmem:[#allocation2 + $0xca] sm:$0xff]
        %v1225 = vld [vmem:[#allocation2 + $0xda] sm:$0xff]
        %v1226 = vld [vmem:[#allocation2 + $0xe2] sm:$0xff]
        %v1227 = vld [vmem:[#allocation2 + $0xf2] sm:$0xff]
        %v1228 = vld [vmem:[#allocation2 + $0xfa] sm:$0xff]
        %v1229 = vld [vmem:[#allocation2 + $0x10a] sm:$0xff]
        %v1230 = vld [vmem:[#allocation2 + $0x112] sm:$0xff]
        %v1231 = vld [vmem:[#allocation2 + $0x122] sm:$0xff]
        %v1232 = vld [vmem:[#allocation2 + $0x12a] sm:$0xff]
        %v1233 = vld [vmem:[#allocation2 + $0x13a] sm:$0xff]
        %v1234 = vld [vmem:[#allocation2 + $0x142] sm:$0xff]
        %v1235 = vld [vmem:[#allocation2 + $0x152] sm:$0xff]
        %v1236 = vld [vmem:[#allocation2 + $0x15a] sm:$0xff]
        %v1237 = vld [vmem:[#allocation2 + $0x16a] sm:$0xff]
        %v1238 = vld [vmem:[#allocation2 + $0x172] sm:$0xff]
        %v1239 = vld [vmem:[#allocation2 + $0x182] sm:$0xff]
        %v1240 = vld [vmem:[#allocation2 + $0x18a] sm:$0xff]
        %v1241 = vld [vmem:[#allocation2 + $0x19a] sm:$0xff]
        %v1242 = vld [vmem:[#allocation2 + $0x1a2] sm:$0xff]
        %1275 = vrot.lane.b32.xlu0 %v1207, 6
        %v1276 = vpop.permute.xlu0 %1275
        %1277 = vrot.lane.b32.xlu0 %v1208, 6
        %v1278 = vpop.permute.xlu0 %1277
        %1279 = vrot.lane.b32.xlu0 %v1209, 6
        %v1280 = vpop.permute.xlu0 %1279
        %1281 = vrot.lane.b32.xlu0 %v1210, 6
        %v1282 = vpop.permute.xlu0 %1281
        %1283 = vrot.lane.b32.xlu0 %v1211, 6
        %v1284 = vpop.permute.xlu0 %1283
        %1285 = vrot.lane.b32.xlu0 %v1212, 6
        %v1286 = vpop.permute.xlu0 %1285
        %1287 = vrot.lane.b32.xlu0 %v1213, 6
        %v1288 = vpop.permute.xlu0 %1287
        %1289 = vrot.lane.b32.xlu0 %v1214, 6
        %v1290 = vpop.permute.xlu0 %1289
        %1291 = vrot.lane.b32.xlu0 %v1215, 6
        %v1292 = vpop.permute.xlu0 %1291
        %1293 = vrot.lane.b32.xlu0 %v1216, 6
        %v1294 = vpop.permute.xlu0 %1293
        %1295 = vrot.lane.b32.xlu0 %v1217, 6
        %v1296 = vpop.permute.xlu0 %1295
        %1297 = vrot.lane.b32.xlu0 %v1218, 6
        %v1298 = vpop.permute.xlu0 %1297
        %1299 = vrot.lane.b32.xlu0 %v1219, 6
        %v1300 = vpop.permute.xlu0 %1299
        %1301 = vrot.lane.b32.xlu0 %v1220, 6
        %v1302 = vpop.permute.xlu0 %1301
        %1303 = vrot.lane.b32.xlu0 %v1221, 6
        %v1304 = vpop.permute.xlu0 %1303
        %1305 = vrot.lane.b32.xlu0 %v1222, 6
        %v1306 = vpop.permute.xlu0 %1305
        %1307 = vrot.lane.b32.xlu0 %v1223, 6
        %v1308 = vpop.permute.xlu0 %1307
        %1309 = vrot.lane.b32.xlu0 %v1224, 6
        %v1310 = vpop.permute.xlu0 %1309
        %1311 = vrot.lane.b32.xlu0 %v1225, 6
        %v1312 = vpop.permute.xlu0 %1311
        %1313 = vrot.lane.b32.xlu0 %v1226, 6
        %v1314 = vpop.permute.xlu0 %1313
        %1315 = vrot.lane.b32.xlu0 %v1227, 6
        %v1316 = vpop.permute.xlu0 %1315
        %1317 = vrot.lane.b32.xlu0 %v1228, 6
        %v1318 = vpop.permute.xlu0 %1317
        %1319 = vrot.lane.b32.xlu0 %v1229, 6
        %v1320 = vpop.permute.xlu0 %1319
        %1321 = vrot.lane.b32.xlu0 %v1230, 6
        %v1322 = vpop.permute.xlu0 %1321
        %1323 = vrot.lane.b32.xlu0 %v1231, 6
        %v1324 = vpop.permute.xlu0 %1323
        %1325 = vrot.lane.b32.xlu0 %v1232, 6
        %v1326 = vpop.permute.xlu0 %1325
        %1327 = vrot.lane.b32.xlu0 %v1233, 6
        %v1328 = vpop.permute.xlu0 %1327
        %1329 = vrot.lane.b32.xlu0 %v1234, 6
        %v1330 = vpop.permute.xlu0 %1329
        %1331 = vrot.lane.b32.xlu0 %v1235, 6
        %v1332 = vpop.permute.xlu0 %1331
        %1333 = vrot.lane.b32.xlu0 %v1236, 6
        %v1334 = vpop.permute.xlu0 %1333
        %1335 = vrot.lane.b32.xlu0 %v1237, 6
        %v1336 = vpop.permute.xlu0 %1335
        %1337 = vrot.lane.b32.xlu0 %v1238, 6
        %v1338 = vpop.permute.xlu0 %1337
        %vm1371 = vcmask 72752
        %1372 = vst.msk [vmem:[#allocation3] sm:$0xff] %vm1371, %v1276
        %1373 = vst.msk [vmem:[#allocation3 + $0x8] sm:$0xff] %vm1371, %v1278
        %1374 = vst.msk [vmem:[#allocation3 + $0x10] sm:$0xff] %vm1371, %v1280
        %1375 = vst.msk [vmem:[#allocation3 + $0x18] sm:$0xff] %vm1371, %v1282
        %1376 = vst.msk [vmem:[#allocation3 + $0x20] sm:$0xff] %vm1371, %v1284
        %1377 = vst.msk [vmem:[#allocation3 + $0x28] sm:$0xff] %vm1371, %v1286
        %1378 = vst.msk [vmem:[#allocation3 + $0x30] sm:$0xff] %vm1371, %v1288
        %1379 = vst.msk [vmem:[#allocation3 + $0x38] sm:$0xff] %vm1371, %v1290
        %1380 = vst.msk [vmem:[#allocation3 + $0x40] sm:$0xff] %vm1371, %v1292
        %1381 = vst.msk [vmem:[#allocation3 + $0x48] sm:$0xff] %vm1371, %v1294
        %1382 = vst.msk [vmem:[#allocation3 + $0x50] sm:$0xff] %vm1371, %v1296
        %1383 = vst.msk [vmem:[#allocation3 + $0x58] sm:$0xff] %vm1371, %v1298
        %1384 = vst.msk [vmem:[#allocation3 + $0x60] sm:$0xff] %vm1371, %v1300
        %1385 = vst.msk [vmem:[#allocation3 + $0x68] sm:$0xff] %vm1371, %v1302
        %1386 = vst.msk [vmem:[#allocation3 + $0x70] sm:$0xff] %vm1371, %v1304
        %1387 = vst.msk [vmem:[#allocation3 + $0x78] sm:$0xff] %vm1371, %v1306
        %1388 = vst.msk [vmem:[#allocation3 + $0x80] sm:$0xff] %vm1371, %v1308
        %1389 = vst.msk [vmem:[#allocation3 + $0x88] sm:$0xff] %vm1371, %v1310
        %1390 = vst.msk [vmem:[#allocation3 + $0x90] sm:$0xff] %vm1371, %v1312
        %1391 = vst.msk [vmem:[#allocation3 + $0x98] sm:$0xff] %vm1371, %v1314
        %1392 = vst.msk [vmem:[#allocation3 + $0xa0] sm:$0xff] %vm1371, %v1316
        %1393 = vst.msk [vmem:[#allocation3 + $0xa8] sm:$0xff] %vm1371, %v1318
        %1394 = vst.msk [vmem:[#allocation3 + $0xb0] sm:$0xff] %vm1371, %v1320
        %1395 = vst.msk [vmem:[#allocation3 + $0xb8] sm:$0xff] %vm1371, %v1322
        %1396 = vst.msk [vmem:[#allocation3 + $0xc0] sm:$0xff] %vm1371, %v1324
        %1397 = vst.msk [vmem:[#allocation3 + $0xc8] sm:$0xff] %vm1371, %v1326
        %1398 = vst.msk [vmem:[#allocation3 + $0xd0] sm:$0xff] %vm1371, %v1328
        %1399 = vst.msk [vmem:[#allocation3 + $0xd8] sm:$0xff] %vm1371, %v1330
        %1400 = vst.msk [vmem:[#allocation3 + $0xe0] sm:$0xff] %vm1371, %v1332
        %1401 = vst.msk [vmem:[#allocation3 + $0xe8] sm:$0xff] %vm1371, %v1334
        %1402 = vst.msk [vmem:[#allocation3 + $0xf0] sm:$0xff] %vm1371, %v1336
        %1403 = vst.msk [vmem:[#allocation3 + $0xf8] sm:$0xff] %vm1371, %v1338
        %1406 = vrot.lane.b32.xlu0 %v1209, 15
        %v1407 = vpop.permute.xlu0 %1406
        %1408 = vrot.lane.b32.xlu0 %v1210, 15
        %v1409 = vpop.permute.xlu0 %1408
        %1410 = vrot.lane.b32.xlu0 %v1211, 15
        %v1411 = vpop.permute.xlu0 %1410
        %1412 = vrot.lane.b32.xlu0 %v1212, 15
        %v1413 = vpop.permute.xlu0 %1412
        %1414 = vrot.lane.b32.xlu0 %v1213, 15
        %v1415 = vpop.permute.xlu0 %1414
        %1416 = vrot.lane.b32.xlu0 %v1214, 15
        %v1417 = vpop.permute.xlu0 %1416
        %1418 = vrot.lane.b32.xlu0 %v1215, 15
        %v1419 = vpop.permute.xlu0 %1418
        %1420 = vrot.lane.b32.xlu0 %v1216, 15
        %v1421 = vpop.permute.xlu0 %1420
        %1422 = vrot.lane.b32.xlu0 %v1217, 15
        %v1423 = vpop.permute.xlu0 %1422
        %1424 = vrot.lane.b32.xlu0 %v1218, 15
        %v1425 = vpop.permute.xlu0 %1424
        %1426 = vrot.lane.b32.xlu0 %v1219, 15
        %v1427 = vpop.permute.xlu0 %1426
        %1428 = vrot.lane.b32.xlu0 %v1220, 15
        %v1429 = vpop.permute.xlu0 %1428
        %1430 = vrot.lane.b32.xlu0 %v1221, 15
        %v1431 = vpop.permute.xlu0 %1430
        %1432 = vrot.lane.b32.xlu0 %v1222, 15
        %v1433 = vpop.permute.xlu0 %1432
        %1434 = vrot.lane.b32.xlu0 %v1223, 15
        %v1435 = vpop.permute.xlu0 %1434
        %1436 = vrot.lane.b32.xlu0 %v1224, 15
        %v1437 = vpop.permute.xlu0 %1436
        %1438 = vrot.lane.b32.xlu0 %v1225, 15
        %v1439 = vpop.permute.xlu0 %1438
        %1440 = vrot.lane.b32.xlu0 %v1226, 15
        %v1441 = vpop.permute.xlu0 %1440
        %1442 = vrot.lane.b32.xlu0 %v1227, 15
        %v1443 = vpop.permute.xlu0 %1442
        %1444 = vrot.lane.b32.xlu0 %v1228, 15
        %v1445 = vpop.permute.xlu0 %1444
        %1446 = vrot.lane.b32.xlu0 %v1229, 15
        %v1447 = vpop.permute.xlu0 %1446
        %1448 = vrot.lane.b32.xlu0 %v1230, 15
        %v1449 = vpop.permute.xlu0 %1448
        %1450 = vrot.lane.b32.xlu0 %v1231, 15
        %v1451 = vpop.permute.xlu0 %1450
        %1452 = vrot.lane.b32.xlu0 %v1232, 15
        %v1453 = vpop.permute.xlu0 %1452
        %1454 = vrot.lane.b32.xlu0 %v1233, 15
        %v1455 = vpop.permute.xlu0 %1454
        %1456 = vrot.lane.b32.xlu0 %v1234, 15
        %v1457 = vpop.permute.xlu0 %1456
        %1458 = vrot.lane.b32.xlu0 %v1235, 15
        %v1459 = vpop.permute.xlu0 %1458
        %1460 = vrot.lane.b32.xlu0 %v1236, 15
        %v1461 = vpop.permute.xlu0 %1460
        %1462 = vrot.lane.b32.xlu0 %v1237, 15
        %v1463 = vpop.permute.xlu0 %1462
        %1464 = vrot.lane.b32.xlu0 %v1238, 15
        %v1465 = vpop.permute.xlu0 %1464
        %1466 = vrot.lane.b32.xlu0 %v1239, 15
        %v1467 = vpop.permute.xlu0 %1466
        %1468 = vrot.lane.b32.xlu0 %v1240, 15
        %v1469 = vpop.permute.xlu0 %1468
        %vm1502 = vcmask 146552
        %1503 = vst.msk [vmem:[#allocation3] sm:$0xff] %vm1502, %v1407
        %1504 = vst.msk [vmem:[#allocation3 + $0x8] sm:$0xff] %vm1502, %v1409
        %1505 = vst.msk [vmem:[#allocation3 + $0x10] sm:$0xff] %vm1502, %v1411
        %1506 = vst.msk [vmem:[#allocation3 + $0x18] sm:$0xff] %vm1502, %v1413
        %1507 = vst.msk [vmem:[#allocation3 + $0x20] sm:$0xff] %vm1502, %v1415
        %1508 = vst.msk [vmem:[#allocation3 + $0x28] sm:$0xff] %vm1502, %v1417
        %1509 = vst.msk [vmem:[#allocation3 + $0x30] sm:$0xff] %vm1502, %v1419
        %1510 = vst.msk [vmem:[#allocation3 + $0x38] sm:$0xff] %vm1502, %v1421
        %1511 = vst.msk [vmem:[#allocation3 + $0x40] sm:$0xff] %vm1502, %v1423
        %1512 = vst.msk [vmem:[#allocation3 + $0x48] sm:$0xff] %vm1502, %v1425
        %1513 = vst.msk [vmem:[#allocation3 + $0x50] sm:$0xff] %vm1502, %v1427
        %1514 = vst.msk [vmem:[#allocation3 + $0x58] sm:$0xff] %vm1502, %v1429
        %1515 = vst.msk [vmem:[#allocation3 + $0x60] sm:$0xff] %vm1502, %v1431
        %1516 = vst.msk [vmem:[#allocation3 + $0x68] sm:$0xff] %vm1502, %v1433
        %1517 = vst.msk [vmem:[#allocation3 + $0x70] sm:$0xff] %vm1502, %v1435
        %1518 = vst.msk [vmem:[#allocation3 + $0x78] sm:$0xff] %vm1502, %v1437
        %1519 = vst.msk [vmem:[#allocation3 + $0x80] sm:$0xff] %vm1502, %v1439
        %1520 = vst.msk [vmem:[#allocation3 + $0x88] sm:$0xff] %vm1502, %v1441
        %1521 = vst.msk [vmem:[#allocation3 + $0x90] sm:$0xff] %vm1502, %v1443
        %1522 = vst.msk [vmem:[#allocation3 + $0x98] sm:$0xff] %vm1502, %v1445
        %1523 = vst.msk [vmem:[#allocation3 + $0xa0] sm:$0xff] %vm1502, %v1447
        %1524 = vst.msk [vmem:[#allocation3 + $0xa8] sm:$0xff] %vm1502, %v1449
        %1525 = vst.msk [vmem:[#allocation3 + $0xb0] sm:$0xff] %vm1502, %v1451
        %1526 = vst.msk [vmem:[#allocation3 + $0xb8] sm:$0xff] %vm1502, %v1453
        %1527 = vst.msk [vmem:[#allocation3 + $0xc0] sm:$0xff] %vm1502, %v1455
        %1528 = vst.msk [vmem:[#allocation3 + $0xc8] sm:$0xff] %vm1502, %v1457
        %1529 = vst.msk [vmem:[#allocation3 + $0xd0] sm:$0xff] %vm1502, %v1459
        %1530 = vst.msk [vmem:[#allocation3 + $0xd8] sm:$0xff] %vm1502, %v1461
        %1531 = vst.msk [vmem:[#allocation3 + $0xe0] sm:$0xff] %vm1502, %v1463
        %1532 = vst.msk [vmem:[#allocation3 + $0xe8] sm:$0xff] %vm1502, %v1465
        %1533 = vst.msk [vmem:[#allocation3 + $0xf0] sm:$0xff] %vm1502, %v1467
        %1534 = vst.msk [vmem:[#allocation3 + $0xf8] sm:$0xff] %vm1502, %v1469
        %1537 = vrot.lane.b32.xlu0 %v1211, 24
        %v1538 = vpop.permute.xlu0 %1537
        %1539 = vrot.lane.b32.xlu0 %v1212, 24
        %v1540 = vpop.permute.xlu0 %1539
        %1541 = vrot.lane.b32.xlu0 %v1213, 24
        %v1542 = vpop.permute.xlu0 %1541
        %1543 = vrot.lane.b32.xlu0 %v1214, 24
        %v1544 = vpop.permute.xlu0 %1543
        %1545 = vrot.lane.b32.xlu0 %v1215, 24
        %v1546 = vpop.permute.xlu0 %1545
        %1547 = vrot.lane.b32.xlu0 %v1216, 24
        %v1548 = vpop.permute.xlu0 %1547
        %1549 = vrot.lane.b32.xlu0 %v1217, 24
        %v1550 = vpop.permute.xlu0 %1549
        %1551 = vrot.lane.b32.xlu0 %v1218, 24
        %v1552 = vpop.permute.xlu0 %1551
        %1553 = vrot.lane.b32.xlu0 %v1219, 24
        %v1554 = vpop.permute.xlu0 %1553
        %1555 = vrot.lane.b32.xlu0 %v1220, 24
        %v1556 = vpop.permute.xlu0 %1555
        %1557 = vrot.lane.b32.xlu0 %v1221, 24
        %v1558 = vpop.permute.xlu0 %1557
        %1559 = vrot.lane.b32.xlu0 %v1222, 24
        %v1560 = vpop.permute.xlu0 %1559
        %1561 = vrot.lane.b32.xlu0 %v1223, 24
        %v1562 = vpop.permute.xlu0 %1561
        %1563 = vrot.lane.b32.xlu0 %v1224, 24
        %v1564 = vpop.permute.xlu0 %1563
        %1565 = vrot.lane.b32.xlu0 %v1225, 24
        %v1566 = vpop.permute.xlu0 %1565
        %1567 = vrot.lane.b32.xlu0 %v1226, 24
        %v1568 = vpop.permute.xlu0 %1567
        %1569 = vrot.lane.b32.xlu0 %v1227, 24
        %v1570 = vpop.permute.xlu0 %1569
        %1571 = vrot.lane.b32.xlu0 %v1228, 24
        %v1572 = vpop.permute.xlu0 %1571
        %1573 = vrot.lane.b32.xlu0 %v1229, 24
        %v1574 = vpop.permute.xlu0 %1573
        %1575 = vrot.lane.b32.xlu0 %v1230, 24
        %v1576 = vpop.permute.xlu0 %1575
        %1577 = vrot.lane.b32.xlu0 %v1231, 24
        %v1578 = vpop.permute.xlu0 %1577
        %1579 = vrot.lane.b32.xlu0 %v1232, 24
        %v1580 = vpop.permute.xlu0 %1579
        %1581 = vrot.lane.b32.xlu0 %v1233, 24
        %v1582 = vpop.permute.xlu0 %1581
        %1583 = vrot.lane.b32.xlu0 %v1234, 24
        %v1584 = vpop.permute.xlu0 %1583
        %1585 = vrot.lane.b32.xlu0 %v1235, 24
        %v1586 = vpop.permute.xlu0 %1585
        %1587 = vrot.lane.b32.xlu0 %v1236, 24
        %v1588 = vpop.permute.xlu0 %1587
        %1589 = vrot.lane.b32.xlu0 %v1237, 24
        %v1590 = vpop.permute.xlu0 %1589
        %1591 = vrot.lane.b32.xlu0 %v1238, 24
        %v1592 = vpop.permute.xlu0 %1591
        %1593 = vrot.lane.b32.xlu0 %v1239, 24
        %v1594 = vpop.permute.xlu0 %1593
        %1595 = vrot.lane.b32.xlu0 %v1240, 24
        %v1596 = vpop.permute.xlu0 %1595
        %1597 = vrot.lane.b32.xlu0 %v1241, 24
        %v1598 = vpop.permute.xlu0 %1597
        %1599 = vrot.lane.b32.xlu0 %v1242, 24
        %v1600 = vpop.permute.xlu0 %1599
        %vm1633 = vcmask 220352
        %1634 = vst.msk [vmem:[#allocation3] sm:$0xff] %vm1633, %v1538
        %1635 = vst.msk [vmem:[#allocation3 + $0x8] sm:$0xff] %vm1633, %v1540
        %1636 = vst.msk [vmem:[#allocation3 + $0x10] sm:$0xff] %vm1633, %v1542
        %1637 = vst.msk [vmem:[#allocation3 + $0x18] sm:$0xff] %vm1633, %v1544
        %1638 = vst.msk [vmem:[#allocation3 + $0x20] sm:$0xff] %vm1633, %v1546
        %1639 = vst.msk [vmem:[#allocation3 + $0x28] sm:$0xff] %vm1633, %v1548
        %1640 = vst.msk [vmem:[#allocation3 + $0x30] sm:$0xff] %vm1633, %v1550
        %1641 = vst.msk [vmem:[#allocation3 + $0x38] sm:$0xff] %vm1633, %v1552
        %1642 = vst.msk [vmem:[#allocation3 + $0x40] sm:$0xff] %vm1633, %v1554
        %1643 = vst.msk [vmem:[#allocation3 + $0x48] sm:$0xff] %vm1633, %v1556
        %1644 = vst.msk [vmem:[#allocation3 + $0x50] sm:$0xff] %vm1633, %v1558
        %1645 = vst.msk [vmem:[#allocation3 + $0x58] sm:$0xff] %vm1633, %v1560
        %1646 = vst.msk [vmem:[#allocation3 + $0x60] sm:$0xff] %vm1633, %v1562
        %1647 = vst.msk [vmem:[#allocation3 + $0x68] sm:$0xff] %vm1633, %v1564
        %1648 = vst.msk [vmem:[#allocation3 + $0x70] sm:$0xff] %vm1633, %v1566
        %1649 = vst.msk [vmem:[#allocation3 + $0x78] sm:$0xff] %vm1633, %v1568
        %1650 = vst.msk [vmem:[#allocation3 + $0x80] sm:$0xff] %vm1633, %v1570
        %1651 = vst.msk [vmem:[#allocation3 + $0x88] sm:$0xff] %vm1633, %v1572
        %1652 = vst.msk [vmem:[#allocation3 + $0x90] sm:$0xff] %vm1633, %v1574
        %1653 = vst.msk [vmem:[#allocation3 + $0x98] sm:$0xff] %vm1633, %v1576
        %1654 = vst.msk [vmem:[#allocation3 + $0xa0] sm:$0xff] %vm1633, %v1578
        %1655 = vst.msk [vmem:[#allocation3 + $0xa8] sm:$0xff] %vm1633, %v1580
        %1656 = vst.msk [vmem:[#allocation3 + $0xb0] sm:$0xff] %vm1633, %v1582
        %1657 = vst.msk [vmem:[#allocation3 + $0xb8] sm:$0xff] %vm1633, %v1584
        %1658 = vst.msk [vmem:[#allocation3 + $0xc0] sm:$0xff] %vm1633, %v1586
        %1659 = vst.msk [vmem:[#allocation3 + $0xc8] sm:$0xff] %vm1633, %v1588
        %1660 = vst.msk [vmem:[#allocation3 + $0xd0] sm:$0xff] %vm1633, %v1590
        %1661 = vst.msk [vmem:[#allocation3 + $0xd8] sm:$0xff] %vm1633, %v1592
        %1662 = vst.msk [vmem:[#allocation3 + $0xe0] sm:$0xff] %vm1633, %v1594
        %1663 = vst.msk [vmem:[#allocation3 + $0xe8] sm:$0xff] %vm1633, %v1596
        %1664 = vst.msk [vmem:[#allocation3 + $0xf0] sm:$0xff] %vm1633, %v1598
        %1665 = vst.msk [vmem:[#allocation3 + $0xf8] sm:$0xff] %vm1633, %v1600
        %v1666 = vld [vmem:[#allocation3] sm:$0xff]
        %v1667 = vld [vmem:[#allocation3 + $0x8] sm:$0xff]
        %v1668 = vld [vmem:[#allocation3 + $0x10] sm:$0xff]
        %v1669 = vld [vmem:[#allocation3 + $0x18] sm:$0xff]
        %v1670 = vld [vmem:[#allocation3 + $0x20] sm:$0xff]
        %v1671 = vld [vmem:[#allocation3 + $0x28] sm:$0xff]
        %v1672 = vld [vmem:[#allocation3 + $0x30] sm:$0xff]
        %v1673 = vld [vmem:[#allocation3 + $0x38] sm:$0xff]
        %v1674 = vld [vmem:[#allocation3 + $0x40] sm:$0xff]
        %v1675 = vld [vmem:[#allocation3 + $0x48] sm:$0xff]
        %v1676 = vld [vmem:[#allocation3 + $0x50] sm:$0xff]
        %v1677 = vld [vmem:[#allocation3 + $0x58] sm:$0xff]
        %v1678 = vld [vmem:[#allocation3 + $0x60] sm:$0xff]
        %v1679 = vld [vmem:[#allocation3 + $0x68] sm:$0xff]
        %v1680 = vld [vmem:[#allocation3 + $0x70] sm:$0xff]
        %v1681 = vld [vmem:[#allocation3 + $0x78] sm:$0xff]
        %v1682 = vld [vmem:[#allocation3 + $0x80] sm:$0xff]
        %v1683 = vld [vmem:[#allocation3 + $0x88] sm:$0xff]
        %v1684 = vld [vmem:[#allocation3 + $0x90] sm:$0xff]
        %v1685 = vld [vmem:[#allocation3 + $0x98] sm:$0xff]
        %v1686 = vld [vmem:[#allocation3 + $0xa0] sm:$0xff]
        %v1687 = vld [vmem:[#allocation3 + $0xa8] sm:$0xff]
        %v1688 = vld [vmem:[#allocation3 + $0xb0] sm:$0xff]
        %v1689 = vld [vmem:[#allocation3 + $0xb8] sm:$0xff]
        %v1690 = vld [vmem:[#allocation3 + $0xc0] sm:$0xff]
        %v1691 = vld [vmem:[#allocation3 + $0xc8] sm:$0xff]
        %v1692 = vld [vmem:[#allocation3 + $0xd0] sm:$0xff]
        %v1693 = vld [vmem:[#allocation3 + $0xd8] sm:$0xff]
        %v1694 = vld [vmem:[#allocation3 + $0xe0] sm:$0xff]
        %v1695 = vld [vmem:[#allocation3 + $0xe8] sm:$0xff]
        %v1696 = vld [vmem:[#allocation3 + $0xf0] sm:$0xff]
        %v1697 = vld [vmem:[#allocation3 + $0xf8] sm:$0xff]
        %v1698 = vld [vmem:[%s1] sm:$0xff]
        %v1699 = vld [vmem:[%s1 + $0x8] sm:$0xff]
        %v1700 = vld [vmem:[%s1 + $0x10] sm:$0xff]
        %v1701 = vld [vmem:[%s1 + $0x18] sm:$0x7]
        %v1702 = vld [vmem:[%s2] sm:$0x1]
        %v1704 = vlaneseq
        %v1705 = vshrl.u32 %v1704, 7
        %v1706 = vsub.s32 0, %v1705
        %v1707 = vrot.slane %v1702, %v1706
        %vm1709 = vcmask 220160
        %v1711 = vsel %vm1709, %v1666, 0
        %v1714 = vsel %vm1709, %v1667, 0
        %v1717 = vsel %vm1709, %v1668, 0
        %v1720 = vsel %vm1709, %v1669, 0
        %v1723 = vsel %vm1709, %v1670, 0
        %v1726 = vsel %vm1709, %v1671, 0
        %v1729 = vsel %vm1709, %v1672, 0
        %v1732 = vsel %vm1709, %v1673, 0
        %v1735 = vsel %vm1709, %v1674, 0
        %v1738 = vsel %vm1709, %v1675, 0
        %v1741 = vsel %vm1709, %v1676, 0
        %v1744 = vsel %vm1709, %v1677, 0
        %v1747 = vsel %vm1709, %v1678, 0
        %v1750 = vsel %vm1709, %v1679, 0
        %v1753 = vsel %vm1709, %v1680, 0
        %v1756 = vsel %vm1709, %v1681, 0
        %v1759 = vsel %vm1709, %v1682, 0
        %v1762 = vsel %vm1709, %v1683, 0
        %v1765 = vsel %vm1709, %v1684, 0
        %v1768 = vsel %vm1709, %v1685, 0
        %v1771 = vsel %vm1709, %v1686, 0
        %v1774 = vsel %vm1709, %v1687, 0
        %v1777 = vsel %vm1709, %v1688, 0
        %v1780 = vsel %vm1709, %v1689, 0
        %v1783 = vsel %vm1709, %v1690, 0
        %v1786 = vsel %vm1709, %v1691, 0
        %v1789 = vsel %vm1709, %v1692, 0
        %v1792 = vsel %vm1709, %v1693, 0
        %v1795 = vsel %vm1709, %v1694, 0
        %v1798 = vsel %vm1709, %v1695, 0
        %v1801 = vsel %vm1709, %v1696, 0
        %v1804 = vsel %vm1709, %v1697, 0
        %vm1806 = vcmask 1042432
        %v1808 = vsel %vm1806, %v1701, 0
        %1810 = vmatprep.subr.mxu0 0.0
        %1811 = vmatpush1.msra.mxu0 0.0
        %1812 = vmatprep.subr.mxu0 0.0
        %1813 = vmatpush1.msra.mxu0 0.0
        %1814 = vmatprep.subr.mxu0 0.0
        %1815 = vmatpush1.msra.mxu0 0.0
        %1816 = vmatprep.subr.mxu0 0.0
        %1817 = vmatpush1.msra.mxu0 0.0
        %1818 = vmatprep.subr.mxu0 0.0
        %1819 = vmatpush1.msra.mxu0 0.0
        %1820 = vmatprep.subr.mxu0 0.0
        %1821 = vmatpush1.msra.mxu0 0.0
        %1822 = vmatprep.subr.mxu0 0.0
        %1823 = vmatpush1.msra.mxu0 0.0
        %1824 = vmatprep.subr.mxu0 0.0
        %1825 = vmatpush1.msra.mxu0 0.0
        %1826 = vmatprep.subr.mxu0 0.0
        %1827 = vmatpush1.msra.mxu0 0.0
        %1828 = vmatprep.subr.mxu0 0.0
        %1829 = vmatpush1.msra.mxu0 0.0
        %1830 = vmatprep.subr.mxu0 0.0
        %1831 = vmatpush1.msra.mxu0 0.0
        %1832 = vmatprep.subr.mxu0 0.0
        %1833 = vmatpush1.msra.mxu0 0.0
        %1834 = vmatprep.subr.mxu0 0.0
        %1835 = vmatpush1.msra.mxu0 %v1808
        %1836 = vmatprep.subr.mxu0 0.0
        %1837 = vmatpush1.msra.mxu0 %v1700
        %1838 = vmatprep.subr.mxu0 0.0
        %1839 = vmatpush1.msra.mxu0 %v1699
        %1840 = vmatprep.subr.mxu0 0.0
        %1841 = vmatpush1.msra.mxu0 %v1698
        %1842 = vmatprep.subr.mxu0 0.0
        %1843 = vmatpush2.msra.mxu0 0.0
        %1844 = vmatprep.subr.mxu0 0.0
        %1845 = vmatpush2.msra.mxu0 0.0
        %1846 = vmatprep.subr.mxu0 0.0
        %1847 = vmatpush2.msra.mxu0 0.0
        %1848 = vmatprep.subr.mxu0 0.0
        %1849 = vmatpush2.msra.mxu0 0.0
        %1850 = vmatprep.subr.mxu0 0.0
        %1851 = vmatpush2.msra.mxu0 0.0
        %1852 = vmatprep.subr.mxu0 0.0
        %1853 = vmatpush2.msra.mxu0 0.0
        %1854 = vmatprep.subr.mxu0 0.0
        %1855 = vmatpush2.msra.mxu0 0.0
        %1856 = vmatprep.subr.mxu0 0.0
        %1857 = vmatpush2.msra.mxu0 0.0
        %1858 = vmatprep.subr.mxu0 0.0
        %1859 = vmatpush2.msra.mxu0 0.0
        %1860 = vmatprep.subr.mxu0 0.0
        %1861 = vmatpush2.msra.mxu0 0.0
        %1862 = vmatprep.subr.mxu0 0.0
        %1863 = vmatpush2.msra.mxu0 0.0
        %1864 = vmatprep.subr.mxu0 0.0
        %1865 = vmatpush2.msra.mxu0 0.0
        %1866 = vmatprep.subr.mxu0 0.0
        %1867 = vmatpush2.msra.mxu0 0.0
        %1868 = vmatprep.subr.mxu0 0.0
        %1869 = vmatpush2.msra.mxu0 0.0
        %1870 = vmatprep.subr.mxu0 0.0
        %1871 = vmatpush2.msra.mxu0 0.0
        %1872 = vmatprep.subr.mxu0 0.0
        %1873 = vmatpush2.msra.mxu0 0.0
        %1874 = vmatprep.mubr.f32.mxu0 0.0
        %1875 = vmatmul.mubr.f32.gmra.mxu0 %v1711
        %v1876 = vpop.f32.mrf.mxu0
        %v1877 = vadd.f32 %v1707, %v1876
        %v1878 = vpop.f32.mrf.mxu0
        %1879 = vmatprep.mubr.f32.mxu0 0.0
        %1880 = vmatmul.mubr.f32.gmra.mxu0 %v1714
        %v1881 = vpop.f32.mrf.mxu0
        %v1882 = vadd.f32 %v1707, %v1881
        %v1883 = vpop.f32.mrf.mxu0
        %1884 = vmatprep.mubr.f32.mxu0 0.0
        %1885 = vmatmul.mubr.f32.gmra.mxu0 %v1717
        %v1886 = vpop.f32.mrf.mxu0
        %v1887 = vadd.f32 %v1707, %v1886
        %v1888 = vpop.f32.mrf.mxu0
        %1889 = vmatprep.mubr.f32.mxu0 0.0
        %1890 = vmatmul.mubr.f32.gmra.mxu0 %v1720
        %v1891 = vpop.f32.mrf.mxu0
        %v1892 = vadd.f32 %v1707, %v1891
        %v1893 = vpop.f32.mrf.mxu0
        %1894 = vmatprep.mubr.f32.mxu0 0.0
        %1895 = vmatmul.mubr.f32.gmra.mxu0 %v1723
        %v1896 = vpop.f32.mrf.mxu0
        %v1897 = vadd.f32 %v1707, %v1896
        %v1898 = vpop.f32.mrf.mxu0
        %1899 = vmatprep.mubr.f32.mxu0 0.0
        %1900 = vmatmul.mubr.f32.gmra.mxu0 %v1726
        %v1901 = vpop.f32.mrf.mxu0
        %v1902 = vadd.f32 %v1707, %v1901
        %v1903 = vpop.f32.mrf.mxu0
        %1904 = vmatprep.mubr.f32.mxu0 0.0
        %1905 = vmatmul.mubr.f32.gmra.mxu0 %v1729
        %v1906 = vpop.f32.mrf.mxu0
        %v1907 = vadd.f32 %v1707, %v1906
        %v1908 = vpop.f32.mrf.mxu0
        %1909 = vmatprep.mubr.f32.mxu0 0.0
        %1910 = vmatmul.mubr.f32.gmra.mxu0 %v1732
        %v1911 = vpop.f32.mrf.mxu0
        %v1912 = vadd.f32 %v1707, %v1911
        %v1913 = vpop.f32.mrf.mxu0
        %1914 = vmatprep.mubr.f32.mxu0 0.0
        %1915 = vmatmul.mubr.f32.gmra.mxu0 %v1735
        %v1916 = vpop.f32.mrf.mxu0
        %v1917 = vadd.f32 %v1707, %v1916
        %v1918 = vpop.f32.mrf.mxu0
        %1919 = vmatprep.mubr.f32.mxu0 0.0
        %1920 = vmatmul.mubr.f32.gmra.mxu0 %v1738
        %v1921 = vpop.f32.mrf.mxu0
        %v1922 = vadd.f32 %v1707, %v1921
        %v1923 = vpop.f32.mrf.mxu0
        %1924 = vmatprep.mubr.f32.mxu0 0.0
        %1925 = vmatmul.mubr.f32.gmra.mxu0 %v1741
        %v1926 = vpop.f32.mrf.mxu0
        %v1927 = vadd.f32 %v1707, %v1926
        %v1928 = vpop.f32.mrf.mxu0
        %1929 = vmatprep.mubr.f32.mxu0 0.0
        %1930 = vmatmul.mubr.f32.gmra.mxu0 %v1744
        %v1931 = vpop.f32.mrf.mxu0
        %v1932 = vadd.f32 %v1707, %v1931
        %v1933 = vpop.f32.mrf.mxu0
        %1934 = vmatprep.mubr.f32.mxu0 0.0
        %1935 = vmatmul.mubr.f32.gmra.mxu0 %v1747
        %v1936 = vpop.f32.mrf.mxu0
        %v1937 = vadd.f32 %v1707, %v1936
        %v1938 = vpop.f32.mrf.mxu0
        %1939 = vmatprep.mubr.f32.mxu0 0.0
        %1940 = vmatmul.mubr.f32.gmra.mxu0 %v1750
        %v1941 = vpop.f32.mrf.mxu0
        %v1942 = vadd.f32 %v1707, %v1941
        %v1943 = vpop.f32.mrf.mxu0
        %1944 = vmatprep.mubr.f32.mxu0 0.0
        %1945 = vmatmul.mubr.f32.gmra.mxu0 %v1753
        %v1946 = vpop.f32.mrf.mxu0
        %v1947 = vadd.f32 %v1707, %v1946
        %v1948 = vpop.f32.mrf.mxu0
        %1949 = vmatprep.mubr.f32.mxu0 0.0
        %1950 = vmatmul.mubr.f32.gmra.mxu0 %v1756
        %v1951 = vpop.f32.mrf.mxu0
        %v1952 = vadd.f32 %v1707, %v1951
        %v1953 = vpop.f32.mrf.mxu0
        %1954 = vmatprep.mubr.f32.mxu0 0.0
        %1955 = vmatmul.mubr.f32.gmra.mxu0 %v1759
        %v1956 = vpop.f32.mrf.mxu0
        %v1957 = vadd.f32 %v1707, %v1956
        %v1958 = vpop.f32.mrf.mxu0
        %1959 = vmatprep.mubr.f32.mxu0 0.0
        %1960 = vmatmul.mubr.f32.gmra.mxu0 %v1762
        %v1961 = vpop.f32.mrf.mxu0
        %v1962 = vadd.f32 %v1707, %v1961
        %v1963 = vpop.f32.mrf.mxu0
        %1964 = vmatprep.mubr.f32.mxu0 0.0
        %1965 = vmatmul.mubr.f32.gmra.mxu0 %v1765
        %v1966 = vpop.f32.mrf.mxu0
        %v1967 = vadd.f32 %v1707, %v1966
        %v1968 = vpop.f32.mrf.mxu0
        %1969 = vmatprep.mubr.f32.mxu0 0.0
        %1970 = vmatmul.mubr.f32.gmra.mxu0 %v1768
        %v1971 = vpop.f32.mrf.mxu0
        %v1972 = vadd.f32 %v1707, %v1971
        %v1973 = vpop.f32.mrf.mxu0
        %1974 = vmatprep.mubr.f32.mxu0 0.0
        %1975 = vmatmul.mubr.f32.gmra.mxu0 %v1771
        %v1976 = vpop.f32.mrf.mxu0
        %v1977 = vadd.f32 %v1707, %v1976
        %v1978 = vpop.f32.mrf.mxu0
        %1979 = vmatprep.mubr.f32.mxu0 0.0
        %1980 = vmatmul.mubr.f32.gmra.mxu0 %v1774
        %v1981 = vpop.f32.mrf.mxu0
        %v1982 = vadd.f32 %v1707, %v1981
        %v1983 = vpop.f32.mrf.mxu0
        %1984 = vmatprep.mubr.f32.mxu0 0.0
        %1985 = vmatmul.mubr.f32.gmra.mxu0 %v1777
        %v1986 = vpop.f32.mrf.mxu0
        %v1987 = vadd.f32 %v1707, %v1986
        %v1988 = vpop.f32.mrf.mxu0
        %1989 = vmatprep.mubr.f32.mxu0 0.0
        %1990 = vmatmul.mubr.f32.gmra.mxu0 %v1780
        %v1991 = vpop.f32.mrf.mxu0
        %v1992 = vadd.f32 %v1707, %v1991
        %v1993 = vpop.f32.mrf.mxu0
        %1994 = vmatprep.mubr.f32.mxu0 0.0
        %1995 = vmatmul.mubr.f32.gmra.mxu0 %v1783
        %v1996 = vpop.f32.mrf.mxu0
        %v1997 = vadd.f32 %v1707, %v1996
        %v1998 = vpop.f32.mrf.mxu0
        %1999 = vmatprep.mubr.f32.mxu0 0.0
        %2000 = vmatmul.mubr.f32.gmra.mxu0 %v1786
        %v2001 = vpop.f32.mrf.mxu0
        %v2002 = vadd.f32 %v1707, %v2001
        %v2003 = vpop.f32.mrf.mxu0
        %2004 = vmatprep.mubr.f32.mxu0 0.0
        %2005 = vmatmul.mubr.f32.gmra.mxu0 %v1789
        %v2006 = vpop.f32.mrf.mxu0
        %v2007 = vadd.f32 %v1707, %v2006
        %v2008 = vpop.f32.mrf.mxu0
        %2009 = vmatprep.mubr.f32.mxu0 0.0
        %2010 = vmatmul.mubr.f32.gmra.mxu0 %v1792
        %v2011 = vpop.f32.mrf.mxu0
        %v2012 = vadd.f32 %v1707, %v2011
        %v2013 = vpop.f32.mrf.mxu0
        %2014 = vmatprep.mubr.f32.mxu0 0.0
        %2015 = vmatmul.mubr.f32.gmra.mxu0 %v1795
        %v2016 = vpop.f32.mrf.mxu0
        %v2017 = vadd.f32 %v1707, %v2016
        %v2018 = vpop.f32.mrf.mxu0
        %2019 = vmatprep.mubr.f32.mxu0 0.0
        %2020 = vmatmul.mubr.f32.gmra.mxu0 %v1798
        %v2021 = vpop.f32.mrf.mxu0
        %v2022 = vadd.f32 %v1707, %v2021
        %v2023 = vpop.f32.mrf.mxu0
        %2024 = vmatprep.mubr.f32.mxu0 0.0
        %2025 = vmatmul.mubr.f32.gmra.mxu0 %v1801
        %v2026 = vpop.f32.mrf.mxu0
        %v2027 = vadd.f32 %v1707, %v2026
        %v2028 = vpop.f32.mrf.mxu0
        %2029 = vmatprep.mubr.f32.mxu0 0.0
        %2030 = vmatmul.mubr.f32.gmra.mxu0 %v1804
        %v2031 = vpop.f32.mrf.mxu0
        %v2032 = vadd.f32 %v1707, %v2031
        %v2033 = vpop.f32.mrf.mxu0
        %2034 = vdwg.mxu0
        %v2035 = vmax.f32 %v1877, 0.0
        %v2036 = vmax.f32 %v1882, 0.0
        %v2037 = vmax.f32 %v1887, 0.0
        %v2038 = vmax.f32 %v1892, 0.0
        %v2039 = vmax.f32 %v1897, 0.0
        %v2040 = vmax.f32 %v1902, 0.0
        %v2041 = vmax.f32 %v1907, 0.0
        %v2042 = vmax.f32 %v1912, 0.0
        %v2043 = vmax.f32 %v1917, 0.0
        %v2044 = vmax.f32 %v1922, 0.0
        %v2045 = vmax.f32 %v1927, 0.0
        %v2046 = vmax.f32 %v1932, 0.0
        %v2047 = vmax.f32 %v1937, 0.0
        %v2048 = vmax.f32 %v1942, 0.0
        %v2049 = vmax.f32 %v1947, 0.0
        %v2050 = vmax.f32 %v1952, 0.0
        %v2051 = vmax.f32 %v1957, 0.0
        %v2052 = vmax.f32 %v1962, 0.0
        %v2053 = vmax.f32 %v1967, 0.0
        %v2054 = vmax.f32 %v1972, 0.0
        %v2055 = vmax.f32 %v1977, 0.0
        %v2056 = vmax.f32 %v1982, 0.0
        %v2057 = vmax.f32 %v1987, 0.0
        %v2058 = vmax.f32 %v1992, 0.0
        %v2059 = vmax.f32 %v1997, 0.0
        %v2060 = vmax.f32 %v2002, 0.0
        %v2061 = vmax.f32 %v2007, 0.0
        %v2062 = vmax.f32 %v2012, 0.0
        %v2063 = vmax.f32 %v2017, 0.0
        %v2064 = vmax.f32 %v2022, 0.0
        %v2065 = vmax.f32 %v2027, 0.0
        %v2066 = vmax.f32 %v2032, 0.0
        %v2099 = vcombine.high %v2035, %v2035
        %v2101 = vunpack.c.l.s4 1983009808
        %v2102 = vunpack.c.0.s8 %v2101
        %v2103 = vlaneseq
        %v2104 = vshrl.u32 %v2103, 7
        %v2105 = vsub.s32 %v2102, %v2104
        %v2106 = vrot.slane %v2035, %v2105
        %v2108 = vunpack.c.l.s4 1983009808
        %v2109 = vunpack.c.0.s8 %v2108
        %v2110 = vlaneseq
        %v2111 = vshrl.u32 %v2110, 7
        %v2112 = vsub.s32 %v2109, %v2111
        %v2113 = vrot.slane %v2099, %v2112
        %v2114 = vcombine.high %v2106, %v2106
        %v2115 = vcombine.high %v2113, %v2113
        %v2116 = vcombine.high %v2036, %v2036
        %v2118 = vunpack.c.l.s4 1983009808
        %v2119 = vunpack.c.0.s8 %v2118
        %v2120 = vlaneseq
        %v2121 = vshrl.u32 %v2120, 7
        %v2122 = vsub.s32 %v2119, %v2121
        %v2123 = vrot.slane %v2036, %v2122
        %v2125 = vunpack.c.l.s4 1983009808
        %v2126 = vunpack.c.0.s8 %v2125
        %v2127 = vlaneseq
        %v2128 = vshrl.u32 %v2127, 7
        %v2129 = vsub.s32 %v2126, %v2128
        %v2130 = vrot.slane %v2116, %v2129
        %v2131 = vcombine.high %v2123, %v2123
        %v2132 = vcombine.high %v2130, %v2130
        %v2133 = vcombine.high %v2037, %v2037
        %v2135 = vunpack.c.l.s4 1983009808
        %v2136 = vunpack.c.0.s8 %v2135
        %v2137 = vlaneseq
        %v2138 = vshrl.u32 %v2137, 7
        %v2139 = vsub.s32 %v2136, %v2138
        %v2140 = vrot.slane %v2037, %v2139
        %v2142 = vunpack.c.l.s4 1983009808
        %v2143 = vunpack.c.0.s8 %v2142
        %v2144 = vlaneseq
        %v2145 = vshrl.u32 %v2144, 7
        %v2146 = vsub.s32 %v2143, %v2145
        %v2147 = vrot.slane %v2133, %v2146
        %v2148 = vcombine.high %v2140, %v2140
        %v2149 = vcombine.high %v2147, %v2147
        %v2150 = vcombine.high %v2038, %v2038
        %v2152 = vunpack.c.l.s4 1983009808
        %v2153 = vunpack.c.0.s8 %v2152
        %v2154 = vlaneseq
        %v2155 = vshrl.u32 %v2154, 7
        %v2156 = vsub.s32 %v2153, %v2155
        %v2157 = vrot.slane %v2038, %v2156
        %v2159 = vunpack.c.l.s4 1983009808
        %v2160 = vunpack.c.0.s8 %v2159
        %v2161 = vlaneseq
        %v2162 = vshrl.u32 %v2161, 7
        %v2163 = vsub.s32 %v2160, %v2162
        %v2164 = vrot.slane %v2150, %v2163
        %v2165 = vcombine.high %v2157, %v2157
        %v2166 = vcombine.high %v2164, %v2164
        %v2167 = vcombine.high %v2039, %v2039
        %v2169 = vunpack.c.l.s4 1983009808
        %v2170 = vunpack.c.0.s8 %v2169
        %v2171 = vlaneseq
        %v2172 = vshrl.u32 %v2171, 7
        %v2173 = vsub.s32 %v2170, %v2172
        %v2174 = vrot.slane %v2039, %v2173
        %v2176 = vunpack.c.l.s4 1983009808
        %v2177 = vunpack.c.0.s8 %v2176
        %v2178 = vlaneseq
        %v2179 = vshrl.u32 %v2178, 7
        %v2180 = vsub.s32 %v2177, %v2179
        %v2181 = vrot.slane %v2167, %v2180
        %v2182 = vcombine.high %v2174, %v2174
        %v2183 = vcombine.high %v2181, %v2181
        %v2184 = vcombine.high %v2040, %v2040
        %v2186 = vunpack.c.l.s4 1983009808
        %v2187 = vunpack.c.0.s8 %v2186
        %v2188 = vlaneseq
        %v2189 = vshrl.u32 %v2188, 7
        %v2190 = vsub.s32 %v2187, %v2189
        %v2191 = vrot.slane %v2040, %v2190
        %v2193 = vunpack.c.l.s4 1983009808
        %v2194 = vunpack.c.0.s8 %v2193
        %v2195 = vlaneseq
        %v2196 = vshrl.u32 %v2195, 7
        %v2197 = vsub.s32 %v2194, %v2196
        %v2198 = vrot.slane %v2184, %v2197
        %v2199 = vcombine.high %v2191, %v2191
        %v2200 = vcombine.high %v2198, %v2198
        %v2201 = vcombine.high %v2041, %v2041
        %v2203 = vunpack.c.l.s4 1983009808
        %v2204 = vunpack.c.0.s8 %v2203
        %v2205 = vlaneseq
        %v2206 = vshrl.u32 %v2205, 7
        %v2207 = vsub.s32 %v2204, %v2206
        %v2208 = vrot.slane %v2041, %v2207
        %v2210 = vunpack.c.l.s4 1983009808
        %v2211 = vunpack.c.0.s8 %v2210
        %v2212 = vlaneseq
        %v2213 = vshrl.u32 %v2212, 7
        %v2214 = vsub.s32 %v2211, %v2213
        %v2215 = vrot.slane %v2201, %v2214
        %v2216 = vcombine.high %v2208, %v2208
        %v2217 = vcombine.high %v2215, %v2215
        %v2218 = vcombine.high %v2042, %v2042
        %v2220 = vunpack.c.l.s4 1983009808
        %v2221 = vunpack.c.0.s8 %v2220
        %v2222 = vlaneseq
        %v2223 = vshrl.u32 %v2222, 7
        %v2224 = vsub.s32 %v2221, %v2223
        %v2225 = vrot.slane %v2042, %v2224
        %v2227 = vunpack.c.l.s4 1983009808
        %v2228 = vunpack.c.0.s8 %v2227
        %v2229 = vlaneseq
        %v2230 = vshrl.u32 %v2229, 7
        %v2231 = vsub.s32 %v2228, %v2230
        %v2232 = vrot.slane %v2218, %v2231
        %v2233 = vcombine.high %v2225, %v2225
        %v2234 = vcombine.high %v2232, %v2232
        %v2235 = vcombine.high %v2043, %v2043
        %v2237 = vunpack.c.l.s4 1983009808
        %v2238 = vunpack.c.0.s8 %v2237
        %v2239 = vlaneseq
        %v2240 = vshrl.u32 %v2239, 7
        %v2241 = vsub.s32 %v2238, %v2240
        %v2242 = vrot.slane %v2043, %v2241
        %v2244 = vunpack.c.l.s4 1983009808
        %v2245 = vunpack.c.0.s8 %v2244
        %v2246 = vlaneseq
        %v2247 = vshrl.u32 %v2246, 7
        %v2248 = vsub.s32 %v2245, %v2247
        %v2249 = vrot.slane %v2235, %v2248
        %v2250 = vcombine.high %v2242, %v2242
        %v2251 = vcombine.high %v2249, %v2249
        %v2252 = vcombine.high %v2044, %v2044
        %v2254 = vunpack.c.l.s4 1983009808
        %v2255 = vunpack.c.0.s8 %v2254
        %v2256 = vlaneseq
        %v2257 = vshrl.u32 %v2256, 7
        %v2258 = vsub.s32 %v2255, %v2257
        %v2259 = vrot.slane %v2044, %v2258
        %v2261 = vunpack.c.l.s4 1983009808
        %v2262 = vunpack.c.0.s8 %v2261
        %v2263 = vlaneseq
        %v2264 = vshrl.u32 %v2263, 7
        %v2265 = vsub.s32 %v2262, %v2264
        %v2266 = vrot.slane %v2252, %v2265
        %v2267 = vcombine.high %v2259, %v2259
        %v2268 = vcombine.high %v2266, %v2266
        %v2269 = vcombine.high %v2045, %v2045
        %v2271 = vunpack.c.l.s4 1983009808
        %v2272 = vunpack.c.0.s8 %v2271
        %v2273 = vlaneseq
        %v2274 = vshrl.u32 %v2273, 7
        %v2275 = vsub.s32 %v2272, %v2274
        %v2276 = vrot.slane %v2045, %v2275
        %v2278 = vunpack.c.l.s4 1983009808
        %v2279 = vunpack.c.0.s8 %v2278
        %v2280 = vlaneseq
        %v2281 = vshrl.u32 %v2280, 7
        %v2282 = vsub.s32 %v2279, %v2281
        %v2283 = vrot.slane %v2269, %v2282
        %v2284 = vcombine.high %v2276, %v2276
        %v2285 = vcombine.high %v2283, %v2283
        %v2286 = vcombine.high %v2046, %v2046
        %v2288 = vunpack.c.l.s4 1983009808
        %v2289 = vunpack.c.0.s8 %v2288
        %v2290 = vlaneseq
        %v2291 = vshrl.u32 %v2290, 7
        %v2292 = vsub.s32 %v2289, %v2291
        %v2293 = vrot.slane %v2046, %v2292
        %v2295 = vunpack.c.l.s4 1983009808
        %v2296 = vunpack.c.0.s8 %v2295
        %v2297 = vlaneseq
        %v2298 = vshrl.u32 %v2297, 7
        %v2299 = vsub.s32 %v2296, %v2298
        %v2300 = vrot.slane %v2286, %v2299
        %v2301 = vcombine.high %v2293, %v2293
        %v2302 = vcombine.high %v2300, %v2300
        %v2303 = vcombine.high %v2047, %v2047
        %v2305 = vunpack.c.l.s4 1983009808
        %v2306 = vunpack.c.0.s8 %v2305
        %v2307 = vlaneseq
        %v2308 = vshrl.u32 %v2307, 7
        %v2309 = vsub.s32 %v2306, %v2308
        %v2310 = vrot.slane %v2047, %v2309
        %v2312 = vunpack.c.l.s4 1983009808
        %v2313 = vunpack.c.0.s8 %v2312
        %v2314 = vlaneseq
        %v2315 = vshrl.u32 %v2314, 7
        %v2316 = vsub.s32 %v2313, %v2315
        %v2317 = vrot.slane %v2303, %v2316
        %v2318 = vcombine.high %v2310, %v2310
        %v2319 = vcombine.high %v2317, %v2317
        %v2320 = vcombine.high %v2048, %v2048
        %v2322 = vunpack.c.l.s4 1983009808
        %v2323 = vunpack.c.0.s8 %v2322
        %v2324 = vlaneseq
        %v2325 = vshrl.u32 %v2324, 7
        %v2326 = vsub.s32 %v2323, %v2325
        %v2327 = vrot.slane %v2048, %v2326
        %v2329 = vunpack.c.l.s4 1983009808
        %v2330 = vunpack.c.0.s8 %v2329
        %v2331 = vlaneseq
        %v2332 = vshrl.u32 %v2331, 7
        %v2333 = vsub.s32 %v2330, %v2332
        %v2334 = vrot.slane %v2320, %v2333
        %v2335 = vcombine.high %v2327, %v2327
        %v2336 = vcombine.high %v2334, %v2334
        %v2337 = vcombine.high %v2049, %v2049
        %v2339 = vunpack.c.l.s4 1983009808
        %v2340 = vunpack.c.0.s8 %v2339
        %v2341 = vlaneseq
        %v2342 = vshrl.u32 %v2341, 7
        %v2343 = vsub.s32 %v2340, %v2342
        %v2344 = vrot.slane %v2049, %v2343
        %v2346 = vunpack.c.l.s4 1983009808
        %v2347 = vunpack.c.0.s8 %v2346
        %v2348 = vlaneseq
        %v2349 = vshrl.u32 %v2348, 7
        %v2350 = vsub.s32 %v2347, %v2349
        %v2351 = vrot.slane %v2337, %v2350
        %v2352 = vcombine.high %v2344, %v2344
        %v2353 = vcombine.high %v2351, %v2351
        %v2354 = vcombine.high %v2050, %v2050
        %v2356 = vunpack.c.l.s4 1983009808
        %v2357 = vunpack.c.0.s8 %v2356
        %v2358 = vlaneseq
        %v2359 = vshrl.u32 %v2358, 7
        %v2360 = vsub.s32 %v2357, %v2359
        %v2361 = vrot.slane %v2050, %v2360
        %v2363 = vunpack.c.l.s4 1983009808
        %v2364 = vunpack.c.0.s8 %v2363
        %v2365 = vlaneseq
        %v2366 = vshrl.u32 %v2365, 7
        %v2367 = vsub.s32 %v2364, %v2366
        %v2368 = vrot.slane %v2354, %v2367
        %v2369 = vcombine.high %v2361, %v2361
        %v2370 = vcombine.high %v2368, %v2368
        %v2371 = vcombine.high %v2051, %v2051
        %v2373 = vunpack.c.l.s4 1983009808
        %v2374 = vunpack.c.0.s8 %v2373
        %v2375 = vlaneseq
        %v2376 = vshrl.u32 %v2375, 7
        %v2377 = vsub.s32 %v2374, %v2376
        %v2378 = vrot.slane %v2051, %v2377
        %v2380 = vunpack.c.l.s4 1983009808
        %v2381 = vunpack.c.0.s8 %v2380
        %v2382 = vlaneseq
        %v2383 = vshrl.u32 %v2382, 7
        %v2384 = vsub.s32 %v2381, %v2383
        %v2385 = vrot.slane %v2371, %v2384
        %v2386 = vcombine.high %v2378, %v2378
        %v2387 = vcombine.high %v2385, %v2385
        %v2388 = vcombine.high %v2052, %v2052
        %v2390 = vunpack.c.l.s4 1983009808
        %v2391 = vunpack.c.0.s8 %v2390
        %v2392 = vlaneseq
        %v2393 = vshrl.u32 %v2392, 7
        %v2394 = vsub.s32 %v2391, %v2393
        %v2395 = vrot.slane %v2052, %v2394
        %v2397 = vunpack.c.l.s4 1983009808
        %v2398 = vunpack.c.0.s8 %v2397
        %v2399 = vlaneseq
        %v2400 = vshrl.u32 %v2399, 7
        %v2401 = vsub.s32 %v2398, %v2400
        %v2402 = vrot.slane %v2388, %v2401
        %v2403 = vcombine.high %v2395, %v2395
        %v2404 = vcombine.high %v2402, %v2402
        %v2405 = vcombine.high %v2053, %v2053
        %v2407 = vunpack.c.l.s4 1983009808
        %v2408 = vunpack.c.0.s8 %v2407
        %v2409 = vlaneseq
        %v2410 = vshrl.u32 %v2409, 7
        %v2411 = vsub.s32 %v2408, %v2410
        %v2412 = vrot.slane %v2053, %v2411
        %v2414 = vunpack.c.l.s4 1983009808
        %v2415 = vunpack.c.0.s8 %v2414
        %v2416 = vlaneseq
        %v2417 = vshrl.u32 %v2416, 7
        %v2418 = vsub.s32 %v2415, %v2417
        %v2419 = vrot.slane %v2405, %v2418
        %v2420 = vcombine.high %v2412, %v2412
        %v2421 = vcombine.high %v2419, %v2419
        %v2422 = vcombine.high %v2054, %v2054
        %v2424 = vunpack.c.l.s4 1983009808
        %v2425 = vunpack.c.0.s8 %v2424
        %v2426 = vlaneseq
        %v2427 = vshrl.u32 %v2426, 7
        %v2428 = vsub.s32 %v2425, %v2427
        %v2429 = vrot.slane %v2054, %v2428
        %v2431 = vunpack.c.l.s4 1983009808
        %v2432 = vunpack.c.0.s8 %v2431
        %v2433 = vlaneseq
        %v2434 = vshrl.u32 %v2433, 7
        %v2435 = vsub.s32 %v2432, %v2434
        %v2436 = vrot.slane %v2422, %v2435
        %v2437 = vcombine.high %v2429, %v2429
        %v2438 = vcombine.high %v2436, %v2436
        %v2439 = vcombine.high %v2055, %v2055
        %v2441 = vunpack.c.l.s4 1983009808
        %v2442 = vunpack.c.0.s8 %v2441
        %v2443 = vlaneseq
        %v2444 = vshrl.u32 %v2443, 7
        %v2445 = vsub.s32 %v2442, %v2444
        %v2446 = vrot.slane %v2055, %v2445
        %v2448 = vunpack.c.l.s4 1983009808
        %v2449 = vunpack.c.0.s8 %v2448
        %v2450 = vlaneseq
        %v2451 = vshrl.u32 %v2450, 7
        %v2452 = vsub.s32 %v2449, %v2451
        %v2453 = vrot.slane %v2439, %v2452
        %v2454 = vcombine.high %v2446, %v2446
        %v2455 = vcombine.high %v2453, %v2453
        %v2456 = vcombine.high %v2056, %v2056
        %v2458 = vunpack.c.l.s4 1983009808
        %v2459 = vunpack.c.0.s8 %v2458
        %v2460 = vlaneseq
        %v2461 = vshrl.u32 %v2460, 7
        %v2462 = vsub.s32 %v2459, %v2461
        %v2463 = vrot.slane %v2056, %v2462
        %v2465 = vunpack.c.l.s4 1983009808
        %v2466 = vunpack.c.0.s8 %v2465
        %v2467 = vlaneseq
        %v2468 = vshrl.u32 %v2467, 7
        %v2469 = vsub.s32 %v2466, %v2468
        %v2470 = vrot.slane %v2456, %v2469
        %v2471 = vcombine.high %v2463, %v2463
        %v2472 = vcombine.high %v2470, %v2470
        %v2473 = vcombine.high %v2057, %v2057
        %v2475 = vunpack.c.l.s4 1983009808
        %v2476 = vunpack.c.0.s8 %v2475
        %v2477 = vlaneseq
        %v2478 = vshrl.u32 %v2477, 7
        %v2479 = vsub.s32 %v2476, %v2478
        %v2480 = vrot.slane %v2057, %v2479
        %v2482 = vunpack.c.l.s4 1983009808
        %v2483 = vunpack.c.0.s8 %v2482
        %v2484 = vlaneseq
        %v2485 = vshrl.u32 %v2484, 7
        %v2486 = vsub.s32 %v2483, %v2485
        %v2487 = vrot.slane %v2473, %v2486
        %v2488 = vcombine.high %v2480, %v2480
        %v2489 = vcombine.high %v2487, %v2487
        %v2490 = vcombine.high %v2058, %v2058
        %v2492 = vunpack.c.l.s4 1983009808
        %v2493 = vunpack.c.0.s8 %v2492
        %v2494 = vlaneseq
        %v2495 = vshrl.u32 %v2494, 7
        %v2496 = vsub.s32 %v2493, %v2495
        %v2497 = vrot.slane %v2058, %v2496
        %v2499 = vunpack.c.l.s4 1983009808
        %v2500 = vunpack.c.0.s8 %v2499
        %v2501 = vlaneseq
        %v2502 = vshrl.u32 %v2501, 7
        %v2503 = vsub.s32 %v2500, %v2502
        %v2504 = vrot.slane %v2490, %v2503
        %v2505 = vcombine.high %v2497, %v2497
        %v2506 = vcombine.high %v2504, %v2504
        %v2507 = vcombine.high %v2059, %v2059
        %v2509 = vunpack.c.l.s4 1983009808
        %v2510 = vunpack.c.0.s8 %v2509
        %v2511 = vlaneseq
        %v2512 = vshrl.u32 %v2511, 7
        %v2513 = vsub.s32 %v2510, %v2512
        %v2514 = vrot.slane %v2059, %v2513
        %v2516 = vunpack.c.l.s4 1983009808
        %v2517 = vunpack.c.0.s8 %v2516
        %v2518 = vlaneseq
        %v2519 = vshrl.u32 %v2518, 7
        %v2520 = vsub.s32 %v2517, %v2519
        %v2521 = vrot.slane %v2507, %v2520
        %v2522 = vcombine.high %v2514, %v2514
        %v2523 = vcombine.high %v2521, %v2521
        %v2524 = vcombine.high %v2060, %v2060
        %v2526 = vunpack.c.l.s4 1983009808
        %v2527 = vunpack.c.0.s8 %v2526
        %v2528 = vlaneseq
        %v2529 = vshrl.u32 %v2528, 7
        %v2530 = vsub.s32 %v2527, %v2529
        %v2531 = vrot.slane %v2060, %v2530
        %v2533 = vunpack.c.l.s4 1983009808
        %v2534 = vunpack.c.0.s8 %v2533
        %v2535 = vlaneseq
        %v2536 = vshrl.u32 %v2535, 7
        %v2537 = vsub.s32 %v2534, %v2536
        %v2538 = vrot.slane %v2524, %v2537
        %v2539 = vcombine.high %v2531, %v2531
        %v2540 = vcombine.high %v2538, %v2538
        %v2541 = vcombine.high %v2061, %v2061
        %v2543 = vunpack.c.l.s4 1983009808
        %v2544 = vunpack.c.0.s8 %v2543
        %v2545 = vlaneseq
        %v2546 = vshrl.u32 %v2545, 7
        %v2547 = vsub.s32 %v2544, %v2546
        %v2548 = vrot.slane %v2061, %v2547
        %v2550 = vunpack.c.l.s4 1983009808
        %v2551 = vunpack.c.0.s8 %v2550
        %v2552 = vlaneseq
        %v2553 = vshrl.u32 %v2552, 7
        %v2554 = vsub.s32 %v2551, %v2553
        %v2555 = vrot.slane %v2541, %v2554
        %v2556 = vcombine.high %v2548, %v2548
        %v2557 = vcombine.high %v2555, %v2555
        %v2558 = vcombine.high %v2062, %v2062
        %v2560 = vunpack.c.l.s4 1983009808
        %v2561 = vunpack.c.0.s8 %v2560
        %v2562 = vlaneseq
        %v2563 = vshrl.u32 %v2562, 7
        %v2564 = vsub.s32 %v2561, %v2563
        %v2565 = vrot.slane %v2062, %v2564
        %v2567 = vunpack.c.l.s4 1983009808
        %v2568 = vunpack.c.0.s8 %v2567
        %v2569 = vlaneseq
        %v2570 = vshrl.u32 %v2569, 7
        %v2571 = vsub.s32 %v2568, %v2570
        %v2572 = vrot.slane %v2558, %v2571
        %v2573 = vcombine.high %v2565, %v2565
        %v2574 = vcombine.high %v2572, %v2572
        %v2575 = vcombine.high %v2063, %v2063
        %v2577 = vunpack.c.l.s4 1983009808
        %v2578 = vunpack.c.0.s8 %v2577
        %v2579 = vlaneseq
        %v2580 = vshrl.u32 %v2579, 7
        %v2581 = vsub.s32 %v2578, %v2580
        %v2582 = vrot.slane %v2063, %v2581
        %v2584 = vunpack.c.l.s4 1983009808
        %v2585 = vunpack.c.0.s8 %v2584
        %v2586 = vlaneseq
        %v2587 = vshrl.u32 %v2586, 7
        %v2588 = vsub.s32 %v2585, %v2587
        %v2589 = vrot.slane %v2575, %v2588
        %v2590 = vcombine.high %v2582, %v2582
        %v2591 = vcombine.high %v2589, %v2589
        %v2592 = vcombine.high %v2064, %v2064
        %v2594 = vunpack.c.l.s4 1983009808
        %v2595 = vunpack.c.0.s8 %v2594
        %v2596 = vlaneseq
        %v2597 = vshrl.u32 %v2596, 7
        %v2598 = vsub.s32 %v2595, %v2597
        %v2599 = vrot.slane %v2064, %v2598
        %v2601 = vunpack.c.l.s4 1983009808
        %v2602 = vunpack.c.0.s8 %v2601
        %v2603 = vlaneseq
        %v2604 = vshrl.u32 %v2603, 7
        %v2605 = vsub.s32 %v2602, %v2604
        %v2606 = vrot.slane %v2592, %v2605
        %v2607 = vcombine.high %v2599, %v2599
        %v2608 = vcombine.high %v2606, %v2606
        %v2609 = vcombine.high %v2065, %v2065
        %v2611 = vunpack.c.l.s4 1983009808
        %v2612 = vunpack.c.0.s8 %v2611
        %v2613 = vlaneseq
        %v2614 = vshrl.u32 %v2613, 7
        %v2615 = vsub.s32 %v2612, %v2614
        %v2616 = vrot.slane %v2065, %v2615
        %v2618 = vunpack.c.l.s4 1983009808
        %v2619 = vunpack.c.0.s8 %v2618
        %v2620 = vlaneseq
        %v2621 = vshrl.u32 %v2620, 7
        %v2622 = vsub.s32 %v2619, %v2621
        %v2623 = vrot.slane %v2609, %v2622
        %v2624 = vcombine.high %v2616, %v2616
        %v2625 = vcombine.high %v2623, %v2623
        %v2626 = vcombine.high %v2066, %v2066
        %v2628 = vunpack.c.l.s4 1983009808
        %v2629 = vunpack.c.0.s8 %v2628
        %v2630 = vlaneseq
        %v2631 = vshrl.u32 %v2630, 7
        %v2632 = vsub.s32 %v2629, %v2631
        %v2633 = vrot.slane %v2066, %v2632
        %v2635 = vunpack.c.l.s4 1983009808
        %v2636 = vunpack.c.0.s8 %v2635
        %v2637 = vlaneseq
        %v2638 = vshrl.u32 %v2637, 7
        %v2639 = vsub.s32 %v2636, %v2638
        %v2640 = vrot.slane %v2626, %v2639
        %v2641 = vcombine.high %v2633, %v2633
        %v2642 = vcombine.high %v2640, %v2640
        %vm2771 = vcmask 123904
        %v2772 = vsel %vm2771, %v2106, -inf
        %v2773 = vsel %vm2771, %v2140, -inf
        %v2774 = vmax.f32 %v2772, %v2773
        %v2775 = vrot.slane %v2774, 4
        %v2776 = vmax.f32 %v2774, %v2775
        %v2777 = vrot.slane %v2776, 2
        %v2778 = vmax.f32 %v2776, %v2777
        %v2779 = vrot.slane %v2778, 1
        %v2780 = vmax.f32 %v2778, %v2779
        %v2781 = vsel %vm2771, %v2114, -inf
        %v2782 = vsel %vm2771, %v2148, -inf
        %v2783 = vmax.f32 %v2781, %v2782
        %v2784 = vrot.slane %v2783, 4
        %v2785 = vmax.f32 %v2783, %v2784
        %v2786 = vrot.slane %v2785, 2
        %v2787 = vmax.f32 %v2785, %v2786
        %v2788 = vrot.slane %v2787, 1
        %v2789 = vmax.f32 %v2787, %v2788
        %v2790 = vsel %vm2771, %v2113, -inf
        %v2791 = vsel %vm2771, %v2147, -inf
        %v2792 = vmax.f32 %v2790, %v2791
        %v2793 = vrot.slane %v2792, 4
        %v2794 = vmax.f32 %v2792, %v2793
        %v2795 = vrot.slane %v2794, 2
        %v2796 = vmax.f32 %v2794, %v2795
        %v2797 = vrot.slane %v2796, 1
        %v2798 = vmax.f32 %v2796, %v2797
        %v2799 = vsel %vm2771, %v2115, -inf
        %v2800 = vsel %vm2771, %v2149, -inf
        %v2801 = vmax.f32 %v2799, %v2800
        %v2802 = vrot.slane %v2801, 4
        %v2803 = vmax.f32 %v2801, %v2802
        %v2804 = vrot.slane %v2803, 2
        %v2805 = vmax.f32 %v2803, %v2804
        %v2806 = vrot.slane %v2805, 1
        %v2807 = vmax.f32 %v2805, %v2806
        %v2808 = vsel %vm2771, %v2123, -inf
        %v2809 = vsel %vm2771, %v2157, -inf
        %v2810 = vmax.f32 %v2808, %v2809
        %v2811 = vrot.slane %v2810, 4
        %v2812 = vmax.f32 %v2810, %v2811
        %v2813 = vrot.slane %v2812, 2
        %v2814 = vmax.f32 %v2812, %v2813
        %v2815 = vrot.slane %v2814, 1
        %v2816 = vmax.f32 %v2814, %v2815
        %v2817 = vsel %vm2771, %v2131, -inf
        %v2818 = vsel %vm2771, %v2165, -inf
        %v2819 = vmax.f32 %v2817, %v2818
        %v2820 = vrot.slane %v2819, 4
        %v2821 = vmax.f32 %v2819, %v2820
        %v2822 = vrot.slane %v2821, 2
        %v2823 = vmax.f32 %v2821, %v2822
        %v2824 = vrot.slane %v2823, 1
        %v2825 = vmax.f32 %v2823, %v2824
        %v2826 = vsel %vm2771, %v2130, -inf
        %v2827 = vsel %vm2771, %v2164, -inf
        %v2828 = vmax.f32 %v2826, %v2827
        %v2829 = vrot.slane %v2828, 4
        %v2830 = vmax.f32 %v2828, %v2829
        %v2831 = vrot.slane %v2830, 2
        %v2832 = vmax.f32 %v2830, %v2831
        %v2833 = vrot.slane %v2832, 1
        %v2834 = vmax.f32 %v2832, %v2833
        %v2835 = vsel %vm2771, %v2132, -inf
        %v2836 = vsel %vm2771, %v2166, -inf
        %v2837 = vmax.f32 %v2835, %v2836
        %v2838 = vrot.slane %v2837, 4
        %v2839 = vmax.f32 %v2837, %v2838
        %v2840 = vrot.slane %v2839, 2
        %v2841 = vmax.f32 %v2839, %v2840
        %v2842 = vrot.slane %v2841, 1
        %v2843 = vmax.f32 %v2841, %v2842
        %v2844 = vsel %vm2771, %v2174, -inf
        %v2845 = vsel %vm2771, %v2208, -inf
        %v2846 = vmax.f32 %v2844, %v2845
        %v2847 = vrot.slane %v2846, 4
        %v2848 = vmax.f32 %v2846, %v2847
        %v2849 = vrot.slane %v2848, 2
        %v2850 = vmax.f32 %v2848, %v2849
        %v2851 = vrot.slane %v2850, 1
        %v2852 = vmax.f32 %v2850, %v2851
        %v2853 = vsel %vm2771, %v2182, -inf
        %v2854 = vsel %vm2771, %v2216, -inf
        %v2855 = vmax.f32 %v2853, %v2854
        %v2856 = vrot.slane %v2855, 4
        %v2857 = vmax.f32 %v2855, %v2856
        %v2858 = vrot.slane %v2857, 2
        %v2859 = vmax.f32 %v2857, %v2858
        %v2860 = vrot.slane %v2859, 1
        %v2861 = vmax.f32 %v2859, %v2860
        %v2862 = vsel %vm2771, %v2181, -inf
        %v2863 = vsel %vm2771, %v2215, -inf
        %v2864 = vmax.f32 %v2862, %v2863
        %v2865 = vrot.slane %v2864, 4
        %v2866 = vmax.f32 %v2864, %v2865
        %v2867 = vrot.slane %v2866, 2
        %v2868 = vmax.f32 %v2866, %v2867
        %v2869 = vrot.slane %v2868, 1
        %v2870 = vmax.f32 %v2868, %v2869
        %v2871 = vsel %vm2771, %v2183, -inf
        %v2872 = vsel %vm2771, %v2217, -inf
        %v2873 = vmax.f32 %v2871, %v2872
        %v2874 = vrot.slane %v2873, 4
        %v2875 = vmax.f32 %v2873, %v2874
        %v2876 = vrot.slane %v2875, 2
        %v2877 = vmax.f32 %v2875, %v2876
        %v2878 = vrot.slane %v2877, 1
        %v2879 = vmax.f32 %v2877, %v2878
        %v2880 = vsel %vm2771, %v2191, -inf
        %v2881 = vsel %vm2771, %v2225, -inf
        %v2882 = vmax.f32 %v2880, %v2881
        %v2883 = vrot.slane %v2882, 4
        %v2884 = vmax.f32 %v2882, %v2883
        %v2885 = vrot.slane %v2884, 2
        %v2886 = vmax.f32 %v2884, %v2885
        %v2887 = vrot.slane %v2886, 1
        %v2888 = vmax.f32 %v2886, %v2887
        %v2889 = vsel %vm2771, %v2199, -inf
        %v2890 = vsel %vm2771, %v2233, -inf
        %v2891 = vmax.f32 %v2889, %v2890
        %v2892 = vrot.slane %v2891, 4
        %v2893 = vmax.f32 %v2891, %v2892
        %v2894 = vrot.slane %v2893, 2
        %v2895 = vmax.f32 %v2893, %v2894
        %v2896 = vrot.slane %v2895, 1
        %v2897 = vmax.f32 %v2895, %v2896
        %v2898 = vsel %vm2771, %v2198, -inf
        %v2899 = vsel %vm2771, %v2232, -inf
        %v2900 = vmax.f32 %v2898, %v2899
        %v2901 = vrot.slane %v2900, 4
        %v2902 = vmax.f32 %v2900, %v2901
        %v2903 = vrot.slane %v2902, 2
        %v2904 = vmax.f32 %v2902, %v2903
        %v2905 = vrot.slane %v2904, 1
        %v2906 = vmax.f32 %v2904, %v2905
        %v2907 = vsel %vm2771, %v2200, -inf
        %v2908 = vsel %vm2771, %v2234, -inf
        %v2909 = vmax.f32 %v2907, %v2908
        %v2910 = vrot.slane %v2909, 4
        %v2911 = vmax.f32 %v2909, %v2910
        %v2912 = vrot.slane %v2911, 2
        %v2913 = vmax.f32 %v2911, %v2912
        %v2914 = vrot.slane %v2913, 1
        %v2915 = vmax.f32 %v2913, %v2914
        %v2916 = vsel %vm2771, %v2242, -inf
        %v2917 = vsel %vm2771, %v2276, -inf
        %v2918 = vmax.f32 %v2916, %v2917
        %v2919 = vrot.slane %v2918, 4
        %v2920 = vmax.f32 %v2918, %v2919
        %v2921 = vrot.slane %v2920, 2
        %v2922 = vmax.f32 %v2920, %v2921
        %v2923 = vrot.slane %v2922, 1
        %v2924 = vmax.f32 %v2922, %v2923
        %v2925 = vsel %vm2771, %v2250, -inf
        %v2926 = vsel %vm2771, %v2284, -inf
        %v2927 = vmax.f32 %v2925, %v2926
        %v2928 = vrot.slane %v2927, 4
        %v2929 = vmax.f32 %v2927, %v2928
        %v2930 = vrot.slane %v2929, 2
        %v2931 = vmax.f32 %v2929, %v2930
        %v2932 = vrot.slane %v2931, 1
        %v2933 = vmax.f32 %v2931, %v2932
        %v2934 = vsel %vm2771, %v2249, -inf
        %v2935 = vsel %vm2771, %v2283, -inf
        %v2936 = vmax.f32 %v2934, %v2935
        %v2937 = vrot.slane %v2936, 4
        %v2938 = vmax.f32 %v2936, %v2937
        %v2939 = vrot.slane %v2938, 2
        %v2940 = vmax.f32 %v2938, %v2939
        %v2941 = vrot.slane %v2940, 1
        %v2942 = vmax.f32 %v2940, %v2941
        %v2943 = vsel %vm2771, %v2251, -inf
        %v2944 = vsel %vm2771, %v2285, -inf
        %v2945 = vmax.f32 %v2943, %v2944
        %v2946 = vrot.slane %v2945, 4
        %v2947 = vmax.f32 %v2945, %v2946
        %v2948 = vrot.slane %v2947, 2
        %v2949 = vmax.f32 %v2947, %v2948
        %v2950 = vrot.slane %v2949, 1
        %v2951 = vmax.f32 %v2949, %v2950
        %v2952 = vsel %vm2771, %v2259, -inf
        %v2953 = vsel %vm2771, %v2293, -inf
        %v2954 = vmax.f32 %v2952, %v2953
        %v2955 = vrot.slane %v2954, 4
        %v2956 = vmax.f32 %v2954, %v2955
        %v2957 = vrot.slane %v2956, 2
        %v2958 = vmax.f32 %v2956, %v2957
        %v2959 = vrot.slane %v2958, 1
        %v2960 = vmax.f32 %v2958, %v2959
        %v2961 = vsel %vm2771, %v2267, -inf
        %v2962 = vsel %vm2771, %v2301, -inf
        %v2963 = vmax.f32 %v2961, %v2962
        %v2964 = vrot.slane %v2963, 4
        %v2965 = vmax.f32 %v2963, %v2964
        %v2966 = vrot.slane %v2965, 2
        %v2967 = vmax.f32 %v2965, %v2966
        %v2968 = vrot.slane %v2967, 1
        %v2969 = vmax.f32 %v2967, %v2968
        %v2970 = vsel %vm2771, %v2266, -inf
        %v2971 = vsel %vm2771, %v2300, -inf
        %v2972 = vmax.f32 %v2970, %v2971
        %v2973 = vrot.slane %v2972, 4
        %v2974 = vmax.f32 %v2972, %v2973
        %v2975 = vrot.slane %v2974, 2
        %v2976 = vmax.f32 %v2974, %v2975
        %v2977 = vrot.slane %v2976, 1
        %v2978 = vmax.f32 %v2976, %v2977
        %v2979 = vsel %vm2771, %v2268, -inf
        %v2980 = vsel %vm2771, %v2302, -inf
        %v2981 = vmax.f32 %v2979, %v2980
        %v2982 = vrot.slane %v2981, 4
        %v2983 = vmax.f32 %v2981, %v2982
        %v2984 = vrot.slane %v2983, 2
        %v2985 = vmax.f32 %v2983, %v2984
        %v2986 = vrot.slane %v2985, 1
        %v2987 = vmax.f32 %v2985, %v2986
        %v2988 = vsel %vm2771, %v2310, -inf
        %v2989 = vsel %vm2771, %v2344, -inf
        %v2990 = vmax.f32 %v2988, %v2989
        %v2991 = vrot.slane %v2990, 4
        %v2992 = vmax.f32 %v2990, %v2991
        %v2993 = vrot.slane %v2992, 2
        %v2994 = vmax.f32 %v2992, %v2993
        %v2995 = vrot.slane %v2994, 1
        %v2996 = vmax.f32 %v2994, %v2995
        %v2997 = vsel %vm2771, %v2318, -inf
        %v2998 = vsel %vm2771, %v2352, -inf
        %v2999 = vmax.f32 %v2997, %v2998
        %v3000 = vrot.slane %v2999, 4
        %v3001 = vmax.f32 %v2999, %v3000
        %v3002 = vrot.slane %v3001, 2
        %v3003 = vmax.f32 %v3001, %v3002
        %v3004 = vrot.slane %v3003, 1
        %v3005 = vmax.f32 %v3003, %v3004
        %v3006 = vsel %vm2771, %v2317, -inf
        %v3007 = vsel %vm2771, %v2351, -inf
        %v3008 = vmax.f32 %v3006, %v3007
        %v3009 = vrot.slane %v3008, 4
        %v3010 = vmax.f32 %v3008, %v3009
        %v3011 = vrot.slane %v3010, 2
        %v3012 = vmax.f32 %v3010, %v3011
        %v3013 = vrot.slane %v3012, 1
        %v3014 = vmax.f32 %v3012, %v3013
        %v3015 = vsel %vm2771, %v2319, -inf
        %v3016 = vsel %vm2771, %v2353, -inf
        %v3017 = vmax.f32 %v3015, %v3016
        %v3018 = vrot.slane %v3017, 4
        %v3019 = vmax.f32 %v3017, %v3018
        %v3020 = vrot.slane %v3019, 2
        %v3021 = vmax.f32 %v3019, %v3020
        %v3022 = vrot.slane %v3021, 1
        %v3023 = vmax.f32 %v3021, %v3022
        %v3024 = vsel %vm2771, %v2327, -inf
        %v3025 = vsel %vm2771, %v2361, -inf
        %v3026 = vmax.f32 %v3024, %v3025
        %v3027 = vrot.slane %v3026, 4
        %v3028 = vmax.f32 %v3026, %v3027
        %v3029 = vrot.slane %v3028, 2
        %v3030 = vmax.f32 %v3028, %v3029
        %v3031 = vrot.slane %v3030, 1
        %v3032 = vmax.f32 %v3030, %v3031
        %v3033 = vsel %vm2771, %v2335, -inf
        %v3034 = vsel %vm2771, %v2369, -inf
        %v3035 = vmax.f32 %v3033, %v3034
        %v3036 = vrot.slane %v3035, 4
        %v3037 = vmax.f32 %v3035, %v3036
        %v3038 = vrot.slane %v3037, 2
        %v3039 = vmax.f32 %v3037, %v3038
        %v3040 = vrot.slane %v3039, 1
        %v3041 = vmax.f32 %v3039, %v3040
        %v3042 = vsel %vm2771, %v2334, -inf
        %v3043 = vsel %vm2771, %v2368, -inf
        %v3044 = vmax.f32 %v3042, %v3043
        %v3045 = vrot.slane %v3044, 4
        %v3046 = vmax.f32 %v3044, %v3045
        %v3047 = vrot.slane %v3046, 2
        %v3048 = vmax.f32 %v3046, %v3047
        %v3049 = vrot.slane %v3048, 1
        %v3050 = vmax.f32 %v3048, %v3049
        %v3051 = vsel %vm2771, %v2336, -inf
        %v3052 = vsel %vm2771, %v2370, -inf
        %v3053 = vmax.f32 %v3051, %v3052
        %v3054 = vrot.slane %v3053, 4
        %v3055 = vmax.f32 %v3053, %v3054
        %v3056 = vrot.slane %v3055, 2
        %v3057 = vmax.f32 %v3055, %v3056
        %v3058 = vrot.slane %v3057, 1
        %v3059 = vmax.f32 %v3057, %v3058
        %v3060 = vsel %vm2771, %v2378, -inf
        %v3061 = vsel %vm2771, %v2412, -inf
        %v3062 = vmax.f32 %v3060, %v3061
        %v3063 = vrot.slane %v3062, 4
        %v3064 = vmax.f32 %v3062, %v3063
        %v3065 = vrot.slane %v3064, 2
        %v3066 = vmax.f32 %v3064, %v3065
        %v3067 = vrot.slane %v3066, 1
        %v3068 = vmax.f32 %v3066, %v3067
        %v3069 = vsel %vm2771, %v2386, -inf
        %v3070 = vsel %vm2771, %v2420, -inf
        %v3071 = vmax.f32 %v3069, %v3070
        %v3072 = vrot.slane %v3071, 4
        %v3073 = vmax.f32 %v3071, %v3072
        %v3074 = vrot.slane %v3073, 2
        %v3075 = vmax.f32 %v3073, %v3074
        %v3076 = vrot.slane %v3075, 1
        %v3077 = vmax.f32 %v3075, %v3076
        %v3078 = vsel %vm2771, %v2385, -inf
        %v3079 = vsel %vm2771, %v2419, -inf
        %v3080 = vmax.f32 %v3078, %v3079
        %v3081 = vrot.slane %v3080, 4
        %v3082 = vmax.f32 %v3080, %v3081
        %v3083 = vrot.slane %v3082, 2
        %v3084 = vmax.f32 %v3082, %v3083
        %v3085 = vrot.slane %v3084, 1
        %v3086 = vmax.f32 %v3084, %v3085
        %v3087 = vsel %vm2771, %v2387, -inf
        %v3088 = vsel %vm2771, %v2421, -inf
        %v3089 = vmax.f32 %v3087, %v3088
        %v3090 = vrot.slane %v3089, 4
        %v3091 = vmax.f32 %v3089, %v3090
        %v3092 = vrot.slane %v3091, 2
        %v3093 = vmax.f32 %v3091, %v3092
        %v3094 = vrot.slane %v3093, 1
        %v3095 = vmax.f32 %v3093, %v3094
        %v3096 = vsel %vm2771, %v2395, -inf
        %v3097 = vsel %vm2771, %v2429, -inf
        %v3098 = vmax.f32 %v3096, %v3097
        %v3099 = vrot.slane %v3098, 4
        %v3100 = vmax.f32 %v3098, %v3099
        %v3101 = vrot.slane %v3100, 2
        %v3102 = vmax.f32 %v3100, %v3101
        %v3103 = vrot.slane %v3102, 1
        %v3104 = vmax.f32 %v3102, %v3103
        %v3105 = vsel %vm2771, %v2403, -inf
        %v3106 = vsel %vm2771, %v2437, -inf
        %v3107 = vmax.f32 %v3105, %v3106
        %v3108 = vrot.slane %v3107, 4
        %v3109 = vmax.f32 %v3107, %v3108
        %v3110 = vrot.slane %v3109, 2
        %v3111 = vmax.f32 %v3109, %v3110
        %v3112 = vrot.slane %v3111, 1
        %v3113 = vmax.f32 %v3111, %v3112
        %v3114 = vsel %vm2771, %v2402, -inf
        %v3115 = vsel %vm2771, %v2436, -inf
        %v3116 = vmax.f32 %v3114, %v3115
        %v3117 = vrot.slane %v3116, 4
        %v3118 = vmax.f32 %v3116, %v3117
        %v3119 = vrot.slane %v3118, 2
        %v3120 = vmax.f32 %v3118, %v3119
        %v3121 = vrot.slane %v3120, 1
        %v3122 = vmax.f32 %v3120, %v3121
        %v3123 = vsel %vm2771, %v2404, -inf
        %v3124 = vsel %vm2771, %v2438, -inf
        %v3125 = vmax.f32 %v3123, %v3124
        %v3126 = vrot.slane %v3125, 4
        %v3127 = vmax.f32 %v3125, %v3126
        %v3128 = vrot.slane %v3127, 2
        %v3129 = vmax.f32 %v3127, %v3128
        %v3130 = vrot.slane %v3129, 1
        %v3131 = vmax.f32 %v3129, %v3130
        %v3132 = vsel %vm2771, %v2446, -inf
        %v3133 = vsel %vm2771, %v2480, -inf
        %v3134 = vmax.f32 %v3132, %v3133
        %v3135 = vrot.slane %v3134, 4
        %v3136 = vmax.f32 %v3134, %v3135
        %v3137 = vrot.slane %v3136, 2
        %v3138 = vmax.f32 %v3136, %v3137
        %v3139 = vrot.slane %v3138, 1
        %v3140 = vmax.f32 %v3138, %v3139
        %v3141 = vsel %vm2771, %v2454, -inf
        %v3142 = vsel %vm2771, %v2488, -inf
        %v3143 = vmax.f32 %v3141, %v3142
        %v3144 = vrot.slane %v3143, 4
        %v3145 = vmax.f32 %v3143, %v3144
        %v3146 = vrot.slane %v3145, 2
        %v3147 = vmax.f32 %v3145, %v3146
        %v3148 = vrot.slane %v3147, 1
        %v3149 = vmax.f32 %v3147, %v3148
        %v3150 = vsel %vm2771, %v2453, -inf
        %v3151 = vsel %vm2771, %v2487, -inf
        %v3152 = vmax.f32 %v3150, %v3151
        %v3153 = vrot.slane %v3152, 4
        %v3154 = vmax.f32 %v3152, %v3153
        %v3155 = vrot.slane %v3154, 2
        %v3156 = vmax.f32 %v3154, %v3155
        %v3157 = vrot.slane %v3156, 1
        %v3158 = vmax.f32 %v3156, %v3157
        %v3159 = vsel %vm2771, %v2455, -inf
        %v3160 = vsel %vm2771, %v2489, -inf
        %v3161 = vmax.f32 %v3159, %v3160
        %v3162 = vrot.slane %v3161, 4
        %v3163 = vmax.f32 %v3161, %v3162
        %v3164 = vrot.slane %v3163, 2
        %v3165 = vmax.f32 %v3163, %v3164
        %v3166 = vrot.slane %v3165, 1
        %v3167 = vmax.f32 %v3165, %v3166
        %v3168 = vsel %vm2771, %v2463, -inf
        %v3169 = vsel %vm2771, %v2497, -inf
        %v3170 = vmax.f32 %v3168, %v3169
        %v3171 = vrot.slane %v3170, 4
        %v3172 = vmax.f32 %v3170, %v3171
        %v3173 = vrot.slane %v3172, 2
        %v3174 = vmax.f32 %v3172, %v3173
        %v3175 = vrot.slane %v3174, 1
        %v3176 = vmax.f32 %v3174, %v3175
        %v3177 = vsel %vm2771, %v2471, -inf
        %v3178 = vsel %vm2771, %v2505, -inf
        %v3179 = vmax.f32 %v3177, %v3178
        %v3180 = vrot.slane %v3179, 4
        %v3181 = vmax.f32 %v3179, %v3180
        %v3182 = vrot.slane %v3181, 2
        %v3183 = vmax.f32 %v3181, %v3182
        %v3184 = vrot.slane %v3183, 1
        %v3185 = vmax.f32 %v3183, %v3184
        %v3186 = vsel %vm2771, %v2470, -inf
        %v3187 = vsel %vm2771, %v2504, -inf
        %v3188 = vmax.f32 %v3186, %v3187
        %v3189 = vrot.slane %v3188, 4
        %v3190 = vmax.f32 %v3188, %v3189
        %v3191 = vrot.slane %v3190, 2
        %v3192 = vmax.f32 %v3190, %v3191
        %v3193 = vrot.slane %v3192, 1
        %v3194 = vmax.f32 %v3192, %v3193
        %v3195 = vsel %vm2771, %v2472, -inf
        %v3196 = vsel %vm2771, %v2506, -inf
        %v3197 = vmax.f32 %v3195, %v3196
        %v3198 = vrot.slane %v3197, 4
        %v3199 = vmax.f32 %v3197, %v3198
        %v3200 = vrot.slane %v3199, 2
        %v3201 = vmax.f32 %v3199, %v3200
        %v3202 = vrot.slane %v3201, 1
        %v3203 = vmax.f32 %v3201, %v3202
        %v3204 = vsel %vm2771, %v2514, -inf
        %v3205 = vsel %vm2771, %v2548, -inf
        %v3206 = vmax.f32 %v3204, %v3205
        %v3207 = vrot.slane %v3206, 4
        %v3208 = vmax.f32 %v3206, %v3207
        %v3209 = vrot.slane %v3208, 2
        %v3210 = vmax.f32 %v3208, %v3209
        %v3211 = vrot.slane %v3210, 1
        %v3212 = vmax.f32 %v3210, %v3211
        %v3213 = vsel %vm2771, %v2522, -inf
        %v3214 = vsel %vm2771, %v2556, -inf
        %v3215 = vmax.f32 %v3213, %v3214
        %v3216 = vrot.slane %v3215, 4
        %v3217 = vmax.f32 %v3215, %v3216
        %v3218 = vrot.slane %v3217, 2
        %v3219 = vmax.f32 %v3217, %v3218
        %v3220 = vrot.slane %v3219, 1
        %v3221 = vmax.f32 %v3219, %v3220
        %v3222 = vsel %vm2771, %v2521, -inf
        %v3223 = vsel %vm2771, %v2555, -inf
        %v3224 = vmax.f32 %v3222, %v3223
        %v3225 = vrot.slane %v3224, 4
        %v3226 = vmax.f32 %v3224, %v3225
        %v3227 = vrot.slane %v3226, 2
        %v3228 = vmax.f32 %v3226, %v3227
        %v3229 = vrot.slane %v3228, 1
        %v3230 = vmax.f32 %v3228, %v3229
        %v3231 = vsel %vm2771, %v2523, -inf
        %v3232 = vsel %vm2771, %v2557, -inf
        %v3233 = vmax.f32 %v3231, %v3232
        %v3234 = vrot.slane %v3233, 4
        %v3235 = vmax.f32 %v3233, %v3234
        %v3236 = vrot.slane %v3235, 2
        %v3237 = vmax.f32 %v3235, %v3236
        %v3238 = vrot.slane %v3237, 1
        %v3239 = vmax.f32 %v3237, %v3238
        %v3240 = vsel %vm2771, %v2531, -inf
        %v3241 = vsel %vm2771, %v2565, -inf
        %v3242 = vmax.f32 %v3240, %v3241
        %v3243 = vrot.slane %v3242, 4
        %v3244 = vmax.f32 %v3242, %v3243
        %v3245 = vrot.slane %v3244, 2
        %v3246 = vmax.f32 %v3244, %v3245
        %v3247 = vrot.slane %v3246, 1
        %v3248 = vmax.f32 %v3246, %v3247
        %v3249 = vsel %vm2771, %v2539, -inf
        %v3250 = vsel %vm2771, %v2573, -inf
        %v3251 = vmax.f32 %v3249, %v3250
        %v3252 = vrot.slane %v3251, 4
        %v3253 = vmax.f32 %v3251, %v3252
        %v3254 = vrot.slane %v3253, 2
        %v3255 = vmax.f32 %v3253, %v3254
        %v3256 = vrot.slane %v3255, 1
        %v3257 = vmax.f32 %v3255, %v3256
        %v3258 = vsel %vm2771, %v2538, -inf
        %v3259 = vsel %vm2771, %v2572, -inf
        %v3260 = vmax.f32 %v3258, %v3259
        %v3261 = vrot.slane %v3260, 4
        %v3262 = vmax.f32 %v3260, %v3261
        %v3263 = vrot.slane %v3262, 2
        %v3264 = vmax.f32 %v3262, %v3263
        %v3265 = vrot.slane %v3264, 1
        %v3266 = vmax.f32 %v3264, %v3265
        %v3267 = vsel %vm2771, %v2540, -inf
        %v3268 = vsel %vm2771, %v2574, -inf
        %v3269 = vmax.f32 %v3267, %v3268
        %v3270 = vrot.slane %v3269, 4
        %v3271 = vmax.f32 %v3269, %v3270
        %v3272 = vrot.slane %v3271, 2
        %v3273 = vmax.f32 %v3271, %v3272
        %v3274 = vrot.slane %v3273, 1
        %v3275 = vmax.f32 %v3273, %v3274
        %v3276 = vsel %vm2771, %v2582, -inf
        %v3277 = vsel %vm2771, %v2616, -inf
        %v3278 = vmax.f32 %v3276, %v3277
        %v3279 = vrot.slane %v3278, 4
        %v3280 = vmax.f32 %v3278, %v3279
        %v3281 = vrot.slane %v3280, 2
        %v3282 = vmax.f32 %v3280, %v3281
        %v3283 = vrot.slane %v3282, 1
        %v3284 = vmax.f32 %v3282, %v3283
        %v3285 = vsel %vm2771, %v2590, -inf
        %v3286 = vsel %vm2771, %v2624, -inf
        %v3287 = vmax.f32 %v3285, %v3286
        %v3288 = vrot.slane %v3287, 4
        %v3289 = vmax.f32 %v3287, %v3288
        %v3290 = vrot.slane %v3289, 2
        %v3291 = vmax.f32 %v3289, %v3290
        %v3292 = vrot.slane %v3291, 1
        %v3293 = vmax.f32 %v3291, %v3292
        %v3294 = vsel %vm2771, %v2589, -inf
        %v3295 = vsel %vm2771, %v2623, -inf
        %v3296 = vmax.f32 %v3294, %v3295
        %v3297 = vrot.slane %v3296, 4
        %v3298 = vmax.f32 %v3296, %v3297
        %v3299 = vrot.slane %v3298, 2
        %v3300 = vmax.f32 %v3298, %v3299
        %v3301 = vrot.slane %v3300, 1
        %v3302 = vmax.f32 %v3300, %v3301
        %v3303 = vsel %vm2771, %v2591, -inf
        %v3304 = vsel %vm2771, %v2625, -inf
        %v3305 = vmax.f32 %v3303, %v3304
        %v3306 = vrot.slane %v3305, 4
        %v3307 = vmax.f32 %v3305, %v3306
        %v3308 = vrot.slane %v3307, 2
        %v3309 = vmax.f32 %v3307, %v3308
        %v3310 = vrot.slane %v3309, 1
        %v3311 = vmax.f32 %v3309, %v3310
        %v3312 = vsel %vm2771, %v2599, -inf
        %v3313 = vsel %vm2771, %v2633, -inf
        %v3314 = vmax.f32 %v3312, %v3313
        %v3315 = vrot.slane %v3314, 4
        %v3316 = vmax.f32 %v3314, %v3315
        %v3317 = vrot.slane %v3316, 2
        %v3318 = vmax.f32 %v3316, %v3317
        %v3319 = vrot.slane %v3318, 1
        %v3320 = vmax.f32 %v3318, %v3319
        %v3321 = vsel %vm2771, %v2607, -inf
        %v3322 = vsel %vm2771, %v2641, -inf
        %v3323 = vmax.f32 %v3321, %v3322
        %v3324 = vrot.slane %v3323, 4
        %v3325 = vmax.f32 %v3323, %v3324
        %v3326 = vrot.slane %v3325, 2
        %v3327 = vmax.f32 %v3325, %v3326
        %v3328 = vrot.slane %v3327, 1
        %v3329 = vmax.f32 %v3327, %v3328
        %v3330 = vsel %vm2771, %v2606, -inf
        %v3331 = vsel %vm2771, %v2640, -inf
        %v3332 = vmax.f32 %v3330, %v3331
        %v3333 = vrot.slane %v3332, 4
        %v3334 = vmax.f32 %v3332, %v3333
        %v3335 = vrot.slane %v3334, 2
        %v3336 = vmax.f32 %v3334, %v3335
        %v3337 = vrot.slane %v3336, 1
        %v3338 = vmax.f32 %v3336, %v3337
        %v3339 = vsel %vm2771, %v2608, -inf
        %v3340 = vsel %vm2771, %v2642, -inf
        %v3341 = vmax.f32 %v3339, %v3340
        %v3342 = vrot.slane %v3341, 4
        %v3343 = vmax.f32 %v3341, %v3342
        %v3344 = vrot.slane %v3343, 2
        %v3345 = vmax.f32 %v3343, %v3344
        %v3346 = vrot.slane %v3345, 1
        %v3347 = vmax.f32 %v3345, %v3346
        %vm3348 = vcmask 130048
        %3349 = vst.msk [vmem:[#allocation4] sm:$0xff] %vm3348, 0.0
        %3350 = vst.msk [vmem:[#allocation4 + $0x8] sm:$0x3] %vm2771, 0.0
        %s3351 = scalar_lea.vmem [#allocation4], 144
        %3352 = vst.msk [vmem:[%s3351] sm:$0xff] %vm3348, 0.0
        %3353 = vst.msk [vmem:[%s3351 + $0x8] sm:$0x3] %vm2771, 0.0
        %vm3354 = vcmask 122880
        %3355 = vst.msk [vmem:[#allocation4] sm:$0x1] %vm3354, 0.0
        %3356 = vst.msk [vmem:[#allocation4 + $0x10] sm:$0x1] %vm3354, 0.0
        %3357 = vst.msk [vmem:[#allocation4 + $0x20] sm:$0x1] %vm3354, 0.0
        %3358 = vst.msk [vmem:[#allocation4 + $0x30] sm:$0x1] %vm3354, 0.0
        %3359 = vst.msk [vmem:[#allocation4 + $0x40] sm:$0x1] %vm3354, 0.0
        %3360 = vst.msk [vmem:[#allocation4 + $0x50] sm:$0x1] %vm3354, 0.0
        %3361 = vst.msk [vmem:[#allocation4 + $0x60] sm:$0x1] %vm3354, 0.0
        %3362 = vst.msk [vmem:[#allocation4 + $0x70] sm:$0x1] %vm3354, 0.0
        %3363 = vst.msk [vmem:[#allocation4 + $0x80] sm:$0x1] %vm3354, 0.0
        %3364 = vst.msk [vmem:[#allocation4 + $0x90] sm:$0x1] %vm3354, 0.0
        %3365 = vst.msk [vmem:[#allocation4 + $0x9] sm:$0x1] %vm3354, 0.0
        %3366 = vst.msk [vmem:[#allocation4 + $0x19] sm:$0x1] %vm3354, 0.0
        %3367 = vst.msk [vmem:[#allocation4 + $0x29] sm:$0x1] %vm3354, 0.0
        %3368 = vst.msk [vmem:[#allocation4 + $0x39] sm:$0x1] %vm3354, 0.0
        %3369 = vst.msk [vmem:[#allocation4 + $0x49] sm:$0x1] %vm3354, 0.0
        %3370 = vst.msk [vmem:[#allocation4 + $0x59] sm:$0x1] %vm3354, 0.0
        %3371 = vst.msk [vmem:[#allocation4 + $0x69] sm:$0x1] %vm3354, 0.0
        %3372 = vst.msk [vmem:[#allocation4 + $0x79] sm:$0x1] %vm3354, 0.0
        %3373 = vst.msk [vmem:[#allocation4 + $0x89] sm:$0x1] %vm3354, 0.0
        %3374 = vst.msk [vmem:[#allocation4 + $0x99] sm:$0x1] %vm3354, 0.0
        %vm3439 = vcmask 1041409
        %v3440 = vsel %vm3439, %v2789, %v2780
        %vm3441 = vcmask 1042434
        %v3442 = vsel %vm3441, %v2798, %v3440
        %vm3443 = vcmask 1043459
        %v3444 = vsel %vm3443, %v2807, %v3442
        %vm3445 = vcmask 1044484
        %v3446 = vsel %vm3445, %v2816, %v3444
        %vm3447 = vcmask 1045509
        %v3448 = vsel %vm3447, %v2825, %v3446
        %vm3449 = vcmask 1046534
        %v3450 = vsel %vm3449, %v2834, %v3448
        %vm3451 = vcmask 1047559
        %v3452 = vsel %vm3451, %v2843, %v3450
        %v3453 = vsel %vm3439, %v2861, %v2852
        %v3454 = vsel %vm3441, %v2870, %v3453
        %v3455 = vsel %vm3443, %v2879, %v3454
        %v3456 = vsel %vm3445, %v2888, %v3455
        %v3457 = vsel %vm3447, %v2897, %v3456
        %v3458 = vsel %vm3449, %v2906, %v3457
        %v3459 = vsel %vm3451, %v2915, %v3458
        %v3460 = vsel %vm3439, %v2933, %v2924
        %v3461 = vsel %vm3441, %v2942, %v3460
        %v3462 = vsel %vm3443, %v2951, %v3461
        %v3463 = vsel %vm3445, %v2960, %v3462
        %v3464 = vsel %vm3447, %v2969, %v3463
        %v3465 = vsel %vm3449, %v2978, %v3464
        %v3466 = vsel %vm3451, %v2987, %v3465
        %v3467 = vsel %vm3439, %v3005, %v2996
        %v3468 = vsel %vm3441, %v3014, %v3467
        %v3469 = vsel %vm3443, %v3023, %v3468
        %v3470 = vsel %vm3445, %v3032, %v3469
        %v3471 = vsel %vm3447, %v3041, %v3470
        %v3472 = vsel %vm3449, %v3050, %v3471
        %v3473 = vsel %vm3451, %v3059, %v3472
        %v3474 = vsel %vm3439, %v3077, %v3068
        %v3475 = vsel %vm3441, %v3086, %v3474
        %v3476 = vsel %vm3443, %v3095, %v3475
        %v3477 = vsel %vm3445, %v3104, %v3476
        %v3478 = vsel %vm3447, %v3113, %v3477
        %v3479 = vsel %vm3449, %v3122, %v3478
        %v3480 = vsel %vm3451, %v3131, %v3479
        %v3481 = vsel %vm3439, %v3149, %v3140
        %v3482 = vsel %vm3441, %v3158, %v3481
        %v3483 = vsel %vm3443, %v3167, %v3482
        %v3484 = vsel %vm3445, %v3176, %v3483
        %v3485 = vsel %vm3447, %v3185, %v3484
        %v3486 = vsel %vm3449, %v3194, %v3485
        %v3487 = vsel %vm3451, %v3203, %v3486
        %v3488 = vsel %vm3439, %v3221, %v3212
        %v3489 = vsel %vm3441, %v3230, %v3488
        %v3490 = vsel %vm3443, %v3239, %v3489
        %v3491 = vsel %vm3445, %v3248, %v3490
        %v3492 = vsel %vm3447, %v3257, %v3491
        %v3493 = vsel %vm3449, %v3266, %v3492
        %v3494 = vsel %vm3451, %v3275, %v3493
        %v3495 = vsel %vm3439, %v3293, %v3284
        %v3496 = vsel %vm3441, %v3302, %v3495
        %v3497 = vsel %vm3443, %v3311, %v3496
        %v3498 = vsel %vm3445, %v3320, %v3497
        %v3499 = vsel %vm3447, %v3329, %v3498
        %v3500 = vsel %vm3449, %v3338, %v3499
        %v3501 = vsel %vm3451, %v3347, %v3500
        %s3510 = scalar_lea.vmem [#allocation4], 16
        %3511 = vst.msk [vmem:[%s3510 + $0x1] sm:$0xff] %vm3348, %v3452
        %3512 = vst.msk [vmem:[%s3510 + $0x11] sm:$0xff] %vm3348, %v3459
        %3513 = vst.msk [vmem:[%s3510 + $0x21] sm:$0xff] %vm3348, %v3466
        %3514 = vst.msk [vmem:[%s3510 + $0x31] sm:$0xff] %vm3348, %v3473
        %3515 = vst.msk [vmem:[%s3510 + $0x41] sm:$0xff] %vm3348, %v3480
        %3516 = vst.msk [vmem:[%s3510 + $0x51] sm:$0xff] %vm3348, %v3487
        %3517 = vst.msk [vmem:[%s3510 + $0x61] sm:$0xff] %vm3348, %v3494
        %3518 = vst.msk [vmem:[%s3510 + $0x71] sm:$0xff] %vm3348, %v3501
        %v3519 = vld [vmem:[#allocation4] sm:$0xff]
        %v3520 = vld [vmem:[#allocation4 + $0x10] sm:$0xff]
        %v3521 = vld [vmem:[#allocation4 + $0x20] sm:$0xff]
        %v3522 = vld [vmem:[#allocation4 + $0x30] sm:$0xff]
        %v3523 = vld [vmem:[#allocation4 + $0x40] sm:$0xff]
        %v3524 = vld [vmem:[#allocation4 + $0x50] sm:$0xff]
        %v3525 = vld [vmem:[#allocation4 + $0x60] sm:$0xff]
        %v3526 = vld [vmem:[#allocation4 + $0x70] sm:$0xff]
        %v3527 = vld [vmem:[#allocation4 + $0x80] sm:$0xff]
        %v3528 = vld [vmem:[#allocation4 + $0x90] sm:$0xff]
        %3529 = vst.msk [vmem:[#allocation5] sm:$0xff] %vm3348, %v3519
        %3530 = vst.msk [vmem:[#allocation5 + $0x10] sm:$0xff] %vm3348, %v3520
        %3531 = vst.msk [vmem:[#allocation5 + $0x20] sm:$0xff] %vm3348, %v3521
        %3532 = vst.msk [vmem:[#allocation5 + $0x30] sm:$0xff] %vm3348, %v3522
        %3533 = vst.msk [vmem:[#allocation5 + $0x40] sm:$0xff] %vm3348, %v3523
        %3534 = vst.msk [vmem:[#allocation5 + $0x50] sm:$0xff] %vm3348, %v3524
        %3535 = vst.msk [vmem:[#allocation5 + $0x60] sm:$0xff] %vm3348, %v3525
        %3536 = vst.msk [vmem:[#allocation5 + $0x70] sm:$0xff] %vm3348, %v3526
        %3545 = vrot.lane.b32.xlu0 %v3520, 48
        %v3546 = vpop.permute.xlu0 %3545
        %3547 = vrot.lane.b32.xlu0 %v3521, 48
        %v3548 = vpop.permute.xlu0 %3547
        %3549 = vrot.lane.b32.xlu0 %v3522, 48
        %v3550 = vpop.permute.xlu0 %3549
        %3551 = vrot.lane.b32.xlu0 %v3523, 48
        %v3552 = vpop.permute.xlu0 %3551
        %3553 = vrot.lane.b32.xlu0 %v3524, 48
        %v3554 = vpop.permute.xlu0 %3553
        %3555 = vrot.lane.b32.xlu0 %v3525, 48
        %v3556 = vpop.permute.xlu0 %3555
        %3557 = vrot.lane.b32.xlu0 %v3526, 48
        %v3558 = vpop.permute.xlu0 %3557
        %3559 = vrot.lane.b32.xlu0 %v3527, 48
        %v3560 = vpop.permute.xlu0 %3559
        %vm3569 = vcmask 523648
        %3570 = vst.msk [vmem:[#allocation5] sm:$0xff] %vm3569, %v3546
        %3571 = vst.msk [vmem:[#allocation5 + $0x10] sm:$0xff] %vm3569, %v3548
        %3572 = vst.msk [vmem:[#allocation5 + $0x20] sm:$0xff] %vm3569, %v3550
        %3573 = vst.msk [vmem:[#allocation5 + $0x30] sm:$0xff] %vm3569, %v3552
        %3574 = vst.msk [vmem:[#allocation5 + $0x40] sm:$0xff] %vm3569, %v3554
        %3575 = vst.msk [vmem:[#allocation5 + $0x50] sm:$0xff] %vm3569, %v3556
        %3576 = vst.msk [vmem:[#allocation5 + $0x60] sm:$0xff] %vm3569, %v3558
        %3577 = vst.msk [vmem:[#allocation5 + $0x70] sm:$0xff] %vm3569, %v3560
        %3579 = vrot.lane.b32.xlu0 %v3521, 96
        %v3580 = vpop.permute.xlu0 %3579
        %3581 = vrot.lane.b32.xlu0 %v3522, 96
        %v3582 = vpop.permute.xlu0 %3581
        %3583 = vrot.lane.b32.xlu0 %v3523, 96
        %v3584 = vpop.permute.xlu0 %3583
        %3585 = vrot.lane.b32.xlu0 %v3524, 96
        %v3586 = vpop.permute.xlu0 %3585
        %3587 = vrot.lane.b32.xlu0 %v3525, 96
        %v3588 = vpop.permute.xlu0 %3587
        %3589 = vrot.lane.b32.xlu0 %v3526, 96
        %v3590 = vpop.permute.xlu0 %3589
        %3591 = vrot.lane.b32.xlu0 %v3527, 96
        %v3592 = vpop.permute.xlu0 %3591
        %3593 = vrot.lane.b32.xlu0 %v3528, 96
        %v3594 = vpop.permute.xlu0 %3593
        %vm3603 = vcmask 917248
        %3604 = vst.msk [vmem:[#allocation5] sm:$0xff] %vm3603, %v3580
        %3605 = vst.msk [vmem:[#allocation5 + $0x10] sm:$0xff] %vm3603, %v3582
        %3606 = vst.msk [vmem:[#allocation5 + $0x20] sm:$0xff] %vm3603, %v3584
        %3607 = vst.msk [vmem:[#allocation5 + $0x30] sm:$0xff] %vm3603, %v3586
        %3608 = vst.msk [vmem:[#allocation5 + $0x40] sm:$0xff] %vm3603, %v3588
        %3609 = vst.msk [vmem:[#allocation5 + $0x50] sm:$0xff] %vm3603, %v3590
        %3610 = vst.msk [vmem:[#allocation5 + $0x60] sm:$0xff] %vm3603, %v3592
        %3611 = vst.msk [vmem:[#allocation5 + $0x70] sm:$0xff] %vm3603, %v3594
        %v3612 = vld [vmem:[#allocation4 + $0x1] sm:$0xff]
        %v3613 = vld [vmem:[#allocation4 + $0x11] sm:$0xff]
        %v3614 = vld [vmem:[#allocation4 + $0x21] sm:$0xff]
        %v3615 = vld [vmem:[#allocation4 + $0x31] sm:$0xff]
        %v3616 = vld [vmem:[#allocation4 + $0x41] sm:$0xff]
        %v3617 = vld [vmem:[#allocation4 + $0x51] sm:$0xff]
        %v3618 = vld [vmem:[#allocation4 + $0x61] sm:$0xff]
        %v3619 = vld [vmem:[#allocation4 + $0x71] sm:$0xff]
        %v3620 = vld [vmem:[#allocation4 + $0x81] sm:$0xff]
        %v3621 = vld [vmem:[#allocation4 + $0x91] sm:$0xff]
        %3630 = vrot.lane.b32.xlu0 %v3612, 16
        %v3631 = vpop.permute.xlu0 %3630
        %3632 = vrot.lane.b32.xlu0 %v3613, 16
        %v3633 = vpop.permute.xlu0 %3632
        %3634 = vrot.lane.b32.xlu0 %v3614, 16
        %v3635 = vpop.permute.xlu0 %3634
        %3636 = vrot.lane.b32.xlu0 %v3615, 16
        %v3637 = vpop.permute.xlu0 %3636
        %3638 = vrot.lane.b32.xlu0 %v3616, 16
        %v3639 = vpop.permute.xlu0 %3638
        %3640 = vrot.lane.b32.xlu0 %v3617, 16
        %v3641 = vpop.permute.xlu0 %3640
        %3642 = vrot.lane.b32.xlu0 %v3618, 16
        %v3643 = vpop.permute.xlu0 %3642
        %3644 = vrot.lane.b32.xlu0 %v3619, 16
        %v3645 = vpop.permute.xlu0 %3644
        %vm3654 = vcmask 261248
        %3655 = vst.msk [vmem:[#allocation5] sm:$0xff] %vm3654, %v3631
        %3656 = vst.msk [vmem:[#allocation5 + $0x10] sm:$0xff] %vm3654, %v3633
        %3657 = vst.msk [vmem:[#allocation5 + $0x20] sm:$0xff] %vm3654, %v3635
        %3658 = vst.msk [vmem:[#allocation5 + $0x30] sm:$0xff] %vm3654, %v3637
        %3659 = vst.msk [vmem:[#allocation5 + $0x40] sm:$0xff] %vm3654, %v3639
        %3660 = vst.msk [vmem:[#allocation5 + $0x50] sm:$0xff] %vm3654, %v3641
        %3661 = vst.msk [vmem:[#allocation5 + $0x60] sm:$0xff] %vm3654, %v3643
        %3662 = vst.msk [vmem:[#allocation5 + $0x70] sm:$0xff] %vm3654, %v3645
        %3664 = vrot.lane.b32.xlu0 %v3613, 64
        %v3665 = vpop.permute.xlu0 %3664
        %3666 = vrot.lane.b32.xlu0 %v3614, 64
        %v3667 = vpop.permute.xlu0 %3666
        %3668 = vrot.lane.b32.xlu0 %v3615, 64
        %v3669 = vpop.permute.xlu0 %3668
        %3670 = vrot.lane.b32.xlu0 %v3616, 64
        %v3671 = vpop.permute.xlu0 %3670
        %3672 = vrot.lane.b32.xlu0 %v3617, 64
        %v3673 = vpop.permute.xlu0 %3672
        %3674 = vrot.lane.b32.xlu0 %v3618, 64
        %v3675 = vpop.permute.xlu0 %3674
        %3676 = vrot.lane.b32.xlu0 %v3619, 64
        %v3677 = vpop.permute.xlu0 %3676
        %3678 = vrot.lane.b32.xlu0 %v3620, 64
        %v3679 = vpop.permute.xlu0 %3678
        %vm3688 = vcmask 654848
        %3689 = vst.msk [vmem:[#allocation5] sm:$0xff] %vm3688, %v3665
        %3690 = vst.msk [vmem:[#allocation5 + $0x10] sm:$0xff] %vm3688, %v3667
        %3691 = vst.msk [vmem:[#allocation5 + $0x20] sm:$0xff] %vm3688, %v3669
        %3692 = vst.msk [vmem:[#allocation5 + $0x30] sm:$0xff] %vm3688, %v3671
        %3693 = vst.msk [vmem:[#allocation5 + $0x40] sm:$0xff] %vm3688, %v3673
        %3694 = vst.msk [vmem:[#allocation5 + $0x50] sm:$0xff] %vm3688, %v3675
        %3695 = vst.msk [vmem:[#allocation5 + $0x60] sm:$0xff] %vm3688, %v3677
        %3696 = vst.msk [vmem:[#allocation5 + $0x70] sm:$0xff] %vm3688, %v3679
        %3698 = vrot.lane.b32.xlu0 %v3614, 112
        %v3699 = vpop.permute.xlu0 %3698
        %3700 = vrot.lane.b32.xlu0 %v3615, 112
        %v3701 = vpop.permute.xlu0 %3700
        %3702 = vrot.lane.b32.xlu0 %v3616, 112
        %v3703 = vpop.permute.xlu0 %3702
        %3704 = vrot.lane.b32.xlu0 %v3617, 112
        %v3705 = vpop.permute.xlu0 %3704
        %3706 = vrot.lane.b32.xlu0 %v3618, 112
        %v3707 = vpop.permute.xlu0 %3706
        %3708 = vrot.lane.b32.xlu0 %v3619, 112
        %v3709 = vpop.permute.xlu0 %3708
        %3710 = vrot.lane.b32.xlu0 %v3620, 112
        %v3711 = vpop.permute.xlu0 %3710
        %3712 = vrot.lane.b32.xlu0 %v3621, 112
        %v3713 = vpop.permute.xlu0 %3712
        %vm3722 = vcmask 1048448
        %3723 = vst.msk [vmem:[#allocation5] sm:$0xff] %vm3722, %v3699
        %3724 = vst.msk [vmem:[#allocation5 + $0x10] sm:$0xff] %vm3722, %v3701
        %3725 = vst.msk [vmem:[#allocation5 + $0x20] sm:$0xff] %vm3722, %v3703
        %3726 = vst.msk [vmem:[#allocation5 + $0x30] sm:$0xff] %vm3722, %v3705
        %3727 = vst.msk [vmem:[#allocation5 + $0x40] sm:$0xff] %vm3722, %v3707
        %3728 = vst.msk [vmem:[#allocation5 + $0x50] sm:$0xff] %vm3722, %v3709
        %3729 = vst.msk [vmem:[#allocation5 + $0x60] sm:$0xff] %vm3722, %v3711
        %3730 = vst.msk [vmem:[#allocation5 + $0x70] sm:$0xff] %vm3722, %v3713
        %v3731 = vld [vmem:[#allocation4 + $0x2] sm:$0xff]
        %v3732 = vld [vmem:[#allocation4 + $0x12] sm:$0xff]
        %v3733 = vld [vmem:[#allocation4 + $0x22] sm:$0xff]
        %v3734 = vld [vmem:[#allocation4 + $0x32] sm:$0xff]
        %v3735 = vld [vmem:[#allocation4 + $0x42] sm:$0xff]
        %v3736 = vld [vmem:[#allocation4 + $0x52] sm:$0xff]
        %v3737 = vld [vmem:[#allocation4 + $0x62] sm:$0xff]
        %v3738 = vld [vmem:[#allocation4 + $0x72] sm:$0xff]
        %v3739 = vld [vmem:[#allocation4 + $0x82] sm:$0xff]
        %v3740 = vld [vmem:[#allocation4 + $0x92] sm:$0xff]
        %3749 = vrot.lane.b32.xlu0 %v3731, 32
        %v3750 = vpop.permute.xlu0 %3749
        %3751 = vrot.lane.b32.xlu0 %v3732, 32
        %v3752 = vpop.permute.xlu0 %3751
        %3753 = vrot.lane.b32.xlu0 %v3733, 32
        %v3754 = vpop.permute.xlu0 %3753
        %3755 = vrot.lane.b32.xlu0 %v3734, 32
        %v3756 = vpop.permute.xlu0 %3755
        %3757 = vrot.lane.b32.xlu0 %v3735, 32
        %v3758 = vpop.permute.xlu0 %3757
        %3759 = vrot.lane.b32.xlu0 %v3736, 32
        %v3760 = vpop.permute.xlu0 %3759
        %3761 = vrot.lane.b32.xlu0 %v3737, 32
        %v3762 = vpop.permute.xlu0 %3761
        %3763 = vrot.lane.b32.xlu0 %v3738, 32
        %v3764 = vpop.permute.xlu0 %3763
        %vm3773 = vcmask 392448
        %3774 = vst.msk [vmem:[#allocation5] sm:$0xff] %vm3773, %v3750
        %3775 = vst.msk [vmem:[#allocation5 + $0x10] sm:$0xff] %vm3773, %v3752
        %3776 = vst.msk [vmem:[#allocation5 + $0x20] sm:$0xff] %vm3773, %v3754
        %3777 = vst.msk [vmem:[#allocation5 + $0x30] sm:$0xff] %vm3773, %v3756
        %3778 = vst.msk [vmem:[#allocation5 + $0x40] sm:$0xff] %vm3773, %v3758
        %3779 = vst.msk [vmem:[#allocation5 + $0x50] sm:$0xff] %vm3773, %v3760
        %3780 = vst.msk [vmem:[#allocation5 + $0x60] sm:$0xff] %vm3773, %v3762
        %3781 = vst.msk [vmem:[#allocation5 + $0x70] sm:$0xff] %vm3773, %v3764
        %3783 = vrot.lane.b32.xlu0 %v3732, 80
        %v3784 = vpop.permute.xlu0 %3783
        %3785 = vrot.lane.b32.xlu0 %v3733, 80
        %v3786 = vpop.permute.xlu0 %3785
        %3787 = vrot.lane.b32.xlu0 %v3734, 80
        %v3788 = vpop.permute.xlu0 %3787
        %3789 = vrot.lane.b32.xlu0 %v3735, 80
        %v3790 = vpop.permute.xlu0 %3789
        %3791 = vrot.lane.b32.xlu0 %v3736, 80
        %v3792 = vpop.permute.xlu0 %3791
        %3793 = vrot.lane.b32.xlu0 %v3737, 80
        %v3794 = vpop.permute.xlu0 %3793
        %3795 = vrot.lane.b32.xlu0 %v3738, 80
        %v3796 = vpop.permute.xlu0 %3795
        %3797 = vrot.lane.b32.xlu0 %v3739, 80
        %v3798 = vpop.permute.xlu0 %3797
        %vm3807 = vcmask 786048
        %3808 = vst.msk [vmem:[#allocation5] sm:$0xff] %vm3807, %v3784
        %3809 = vst.msk [vmem:[#allocation5 + $0x10] sm:$0xff] %vm3807, %v3786
        %3810 = vst.msk [vmem:[#allocation5 + $0x20] sm:$0xff] %vm3807, %v3788
        %3811 = vst.msk [vmem:[#allocation5 + $0x30] sm:$0xff] %vm3807, %v3790
        %3812 = vst.msk [vmem:[#allocation5 + $0x40] sm:$0xff] %vm3807, %v3792
        %3813 = vst.msk [vmem:[#allocation5 + $0x50] sm:$0xff] %vm3807, %v3794
        %3814 = vst.msk [vmem:[#allocation5 + $0x60] sm:$0xff] %vm3807, %v3796
        %3815 = vst.msk [vmem:[#allocation5 + $0x70] sm:$0xff] %vm3807, %v3798
        %3816 = vst.msk [vmem:[#allocation5 + $0x8] sm:$0xff] %vm3348, %v3733
        %3817 = vst.msk [vmem:[#allocation5 + $0x18] sm:$0xff] %vm3348, %v3734
        %3818 = vst.msk [vmem:[#allocation5 + $0x28] sm:$0xff] %vm3348, %v3735
        %3819 = vst.msk [vmem:[#allocation5 + $0x38] sm:$0xff] %vm3348, %v3736
        %3820 = vst.msk [vmem:[#allocation5 + $0x48] sm:$0xff] %vm3348, %v3737
        %3821 = vst.msk [vmem:[#allocation5 + $0x58] sm:$0xff] %vm3348, %v3738
        %3822 = vst.msk [vmem:[#allocation5 + $0x68] sm:$0xff] %vm3348, %v3739
        %3823 = vst.msk [vmem:[#allocation5 + $0x78] sm:$0xff] %vm3348, %v3740
        %v3824 = vld [vmem:[#allocation5] sm:$0xff]
        %v3825 = vld [vmem:[#allocation5 + $0x8] sm:$0xff]
        %v3826 = vld [vmem:[#allocation5 + $0x10] sm:$0xff]
        %v3827 = vld [vmem:[#allocation5 + $0x18] sm:$0xff]
        %v3828 = vld [vmem:[#allocation5 + $0x20] sm:$0xff]
        %v3829 = vld [vmem:[#allocation5 + $0x28] sm:$0xff]
        %v3830 = vld [vmem:[#allocation5 + $0x30] sm:$0xff]
        %v3831 = vld [vmem:[#allocation5 + $0x38] sm:$0xff]
        %v3832 = vld [vmem:[#allocation5 + $0x40] sm:$0xff]
        %v3833 = vld [vmem:[#allocation5 + $0x48] sm:$0xff]
        %v3834 = vld [vmem:[#allocation5 + $0x50] sm:$0xff]
        %v3835 = vld [vmem:[#allocation5 + $0x58] sm:$0xff]
        %v3836 = vld [vmem:[#allocation5 + $0x60] sm:$0xff]
        %v3837 = vld [vmem:[#allocation5 + $0x68] sm:$0xff]
        %v3838 = vld [vmem:[#allocation5 + $0x70] sm:$0xff]
        %v3839 = vld [vmem:[#allocation5 + $0x78] sm:$0xff]
        %v3840 = vld [vmem:[%s3] sm:$0xff]
        %v3841 = vld [vmem:[%s3 + $0x8] sm:$0xff]
        %v3842 = vld [vmem:[%s3 + $0x10] sm:$0xff]
        %v3843 = vld [vmem:[%s3 + $0x18] sm:$0xff]
        %v3844 = vld [vmem:[%s3 + $0x20] sm:$0xff]
        %v3845 = vld [vmem:[%s3 + $0x28] sm:$0xff]
        %v3846 = vld [vmem:[%s3 + $0x30] sm:$0xff]
        %v3847 = vld [vmem:[%s3 + $0x38] sm:$0xff]
        %v3848 = vld [vmem:[%s3 + $0x40] sm:$0xff]
        %v3849 = vld [vmem:[%s3 + $0x48] sm:$0xff]
        %v3850 = vld [vmem:[%s3 + $0x50] sm:$0xff]
        %v3851 = vld [vmem:[%s3 + $0x58] sm:$0xff]
        %v3852 = vld [vmem:[%s3 + $0x60] sm:$0xff]
        %v3853 = vld [vmem:[%s3 + $0x68] sm:$0xff]
        %v3854 = vld [vmem:[%s3 + $0x70] sm:$0xff]
        %v3855 = vld [vmem:[%s3 + $0x78] sm:$0xff]
        %v3856 = vld [vmem:[%s3 + $0x80] sm:$0xff]
        %v3857 = vld [vmem:[%s3 + $0x88] sm:$0xff]
        %v3858 = vld [vmem:[%s4] sm:$0x1]
        %v3860 = vlaneseq
        %v3861 = vshrl.u32 %v3860, 7
        %v3862 = vsub.s32 0, %v3861
        %v3863 = vrot.slane %v3858, %v3862
        %v3866 = vsel %vm3348, %v3825, 0
        %v3869 = vsel %vm3348, %v3827, 0
        %v3872 = vsel %vm3348, %v3829, 0
        %v3875 = vsel %vm3348, %v3831, 0
        %v3878 = vsel %vm3348, %v3833, 0
        %v3881 = vsel %vm3348, %v3835, 0
        %v3884 = vsel %vm3348, %v3837, 0
        %v3887 = vsel %vm3348, %v3839, 0
        %3889 = vmatprep.subr.mxu0 0.0
        %3890 = vmatpush1.msra.mxu0 %v3855
        %3891 = vmatprep.subr.mxu0 0.0
        %3892 = vmatpush1.msra.mxu0 %v3854
        %3893 = vmatprep.subr.mxu0 0.0
        %3894 = vmatpush1.msra.mxu0 %v3853
        %3895 = vmatprep.subr.mxu0 0.0
        %3896 = vmatpush1.msra.mxu0 %v3852
        %3897 = vmatprep.subr.mxu0 0.0
        %3898 = vmatpush1.msra.mxu0 %v3851
        %3899 = vmatprep.subr.mxu0 0.0
        %3900 = vmatpush1.msra.mxu0 %v3850
        %3901 = vmatprep.subr.mxu0 0.0
        %3902 = vmatpush1.msra.mxu0 %v3849
        %3903 = vmatprep.subr.mxu0 0.0
        %3904 = vmatpush1.msra.mxu0 %v3848
        %3905 = vmatprep.subr.mxu0 0.0
        %3906 = vmatpush1.msra.mxu0 %v3847
        %3907 = vmatprep.subr.mxu0 0.0
        %3908 = vmatpush1.msra.mxu0 %v3846
        %3909 = vmatprep.subr.mxu0 0.0
        %3910 = vmatpush1.msra.mxu0 %v3845
        %3911 = vmatprep.subr.mxu0 0.0
        %3912 = vmatpush1.msra.mxu0 %v3844
        %3913 = vmatprep.subr.mxu0 0.0
        %3914 = vmatpush1.msra.mxu0 %v3843
        %3915 = vmatprep.subr.mxu0 0.0
        %3916 = vmatpush1.msra.mxu0 %v3842
        %3917 = vmatprep.subr.mxu0 0.0
        %3918 = vmatpush1.msra.mxu0 %v3841
        %3919 = vmatprep.subr.mxu0 0.0
        %3920 = vmatpush1.msra.mxu0 %v3840
        %3921 = vmatprep.subr.mxu0 0.0
        %3922 = vmatpush2.msra.mxu0 0.0
        %3923 = vmatprep.subr.mxu0 0.0
        %3924 = vmatpush2.msra.mxu0 0.0
        %3925 = vmatprep.subr.mxu0 0.0
        %3926 = vmatpush2.msra.mxu0 0.0
        %3927 = vmatprep.subr.mxu0 0.0
        %3928 = vmatpush2.msra.mxu0 0.0
        %3929 = vmatprep.subr.mxu0 0.0
        %3930 = vmatpush2.msra.mxu0 0.0
        %3931 = vmatprep.subr.mxu0 0.0
        %3932 = vmatpush2.msra.mxu0 0.0
        %3933 = vmatprep.subr.mxu0 0.0
        %3934 = vmatpush2.msra.mxu0 0.0
        %3935 = vmatprep.subr.mxu0 0.0
        %3936 = vmatpush2.msra.mxu0 0.0
        %3937 = vmatprep.subr.mxu0 0.0
        %3938 = vmatpush2.msra.mxu0 0.0
        %3939 = vmatprep.subr.mxu0 0.0
        %3940 = vmatpush2.msra.mxu0 0.0
        %3941 = vmatprep.subr.mxu0 0.0
        %3942 = vmatpush2.msra.mxu0 0.0
        %3943 = vmatprep.subr.mxu0 0.0
        %3944 = vmatpush2.msra.mxu0 0.0
        %3945 = vmatprep.subr.mxu0 0.0
        %3946 = vmatpush2.msra.mxu0 0.0
        %3947 = vmatprep.subr.mxu0 0.0
        %3948 = vmatpush2.msra.mxu0 0.0
        %3949 = vmatprep.subr.mxu0 0.0
        %3950 = vmatpush2.msra.mxu0 %v3857
        %3951 = vmatprep.subr.mxu0 0.0
        %3952 = vmatpush2.msra.mxu0 %v3856
        %3953 = vmatprep.mubr.f32.mxu0 %v3866
        %3954 = vmatmul.mubr.f32.gmra.mxu0 %v3824
        %v3955 = vpop.f32.mrf.mxu0
        %v3956 = vadd.f32 %v3863, %v3955
        %v3957 = vpop.f32.mrf.mxu0
        %3958 = vmatprep.mubr.f32.mxu0 %v3869
        %3959 = vmatmul.mubr.f32.gmra.mxu0 %v3826
        %v3960 = vpop.f32.mrf.mxu0
        %v3961 = vadd.f32 %v3863, %v3960
        %v3962 = vpop.f32.mrf.mxu0
        %3963 = vmatprep.mubr.f32.mxu0 %v3872
        %3964 = vmatmul.mubr.f32.gmra.mxu0 %v3828
        %v3965 = vpop.f32.mrf.mxu0
        %v3966 = vadd.f32 %v3863, %v3965
        %v3967 = vpop.f32.mrf.mxu0
        %3968 = vmatprep.mubr.f32.mxu0 %v3875
        %3969 = vmatmul.mubr.f32.gmra.mxu0 %v3830
        %v3970 = vpop.f32.mrf.mxu0
        %v3971 = vadd.f32 %v3863, %v3970
        %v3972 = vpop.f32.mrf.mxu0
        %3973 = vmatprep.mubr.f32.mxu0 %v3878
        %3974 = vmatmul.mubr.f32.gmra.mxu0 %v3832
        %v3975 = vpop.f32.mrf.mxu0
        %v3976 = vadd.f32 %v3863, %v3975
        %v3977 = vpop.f32.mrf.mxu0
        %3978 = vmatprep.mubr.f32.mxu0 %v3881
        %3979 = vmatmul.mubr.f32.gmra.mxu0 %v3834
        %v3980 = vpop.f32.mrf.mxu0
        %v3981 = vadd.f32 %v3863, %v3980
        %v3982 = vpop.f32.mrf.mxu0
        %3983 = vmatprep.mubr.f32.mxu0 %v3884
        %3984 = vmatmul.mubr.f32.gmra.mxu0 %v3836
        %v3985 = vpop.f32.mrf.mxu0
        %v3986 = vadd.f32 %v3863, %v3985
        %v3987 = vpop.f32.mrf.mxu0
        %3988 = vmatprep.mubr.f32.mxu0 %v3887
        %3989 = vmatmul.mubr.f32.gmra.mxu0 %v3838
        %v3990 = vpop.f32.mrf.mxu0
        %v3991 = vadd.f32 %v3863, %v3990
        %v3992 = vpop.f32.mrf.mxu0
        %3993 = vdwg.mxu0
        %v3994 = vmax.f32 %v3956, 0.0
        %v3995 = vmax.f32 %v3961, 0.0
        %v3996 = vmax.f32 %v3966, 0.0
        %v3997 = vmax.f32 %v3971, 0.0
        %v3998 = vmax.f32 %v3976, 0.0
        %v3999 = vmax.f32 %v3981, 0.0
        %v4000 = vmax.f32 %v3986, 0.0
        %v4001 = vmax.f32 %v3991, 0.0
        %v4010 = vcombine.high %v3994, %v3994
        %v4012 = vunpack.c.l.s4 1983009808
        %v4013 = vunpack.c.0.s8 %v4012
        %v4014 = vlaneseq
        %v4015 = vshrl.u32 %v4014, 7
        %v4016 = vsub.s32 %v4013, %v4015
        %v4017 = vrot.slane %v3994, %v4016
        %v4019 = vunpack.c.l.s4 1983009808
        %v4020 = vunpack.c.0.s8 %v4019
        %v4021 = vlaneseq
        %v4022 = vshrl.u32 %v4021, 7
        %v4023 = vsub.s32 %v4020, %v4022
        %v4024 = vrot.slane %v4010, %v4023
        %v4025 = vcombine.high %v4017, %v4017
        %v4026 = vcombine.high %v4024, %v4024
        %v4027 = vcombine.high %v3995, %v3995
        %v4029 = vunpack.c.l.s4 1983009808
        %v4030 = vunpack.c.0.s8 %v4029
        %v4031 = vlaneseq
        %v4032 = vshrl.u32 %v4031, 7
        %v4033 = vsub.s32 %v4030, %v4032
        %v4034 = vrot.slane %v3995, %v4033
        %v4036 = vunpack.c.l.s4 1983009808
        %v4037 = vunpack.c.0.s8 %v4036
        %v4038 = vlaneseq
        %v4039 = vshrl.u32 %v4038, 7
        %v4040 = vsub.s32 %v4037, %v4039
        %v4041 = vrot.slane %v4027, %v4040
        %v4042 = vcombine.high %v4034, %v4034
        %v4043 = vcombine.high %v4041, %v4041
        %v4044 = vcombine.high %v3996, %v3996
        %v4046 = vunpack.c.l.s4 1983009808
        %v4047 = vunpack.c.0.s8 %v4046
        %v4048 = vlaneseq
        %v4049 = vshrl.u32 %v4048, 7
        %v4050 = vsub.s32 %v4047, %v4049
        %v4051 = vrot.slane %v3996, %v4050
        %v4053 = vunpack.c.l.s4 1983009808
        %v4054 = vunpack.c.0.s8 %v4053
        %v4055 = vlaneseq
        %v4056 = vshrl.u32 %v4055, 7
        %v4057 = vsub.s32 %v4054, %v4056
        %v4058 = vrot.slane %v4044, %v4057
        %v4059 = vcombine.high %v4051, %v4051
        %v4060 = vcombine.high %v4058, %v4058
        %v4061 = vcombine.high %v3997, %v3997
        %v4063 = vunpack.c.l.s4 1983009808
        %v4064 = vunpack.c.0.s8 %v4063
        %v4065 = vlaneseq
        %v4066 = vshrl.u32 %v4065, 7
        %v4067 = vsub.s32 %v4064, %v4066
        %v4068 = vrot.slane %v3997, %v4067
        %v4070 = vunpack.c.l.s4 1983009808
        %v4071 = vunpack.c.0.s8 %v4070
        %v4072 = vlaneseq
        %v4073 = vshrl.u32 %v4072, 7
        %v4074 = vsub.s32 %v4071, %v4073
        %v4075 = vrot.slane %v4061, %v4074
        %v4076 = vcombine.high %v4068, %v4068
        %v4077 = vcombine.high %v4075, %v4075
        %v4078 = vcombine.high %v3998, %v3998
        %v4080 = vunpack.c.l.s4 1983009808
        %v4081 = vunpack.c.0.s8 %v4080
        %v4082 = vlaneseq
        %v4083 = vshrl.u32 %v4082, 7
        %v4084 = vsub.s32 %v4081, %v4083
        %v4085 = vrot.slane %v3998, %v4084
        %v4087 = vunpack.c.l.s4 1983009808
        %v4088 = vunpack.c.0.s8 %v4087
        %v4089 = vlaneseq
        %v4090 = vshrl.u32 %v4089, 7
        %v4091 = vsub.s32 %v4088, %v4090
        %v4092 = vrot.slane %v4078, %v4091
        %v4093 = vcombine.high %v4085, %v4085
        %v4094 = vcombine.high %v4092, %v4092
        %v4095 = vcombine.high %v3999, %v3999
        %v4097 = vunpack.c.l.s4 1983009808
        %v4098 = vunpack.c.0.s8 %v4097
        %v4099 = vlaneseq
        %v4100 = vshrl.u32 %v4099, 7
        %v4101 = vsub.s32 %v4098, %v4100
        %v4102 = vrot.slane %v3999, %v4101
        %v4104 = vunpack.c.l.s4 1983009808
        %v4105 = vunpack.c.0.s8 %v4104
        %v4106 = vlaneseq
        %v4107 = vshrl.u32 %v4106, 7
        %v4108 = vsub.s32 %v4105, %v4107
        %v4109 = vrot.slane %v4095, %v4108
        %v4110 = vcombine.high %v4102, %v4102
        %v4111 = vcombine.high %v4109, %v4109
        %v4112 = vcombine.high %v4000, %v4000
        %v4114 = vunpack.c.l.s4 1983009808
        %v4115 = vunpack.c.0.s8 %v4114
        %v4116 = vlaneseq
        %v4117 = vshrl.u32 %v4116, 7
        %v4118 = vsub.s32 %v4115, %v4117
        %v4119 = vrot.slane %v4000, %v4118
        %v4121 = vunpack.c.l.s4 1983009808
        %v4122 = vunpack.c.0.s8 %v4121
        %v4123 = vlaneseq
        %v4124 = vshrl.u32 %v4123, 7
        %v4125 = vsub.s32 %v4122, %v4124
        %v4126 = vrot.slane %v4112, %v4125
        %v4127 = vcombine.high %v4119, %v4119
        %v4128 = vcombine.high %v4126, %v4126
        %v4129 = vcombine.high %v4001, %v4001
        %v4131 = vunpack.c.l.s4 1983009808
        %v4132 = vunpack.c.0.s8 %v4131
        %v4133 = vlaneseq
        %v4134 = vshrl.u32 %v4133, 7
        %v4135 = vsub.s32 %v4132, %v4134
        %v4136 = vrot.slane %v4001, %v4135
        %v4138 = vunpack.c.l.s4 1983009808
        %v4139 = vunpack.c.0.s8 %v4138
        %v4140 = vlaneseq
        %v4141 = vshrl.u32 %v4140, 7
        %v4142 = vsub.s32 %v4139, %v4141
        %v4143 = vrot.slane %v4129, %v4142
        %v4144 = vcombine.high %v4136, %v4136
        %v4145 = vcombine.high %v4143, %v4143
        %vm4178 = vcmask 254976
        %v4179 = vsel %vm4178, %v4017, -inf
        %v4180 = vsel %vm4178, %v4034, -inf
        %v4181 = vmax.f32 %v4179, %v4180
        %v4182 = vrot.slane %v4181, 4
        %v4183 = vmax.f32 %v4181, %v4182
        %v4184 = vrot.slane %v4183, 2
        %v4185 = vmax.f32 %v4183, %v4184
        %v4186 = vrot.slane %v4185, 1
        %v4187 = vmax.f32 %v4185, %v4186
        %v4188 = vsel %vm4178, %v4025, -inf
        %v4189 = vsel %vm4178, %v4042, -inf
        %v4190 = vmax.f32 %v4188, %v4189
        %v4191 = vrot.slane %v4190, 4
        %v4192 = vmax.f32 %v4190, %v4191
        %v4193 = vrot.slane %v4192, 2
        %v4194 = vmax.f32 %v4192, %v4193
        %v4195 = vrot.slane %v4194, 1
        %v4196 = vmax.f32 %v4194, %v4195
        %v4197 = vsel %vm4178, %v4024, -inf
        %v4198 = vsel %vm4178, %v4041, -inf
        %v4199 = vmax.f32 %v4197, %v4198
        %v4200 = vrot.slane %v4199, 4
        %v4201 = vmax.f32 %v4199, %v4200
        %v4202 = vrot.slane %v4201, 2
        %v4203 = vmax.f32 %v4201, %v4202
        %v4204 = vrot.slane %v4203, 1
        %v4205 = vmax.f32 %v4203, %v4204
        %v4206 = vsel %vm4178, %v4026, -inf
        %v4207 = vsel %vm4178, %v4043, -inf
        %v4208 = vmax.f32 %v4206, %v4207
        %v4209 = vrot.slane %v4208, 4
        %v4210 = vmax.f32 %v4208, %v4209
        %v4211 = vrot.slane %v4210, 2
        %v4212 = vmax.f32 %v4210, %v4211
        %v4213 = vrot.slane %v4212, 1
        %v4214 = vmax.f32 %v4212, %v4213
        %v4215 = vsel %vm4178, %v4051, -inf
        %v4216 = vsel %vm4178, %v4068, -inf
        %v4217 = vmax.f32 %v4215, %v4216
        %v4218 = vrot.slane %v4217, 4
        %v4219 = vmax.f32 %v4217, %v4218
        %v4220 = vrot.slane %v4219, 2
        %v4221 = vmax.f32 %v4219, %v4220
        %v4222 = vrot.slane %v4221, 1
        %v4223 = vmax.f32 %v4221, %v4222
        %v4224 = vsel %vm4178, %v4059, -inf
        %v4225 = vsel %vm4178, %v4076, -inf
        %v4226 = vmax.f32 %v4224, %v4225
        %v4227 = vrot.slane %v4226, 4
        %v4228 = vmax.f32 %v4226, %v4227
        %v4229 = vrot.slane %v4228, 2
        %v4230 = vmax.f32 %v4228, %v4229
        %v4231 = vrot.slane %v4230, 1
        %v4232 = vmax.f32 %v4230, %v4231
        %v4233 = vsel %vm4178, %v4058, -inf
        %v4234 = vsel %vm4178, %v4075, -inf
        %v4235 = vmax.f32 %v4233, %v4234
        %v4236 = vrot.slane %v4235, 4
        %v4237 = vmax.f32 %v4235, %v4236
        %v4238 = vrot.slane %v4237, 2
        %v4239 = vmax.f32 %v4237, %v4238
        %v4240 = vrot.slane %v4239, 1
        %v4241 = vmax.f32 %v4239, %v4240
        %v4242 = vsel %vm4178, %v4060, -inf
        %v4243 = vsel %vm4178, %v4077, -inf
        %v4244 = vmax.f32 %v4242, %v4243
        %v4245 = vrot.slane %v4244, 4
        %v4246 = vmax.f32 %v4244, %v4245
        %v4247 = vrot.slane %v4246, 2
        %v4248 = vmax.f32 %v4246, %v4247
        %v4249 = vrot.slane %v4248, 1
        %v4250 = vmax.f32 %v4248, %v4249
        %v4251 = vsel %vm4178, %v4085, -inf
        %v4252 = vsel %vm4178, %v4102, -inf
        %v4253 = vmax.f32 %v4251, %v4252
        %v4254 = vrot.slane %v4253, 4
        %v4255 = vmax.f32 %v4253, %v4254
        %v4256 = vrot.slane %v4255, 2
        %v4257 = vmax.f32 %v4255, %v4256
        %v4258 = vrot.slane %v4257, 1
        %v4259 = vmax.f32 %v4257, %v4258
        %v4260 = vsel %vm4178, %v4093, -inf
        %v4261 = vsel %vm4178, %v4110, -inf
        %v4262 = vmax.f32 %v4260, %v4261
        %v4263 = vrot.slane %v4262, 4
        %v4264 = vmax.f32 %v4262, %v4263
        %v4265 = vrot.slane %v4264, 2
        %v4266 = vmax.f32 %v4264, %v4265
        %v4267 = vrot.slane %v4266, 1
        %v4268 = vmax.f32 %v4266, %v4267
        %v4269 = vsel %vm4178, %v4092, -inf
        %v4270 = vsel %vm4178, %v4109, -inf
        %v4271 = vmax.f32 %v4269, %v4270
        %v4272 = vrot.slane %v4271, 4
        %v4273 = vmax.f32 %v4271, %v4272
        %v4274 = vrot.slane %v4273, 2
        %v4275 = vmax.f32 %v4273, %v4274
        %v4276 = vrot.slane %v4275, 1
        %v4277 = vmax.f32 %v4275, %v4276
        %v4278 = vsel %vm4178, %v4094, -inf
        %v4279 = vsel %vm4178, %v4111, -inf
        %v4280 = vmax.f32 %v4278, %v4279
        %v4281 = vrot.slane %v4280, 4
        %v4282 = vmax.f32 %v4280, %v4281
        %v4283 = vrot.slane %v4282, 2
        %v4284 = vmax.f32 %v4282, %v4283
        %v4285 = vrot.slane %v4284, 1
        %v4286 = vmax.f32 %v4284, %v4285
        %v4287 = vsel %vm4178, %v4119, -inf
        %v4288 = vsel %vm4178, %v4136, -inf
        %v4289 = vmax.f32 %v4287, %v4288
        %v4290 = vrot.slane %v4289, 4
        %v4291 = vmax.f32 %v4289, %v4290
        %v4292 = vrot.slane %v4291, 2
        %v4293 = vmax.f32 %v4291, %v4292
        %v4294 = vrot.slane %v4293, 1
        %v4295 = vmax.f32 %v4293, %v4294
        %v4296 = vsel %vm4178, %v4127, -inf
        %v4297 = vsel %vm4178, %v4144, -inf
        %v4298 = vmax.f32 %v4296, %v4297
        %v4299 = vrot.slane %v4298, 4
        %v4300 = vmax.f32 %v4298, %v4299
        %v4301 = vrot.slane %v4300, 2
        %v4302 = vmax.f32 %v4300, %v4301
        %v4303 = vrot.slane %v4302, 1
        %v4304 = vmax.f32 %v4302, %v4303
        %v4305 = vsel %vm4178, %v4126, -inf
        %v4306 = vsel %vm4178, %v4143, -inf
        %v4307 = vmax.f32 %v4305, %v4306
        %v4308 = vrot.slane %v4307, 4
        %v4309 = vmax.f32 %v4307, %v4308
        %v4310 = vrot.slane %v4309, 2
        %v4311 = vmax.f32 %v4309, %v4310
        %v4312 = vrot.slane %v4311, 1
        %v4313 = vmax.f32 %v4311, %v4312
        %v4314 = vsel %vm4178, %v4128, -inf
        %v4315 = vsel %vm4178, %v4145, -inf
        %v4316 = vmax.f32 %v4314, %v4315
        %v4317 = vrot.slane %v4316, 4
        %v4318 = vmax.f32 %v4316, %v4317
        %v4319 = vrot.slane %v4318, 2
        %v4320 = vmax.f32 %v4318, %v4319
        %v4321 = vrot.slane %v4320, 1
        %v4322 = vmax.f32 %v4320, %v4321
        %vm4323 = vcmask 259072
        %4324 = vst.msk [vmem:[#allocation6] sm:$0x3f] %vm4323, 0.0
        %s4325 = scalar_lea.vmem [#allocation6], 40
        %4326 = vst.msk [vmem:[%s4325] sm:$0x3f] %vm4323, 0.0
        %vm4327 = vcmask 253952
        %4328 = vst.msk [vmem:[#allocation6] sm:$0x1] %vm4327, 0.0
        %4329 = vst.msk [vmem:[#allocation6 + $0x8] sm:$0x1] %vm4327, 0.0
        %4330 = vst.msk [vmem:[#allocation6 + $0x10] sm:$0x1] %vm4327, 0.0
        %4331 = vst.msk [vmem:[#allocation6 + $0x18] sm:$0x1] %vm4327, 0.0
        %4332 = vst.msk [vmem:[#allocation6 + $0x20] sm:$0x1] %vm4327, 0.0
        %4333 = vst.msk [vmem:[#allocation6 + $0x28] sm:$0x1] %vm4327, 0.0
        %4334 = vst.msk [vmem:[#allocation6 + $0x5] sm:$0x1] %vm4327, 0.0
        %4335 = vst.msk [vmem:[#allocation6 + $0xd] sm:$0x1] %vm4327, 0.0
        %4336 = vst.msk [vmem:[#allocation6 + $0x15] sm:$0x1] %vm4327, 0.0
        %4337 = vst.msk [vmem:[#allocation6 + $0x1d] sm:$0x1] %vm4327, 0.0
        %4338 = vst.msk [vmem:[#allocation6 + $0x25] sm:$0x1] %vm4327, 0.0
        %4339 = vst.msk [vmem:[#allocation6 + $0x2d] sm:$0x1] %vm4327, 0.0
        %v4356 = vsel %vm3439, %v4196, %v4187
        %v4357 = vsel %vm3441, %v4205, %v4356
        %v4358 = vsel %vm3443, %v4214, %v4357
        %v4359 = vsel %vm3439, %v4232, %v4223
        %v4360 = vsel %vm3441, %v4241, %v4359
        %v4361 = vsel %vm3443, %v4250, %v4360
        %v4362 = vsel %vm3439, %v4268, %v4259
        %v4363 = vsel %vm3441, %v4277, %v4362
        %v4364 = vsel %vm3443, %v4286, %v4363
        %v4365 = vsel %vm3439, %v4304, %v4295
        %v4366 = vsel %vm3441, %v4313, %v4365
        %v4367 = vsel %vm3443, %v4322, %v4366
        %s4372 = scalar_lea.vmem [#allocation6], 8
        %vm4373 = vcmask 257024
        %4374 = vst.msk [vmem:[%s4372 + $0x1] sm:$0xf] %vm4373, %v4358
        %4375 = vst.msk [vmem:[%s4372 + $0x9] sm:$0xf] %vm4373, %v4361
        %4376 = vst.msk [vmem:[%s4372 + $0x11] sm:$0xf] %vm4373, %v4364
        %4377 = vst.msk [vmem:[%s4372 + $0x19] sm:$0xf] %vm4373, %v4367
        %v4378 = vld [vmem:[#allocation6] sm:$0xf]
        %v4379 = vld [vmem:[#allocation6 + $0x8] sm:$0xf]
        %v4380 = vld [vmem:[#allocation6 + $0x10] sm:$0xf]
        %v4381 = vld [vmem:[#allocation6 + $0x18] sm:$0xf]
        %v4382 = vld [vmem:[#allocation6 + $0x20] sm:$0xf]
        %v4383 = vld [vmem:[#allocation6 + $0x28] sm:$0xf]
        %4384 = vst.msk [vmem:[#allocation7] sm:$0xf] %vm4373, %v4378
        %4385 = vst.msk [vmem:[#allocation7 + $0xc] sm:$0xf] %vm4373, %v4379
        %4386 = vst.msk [vmem:[#allocation7 + $0x18] sm:$0xf] %vm4373, %v4380
        %4387 = vst.msk [vmem:[#allocation7 + $0x24] sm:$0xf] %vm4373, %v4381
        %4392 = vrot.lane.b32.xlu0 %v4379, 96
        %v4393 = vpop.permute.xlu0 %4392
        %4394 = vrot.lane.b32.xlu0 %v4380, 96
        %v4395 = vpop.permute.xlu0 %4394
        %4396 = vrot.lane.b32.xlu0 %v4381, 96
        %v4397 = vpop.permute.xlu0 %4396
        %4398 = vrot.lane.b32.xlu0 %v4382, 96
        %v4399 = vpop.permute.xlu0 %4398
        %vm4404 = vcmask 1044224
        %4405 = vst.msk [vmem:[#allocation7] sm:$0xf] %vm4404, %v4393
        %4406 = vst.msk [vmem:[#allocation7 + $0xc] sm:$0xf] %vm4404, %v4395
        %4407 = vst.msk [vmem:[#allocation7 + $0x18] sm:$0xf] %vm4404, %v4397
        %4408 = vst.msk [vmem:[#allocation7 + $0x24] sm:$0xf] %vm4404, %v4399
        %4410 = vrot.lane.b32.xlu0 %v4380, 64
        %v4411 = vpop.permute.xlu0 %4410
        %4412 = vrot.lane.b32.xlu0 %v4381, 64
        %v4413 = vpop.permute.xlu0 %4412
        %4414 = vrot.lane.b32.xlu0 %v4382, 64
        %v4415 = vpop.permute.xlu0 %4414
        %4416 = vrot.lane.b32.xlu0 %v4383, 64
        %v4417 = vpop.permute.xlu0 %4416
        %vm4422 = vcmask 781824
        %4423 = vst.msk [vmem:[#allocation7 + $0x4] sm:$0xf] %vm4422, %v4411
        %4424 = vst.msk [vmem:[#allocation7 + $0x10] sm:$0xf] %vm4422, %v4413
        %4425 = vst.msk [vmem:[#allocation7 + $0x1c] sm:$0xf] %vm4422, %v4415
        %4426 = vst.msk [vmem:[#allocation7 + $0x28] sm:$0xf] %vm4422, %v4417
        %v4427 = vld [vmem:[#allocation6 + $0x1] sm:$0xf]
        %v4428 = vld [vmem:[#allocation6 + $0x9] sm:$0xf]
        %v4429 = vld [vmem:[#allocation6 + $0x11] sm:$0xf]
        %v4430 = vld [vmem:[#allocation6 + $0x19] sm:$0xf]
        %v4431 = vld [vmem:[#allocation6 + $0x21] sm:$0xf]
        %v4432 = vld [vmem:[#allocation6 + $0x29] sm:$0xf]
        %4437 = vrot.lane.b32.xlu0 %v4427, 32
        %v4438 = vpop.permute.xlu0 %4437
        %4439 = vrot.lane.b32.xlu0 %v4428, 32
        %v4440 = vpop.permute.xlu0 %4439
        %4441 = vrot.lane.b32.xlu0 %v4429, 32
        %v4442 = vpop.permute.xlu0 %4441
        %4443 = vrot.lane.b32.xlu0 %v4430, 32
        %v4444 = vpop.permute.xlu0 %4443
        %vm4449 = vcmask 519424
        %4450 = vst.msk [vmem:[#allocation7] sm:$0xf] %vm4449, %v4438
        %4451 = vst.msk [vmem:[#allocation7 + $0xc] sm:$0xf] %vm4449, %v4440
        %4452 = vst.msk [vmem:[#allocation7 + $0x18] sm:$0xf] %vm4449, %v4442
        %4453 = vst.msk [vmem:[#allocation7 + $0x24] sm:$0xf] %vm4449, %v4444
        %4454 = vst.msk [vmem:[#allocation7 + $0x4] sm:$0xf] %vm4373, %v4428
        %4455 = vst.msk [vmem:[#allocation7 + $0x10] sm:$0xf] %vm4373, %v4429
        %4456 = vst.msk [vmem:[#allocation7 + $0x1c] sm:$0xf] %vm4373, %v4430
        %4457 = vst.msk [vmem:[#allocation7 + $0x28] sm:$0xf] %vm4373, %v4431
        %4460 = vrot.lane.b32.xlu0 %v4429, 96
        %v4461 = vpop.permute.xlu0 %4460
        %4462 = vrot.lane.b32.xlu0 %v4430, 96
        %v4463 = vpop.permute.xlu0 %4462
        %4464 = vrot.lane.b32.xlu0 %v4431, 96
        %v4465 = vpop.permute.xlu0 %4464
        %4466 = vrot.lane.b32.xlu0 %v4432, 96
        %v4467 = vpop.permute.xlu0 %4466
        %4472 = vst.msk [vmem:[#allocation7 + $0x4] sm:$0xf] %vm4404, %v4461
        %4473 = vst.msk [vmem:[#allocation7 + $0x10] sm:$0xf] %vm4404, %v4463
        %4474 = vst.msk [vmem:[#allocation7 + $0x1c] sm:$0xf] %vm4404, %v4465
        %4475 = vst.msk [vmem:[#allocation7 + $0x28] sm:$0xf] %vm4404, %v4467
        %v4476 = vld [vmem:[#allocation6 + $0x2] sm:$0xf]
        %v4477 = vld [vmem:[#allocation6 + $0xa] sm:$0xf]
        %v4478 = vld [vmem:[#allocation6 + $0x12] sm:$0xf]
        %v4479 = vld [vmem:[#allocation6 + $0x1a] sm:$0xf]
        %v4480 = vld [vmem:[#allocation6 + $0x22] sm:$0xf]
        %v4481 = vld [vmem:[#allocation6 + $0x2a] sm:$0xf]
        %4486 = vrot.lane.b32.xlu0 %v4476, 64
        %v4487 = vpop.permute.xlu0 %4486
        %4488 = vrot.lane.b32.xlu0 %v4477, 64
        %v4489 = vpop.permute.xlu0 %4488
        %4490 = vrot.lane.b32.xlu0 %v4478, 64
        %v4491 = vpop.permute.xlu0 %4490
        %4492 = vrot.lane.b32.xlu0 %v4479, 64
        %v4493 = vpop.permute.xlu0 %4492
        %4498 = vst.msk [vmem:[#allocation7] sm:$0xf] %vm4422, %v4487
        %4499 = vst.msk [vmem:[#allocation7 + $0xc] sm:$0xf] %vm4422, %v4489
        %4500 = vst.msk [vmem:[#allocation7 + $0x18] sm:$0xf] %vm4422, %v4491
        %4501 = vst.msk [vmem:[#allocation7 + $0x24] sm:$0xf] %vm4422, %v4493
        %4503 = vrot.lane.b32.xlu0 %v4477, 32
        %v4504 = vpop.permute.xlu0 %4503
        %4505 = vrot.lane.b32.xlu0 %v4478, 32
        %v4506 = vpop.permute.xlu0 %4505
        %4507 = vrot.lane.b32.xlu0 %v4479, 32
        %v4508 = vpop.permute.xlu0 %4507
        %4509 = vrot.lane.b32.xlu0 %v4480, 32
        %v4510 = vpop.permute.xlu0 %4509
        %4515 = vst.msk [vmem:[#allocation7 + $0x4] sm:$0xf] %vm4449, %v4504
        %4516 = vst.msk [vmem:[#allocation7 + $0x10] sm:$0xf] %vm4449, %v4506
        %4517 = vst.msk [vmem:[#allocation7 + $0x1c] sm:$0xf] %vm4449, %v4508
        %4518 = vst.msk [vmem:[#allocation7 + $0x28] sm:$0xf] %vm4449, %v4510
        %4519 = vst.msk [vmem:[#allocation7 + $0x8] sm:$0xf] %vm4373, %v4478
        %4520 = vst.msk [vmem:[#allocation7 + $0x14] sm:$0xf] %vm4373, %v4479
        %4521 = vst.msk [vmem:[#allocation7 + $0x20] sm:$0xf] %vm4373, %v4480
        %4522 = vst.msk [vmem:[#allocation7 + $0x2c] sm:$0xf] %vm4373, %v4481
        %v4523 = vld [vmem:[#allocation7] sm:$0xff]
        %v4524 = vld [vmem:[#allocation7 + $0x8] sm:$0xf]
        %v4525 = vld [vmem:[#allocation7 + $0xc] sm:$0xff]
        %v4526 = vld [vmem:[#allocation7 + $0x14] sm:$0xf]
        %v4527 = vld [vmem:[#allocation7 + $0x18] sm:$0xff]
        %v4528 = vld [vmem:[#allocation7 + $0x20] sm:$0xf]
        %v4529 = vld [vmem:[#allocation7 + $0x24] sm:$0xff]
        %v4530 = vld [vmem:[#allocation7 + $0x2c] sm:$0xf]
        %v4531 = vld [vmem:[%s5] sm:$0xff]
        %v4532 = vld [vmem:[%s5 + $0x8] sm:$0xff]
        %v4533 = vld [vmem:[%s5 + $0x10] sm:$0xff]
        %v4534 = vld [vmem:[%s5 + $0x18] sm:$0xff]
        %v4535 = vld [vmem:[%s5 + $0x20] sm:$0xff]
        %v4536 = vld [vmem:[%s5 + $0x28] sm:$0xff]
        %v4537 = vld [vmem:[%s5 + $0x30] sm:$0xff]
        %v4538 = vld [vmem:[%s5 + $0x38] sm:$0xff]
        %v4539 = vld [vmem:[%s5 + $0x40] sm:$0xff]
        %v4540 = vld [vmem:[%s5 + $0x48] sm:$0xff]
        %v4541 = vld [vmem:[%s5 + $0x50] sm:$0xff]
        %v4542 = vld [vmem:[%s5 + $0x58] sm:$0xff]
        %v4543 = vld [vmem:[%s5 + $0x60] sm:$0xff]
        %v4544 = vld [vmem:[%s5 + $0x68] sm:$0xff]
        %v4545 = vld [vmem:[%s5 + $0x70] sm:$0xff]
        %v4546 = vld [vmem:[%s5 + $0x78] sm:$0xff]
        %v4547 = vld [vmem:[%s5 + $0x80] sm:$0xff]
        %v4548 = vld [vmem:[%s5 + $0x88] sm:$0xff]
        %v4549 = vld [vmem:[%s5 + $0x90] sm:$0xff]
        %v4550 = vld [vmem:[%s5 + $0x98] sm:$0xff]
        %v4551 = vld [vmem:[%s5 + $0xa0] sm:$0xff]
        %v4552 = vld [vmem:[%s5 + $0xa8] sm:$0xff]
        %v4553 = vld [vmem:[%s5 + $0xb0] sm:$0xff]
        %v4554 = vld [vmem:[%s5 + $0xb8] sm:$0xff]
        %v4555 = vld [vmem:[%s5 + $0xc0] sm:$0xff]
        %v4556 = vld [vmem:[%s5 + $0xc8] sm:$0xff]
        %v4557 = vld [vmem:[%s5 + $0xd0] sm:$0xff]
        %v4558 = vld [vmem:[%s5 + $0xd8] sm:$0xff]
        %v4559 = vld [vmem:[%s5 + $0xe0] sm:$0xff]
        %v4560 = vld [vmem:[%s5 + $0xe8] sm:$0xff]
        %v4561 = vld [vmem:[%s5 + $0xf0] sm:$0xff]
        %v4562 = vld [vmem:[%s5 + $0xf8] sm:$0xff]
        %v4563 = vld [vmem:[%s5 + $0x100] sm:$0xff]
        %v4564 = vld [vmem:[%s5 + $0x108] sm:$0xff]
        %v4565 = vld [vmem:[%s5 + $0x110] sm:$0xff]
        %v4566 = vld [vmem:[%s5 + $0x118] sm:$0xff]
        %v4567 = vld [vmem:[%s6] sm:$0x1]
        %v4569 = vlaneseq
        %v4570 = vshrl.u32 %v4569, 7
        %v4571 = vsub.s32 0, %v4570
        %v4572 = vrot.slane %v4567, %v4571
        %v4582 = vcombine.low %v4523, %v4525
        %v4583 = vcombine.high %v4523, %v4525
        %v4584 = vcombine.low %v4524, %v4526
        %v4585 = vcombine.low %v4527, %v4529
        %v4586 = vcombine.high %v4527, %v4529
        %v4587 = vcombine.low %v4528, %v4530
        %vm4592 = vcmask 261120
        %v4593 = vsel %vm4592, %v4584, 0
        %v4595 = vsel %vm4592, %v4587, 0
        %4597 = vmatprep.subr.mxu0 0.0
        %4598 = vmatpush1.msra.mxu0 %v4546
        %4599 = vmatprep.subr.mxu0 0.0
        %4600 = vmatpush1.msra.mxu0 %v4545
        %4601 = vmatprep.subr.mxu0 0.0
        %4602 = vmatpush1.msra.mxu0 %v4544
        %4603 = vmatprep.subr.mxu0 0.0
        %4604 = vmatpush1.msra.mxu0 %v4543
        %4605 = vmatprep.subr.mxu0 0.0
        %4606 = vmatpush1.msra.mxu0 %v4542
        %4607 = vmatprep.subr.mxu0 0.0
        %4608 = vmatpush1.msra.mxu0 %v4541
        %4609 = vmatprep.subr.mxu0 0.0
        %4610 = vmatpush1.msra.mxu0 %v4540
        %4611 = vmatprep.subr.mxu0 0.0
        %4612 = vmatpush1.msra.mxu0 %v4539
        %4613 = vmatprep.subr.mxu0 0.0
        %4614 = vmatpush1.msra.mxu0 %v4538
        %4615 = vmatprep.subr.mxu0 0.0
        %4616 = vmatpush1.msra.mxu0 %v4537
        %4617 = vmatprep.subr.mxu0 0.0
        %4618 = vmatpush1.msra.mxu0 %v4536
        %4619 = vmatprep.subr.mxu0 0.0
        %4620 = vmatpush1.msra.mxu0 %v4535
        %4621 = vmatprep.subr.mxu0 0.0
        %4622 = vmatpush1.msra.mxu0 %v4534
        %4623 = vmatprep.subr.mxu0 0.0
        %4624 = vmatpush1.msra.mxu0 %v4533
        %4625 = vmatprep.subr.mxu0 0.0
        %4626 = vmatpush1.msra.mxu0 %v4532
        %4627 = vmatprep.subr.mxu0 0.0
        %4628 = vmatpush1.msra.mxu0 %v4531
        %4629 = vmatprep.subr.mxu0 0.0
        %4630 = vmatpush2.msra.mxu0 %v4562
        %4631 = vmatprep.subr.mxu0 0.0
        %4632 = vmatpush2.msra.mxu0 %v4561
        %4633 = vmatprep.subr.mxu0 0.0
        %4634 = vmatpush2.msra.mxu0 %v4560
        %4635 = vmatprep.subr.mxu0 0.0
        %4636 = vmatpush2.msra.mxu0 %v4559
        %4637 = vmatprep.subr.mxu0 0.0
        %4638 = vmatpush2.msra.mxu0 %v4558
        %4639 = vmatprep.subr.mxu0 0.0
        %4640 = vmatpush2.msra.mxu0 %v4557
        %4641 = vmatprep.subr.mxu0 0.0
        %4642 = vmatpush2.msra.mxu0 %v4556
        %4643 = vmatprep.subr.mxu0 0.0
        %4644 = vmatpush2.msra.mxu0 %v4555
        %4645 = vmatprep.subr.mxu0 0.0
        %4646 = vmatpush2.msra.mxu0 %v4554
        %4647 = vmatprep.subr.mxu0 0.0
        %4648 = vmatpush2.msra.mxu0 %v4553
        %4649 = vmatprep.subr.mxu0 0.0
        %4650 = vmatpush2.msra.mxu0 %v4552
        %4651 = vmatprep.subr.mxu0 0.0
        %4652 = vmatpush2.msra.mxu0 %v4551
        %4653 = vmatprep.subr.mxu0 0.0
        %4654 = vmatpush2.msra.mxu0 %v4550
        %4655 = vmatprep.subr.mxu0 0.0
        %4656 = vmatpush2.msra.mxu0 %v4549
        %4657 = vmatprep.subr.mxu0 0.0
        %4658 = vmatpush2.msra.mxu0 %v4548
        %4659 = vmatprep.subr.mxu0 0.0
        %4660 = vmatpush2.msra.mxu0 %v4547
        %4661 = vmatprep.mubr.f32.mxu0 %v4583
        %4662 = vmatmul.mubr.f32.gmra.mxu0 %v4582
        %v4663 = vpop.f32.mrf.mxu0
        %v4664 = vadd.f32 %v4572, %v4663
        %v4665 = vpop.f32.mrf.mxu0
        %4666 = vmatprep.mubr.f32.mxu0 %v4586
        %4667 = vmatmul.mubr.f32.gmra.mxu0 %v4585
        %v4668 = vpop.f32.mrf.mxu0
        %v4669 = vadd.f32 %v4572, %v4668
        %v4670 = vpop.f32.mrf.mxu0
        %4671 = vdwg.mxu0
        %4672 = vmatprep.subr.mxu0 0.0
        %4673 = vmatpush1.msra.mxu0 0.0
        %4674 = vmatprep.subr.mxu0 0.0
        %4675 = vmatpush1.msra.mxu0 0.0
        %4676 = vmatprep.subr.mxu0 0.0
        %4677 = vmatpush1.msra.mxu0 0.0
        %4678 = vmatprep.subr.mxu0 0.0
        %4679 = vmatpush1.msra.mxu0 0.0
        %4680 = vmatprep.subr.mxu0 0.0
        %4681 = vmatpush1.msra.mxu0 0.0
        %4682 = vmatprep.subr.mxu0 0.0
        %4683 = vmatpush1.msra.mxu0 0.0
        %4684 = vmatprep.subr.mxu0 0.0
        %4685 = vmatpush1.msra.mxu0 0.0
        %4686 = vmatprep.subr.mxu0 0.0
        %4687 = vmatpush1.msra.mxu0 0.0
        %4688 = vmatprep.subr.mxu0 0.0
        %4689 = vmatpush1.msra.mxu0 0.0
        %4690 = vmatprep.subr.mxu0 0.0
        %4691 = vmatpush1.msra.mxu0 0.0
        %4692 = vmatprep.subr.mxu0 0.0
        %4693 = vmatpush1.msra.mxu0 0.0
        %4694 = vmatprep.subr.mxu0 0.0
        %4695 = vmatpush1.msra.mxu0 0.0
        %4696 = vmatprep.subr.mxu0 0.0
        %4697 = vmatpush1.msra.mxu0 %v4566
        %4698 = vmatprep.subr.mxu0 0.0
        %4699 = vmatpush1.msra.mxu0 %v4565
        %4700 = vmatprep.subr.mxu0 0.0
        %4701 = vmatpush1.msra.mxu0 %v4564
        %4702 = vmatprep.subr.mxu0 0.0
        %4703 = vmatpush1.msra.mxu0 %v4563
        %4704 = vmatprep.subr.mxu0 0.0
        %4705 = vmatpush2.msra.mxu0 0.0
        %4706 = vmatprep.subr.mxu0 0.0
        %4707 = vmatpush2.msra.mxu0 0.0
        %4708 = vmatprep.subr.mxu0 0.0
        %4709 = vmatpush2.msra.mxu0 0.0
        %4710 = vmatprep.subr.mxu0 0.0
        %4711 = vmatpush2.msra.mxu0 0.0
        %4712 = vmatprep.subr.mxu0 0.0
        %4713 = vmatpush2.msra.mxu0 0.0
        %4714 = vmatprep.subr.mxu0 0.0
        %4715 = vmatpush2.msra.mxu0 0.0
        %4716 = vmatprep.subr.mxu0 0.0
        %4717 = vmatpush2.msra.mxu0 0.0
        %4718 = vmatprep.subr.mxu0 0.0
        %4719 = vmatpush2.msra.mxu0 0.0
        %4720 = vmatprep.subr.mxu0 0.0
        %4721 = vmatpush2.msra.mxu0 0.0
        %4722 = vmatprep.subr.mxu0 0.0
        %4723 = vmatpush2.msra.mxu0 0.0
        %4724 = vmatprep.subr.mxu0 0.0
        %4725 = vmatpush2.msra.mxu0 0.0
        %4726 = vmatprep.subr.mxu0 0.0
        %4727 = vmatpush2.msra.mxu0 0.0
        %4728 = vmatprep.subr.mxu0 0.0
        %4729 = vmatpush2.msra.mxu0 0.0
        %4730 = vmatprep.subr.mxu0 0.0
        %4731 = vmatpush2.msra.mxu0 0.0
        %4732 = vmatprep.subr.mxu0 0.0
        %4733 = vmatpush2.msra.mxu0 0.0
        %4734 = vmatprep.subr.mxu0 0.0
        %4735 = vmatpush2.msra.mxu0 0.0
        %4736 = vmatprep.mubr.f32.mxu0 0.0
        %4737 = vmatmul.mubr.f32.gmra.mxu0 %v4593
        %v4738 = vpop.f32.mrf.mxu0
        %v4739 = vadd.f32 %v4664, %v4738
        %v4740 = vpop.f32.mrf.mxu0
        %4741 = vmatprep.mubr.f32.mxu0 0.0
        %4742 = vmatmul.mubr.f32.gmra.mxu0 %v4595
        %v4743 = vpop.f32.mrf.mxu0
        %v4744 = vadd.f32 %v4669, %v4743
        %v4745 = vpop.f32.mrf.mxu0
        %4746 = vdwg.mxu0
        %v4747 = vmax.f32 %v4739, 0.0
        %v4748 = vmax.f32 %v4744, 0.0
        %v4751 = vcombine.high %v4747, %v4747
        %v4753 = vunpack.c.l.s4 1983009808
        %v4754 = vunpack.c.0.s8 %v4753
        %v4755 = vlaneseq
        %v4756 = vshrl.u32 %v4755, 7
        %v4757 = vsub.s32 %v4754, %v4756
        %v4758 = vrot.slane %v4747, %v4757
        %v4760 = vunpack.c.l.s4 1983009808
        %v4761 = vunpack.c.0.s8 %v4760
        %v4762 = vlaneseq
        %v4763 = vshrl.u32 %v4762, 7
        %v4764 = vsub.s32 %v4761, %v4763
        %v4765 = vrot.slane %v4751, %v4764
        %v4766 = vcombine.high %v4758, %v4758
        %v4767 = vcombine.high %v4765, %v4765
        %v4768 = vcombine.high %v4748, %v4748
        %v4770 = vunpack.c.l.s4 1983009808
        %v4771 = vunpack.c.0.s8 %v4770
        %v4772 = vlaneseq
        %v4773 = vshrl.u32 %v4772, 7
        %v4774 = vsub.s32 %v4771, %v4773
        %v4775 = vrot.slane %v4748, %v4774
        %v4777 = vunpack.c.l.s4 1983009808
        %v4778 = vunpack.c.0.s8 %v4777
        %v4779 = vlaneseq
        %v4780 = vshrl.u32 %v4779, 7
        %v4781 = vsub.s32 %v4778, %v4780
        %v4782 = vrot.slane %v4768, %v4781
        %v4783 = vcombine.high %v4775, %v4775
        %v4784 = vcombine.high %v4782, %v4782
        %vm4793 = vcmask 58368
        %v4794 = vsel %vm4793, %v4758, -inf
        %v4795 = vsel %vm4793, %v4765, -inf
        %v4796 = vmax.f32 %v4794, %v4795
        %v4797 = vrot.slane %v4796, 4
        %v4798 = vmax.f32 %v4796, %v4797
        %v4799 = vrot.slane %v4798, 2
        %v4800 = vmax.f32 %v4798, %v4799
        %v4801 = vrot.slane %v4800, 1
        %v4802 = vmax.f32 %v4800, %v4801
        %v4803 = vsel %vm4793, %v4766, -inf
        %v4804 = vsel %vm4793, %v4767, -inf
        %v4805 = vmax.f32 %v4803, %v4804
        %v4806 = vrot.slane %v4805, 4
        %v4807 = vmax.f32 %v4805, %v4806
        %v4808 = vrot.slane %v4807, 2
        %v4809 = vmax.f32 %v4807, %v4808
        %v4810 = vrot.slane %v4809, 1
        %v4811 = vmax.f32 %v4809, %v4810
        %v4812 = vsel %vm4793, %v4775, -inf
        %v4813 = vsel %vm4793, %v4782, -inf
        %v4814 = vmax.f32 %v4812, %v4813
        %v4815 = vrot.slane %v4814, 4
        %v4816 = vmax.f32 %v4814, %v4815
        %v4817 = vrot.slane %v4816, 2
        %v4818 = vmax.f32 %v4816, %v4817
        %v4819 = vrot.slane %v4818, 1
        %v4820 = vmax.f32 %v4818, %v4819
        %v4821 = vsel %vm4793, %v4783, -inf
        %v4822 = vsel %vm4793, %v4784, -inf
        %v4823 = vmax.f32 %v4821, %v4822
        %v4824 = vrot.slane %v4823, 4
        %v4825 = vmax.f32 %v4823, %v4824
        %v4826 = vrot.slane %v4825, 2
        %v4827 = vmax.f32 %v4825, %v4826
        %v4828 = vrot.slane %v4827, 1
        %v4829 = vmax.f32 %v4827, %v4828
        %v4834 = vsel %vm3439, %v4811, %v4802
        %v4835 = vsel %vm3439, %v4829, %v4820
        %4838 = vst.msk [vmem:[%s271] sm:$0x3] %vm4793, %v4834
        %4839 = vst.msk [vmem:[%s271 + $0x2] sm:$0x3] %vm4793, %v4835
        %s4840 = sand.u32 %s181, 1
        %s4841 = scalar_lea.sflag [#allocation9], %s4840
        %s4842 = sand.u32 %s181, 1
        %s4843 = smul.addr %s4842, 4
        %s4844 = scalar_lea.vmem [#allocation8], %s4843
        // Predicated region
        $region49: #{cnn_forward_impl.1} parent=47 // pred_check
          %p4845 = pneg %p191
        $region50: #{cnn_forward_impl.1} parent=47 // pred_check_branch
          %4847 = sbr.rel (%p4845) target = $region52
        $region51: #{cnn_forward_impl.1} parent=47 // pred_region
          %s4849 = ssub.s32 64, 64
          %4850 = vsyncadd %s4841, %s4849
          %s4851 = smul.addr %s21, 2
          %s4852 = smul.addr %s4851, 32
          %s4853 = scalar_lea.hbm %s7, %s4852
          %s4854 = sshll.u32 %s4844, 4
          %s4855 = int_to_ptr.vmem [resolvable:$true] %s4854
          %4860 = dma.vmem_to_hbm [thread:$0]  %s4855, 64, %s4853, %s4841, 32, 32, 2
        $region52: #{cnn_forward_impl.1} parent=47 // pred_fallthru
          _
      $region48: #{cnn_forward_impl.1} parent=5 // pred_fallthru
        _
      %p4861 = scmp.le.s32.totalorder 2, %s16
      // Predicated region
      $region53: #{cnn_forward_impl.1} parent=5 // pred_check
        %p4862 = pneg %p4861
      $region54: #{cnn_forward_impl.1} parent=5 // pred_check_branch
        %4864 = sbr.rel (%p4862) target = $region56
      $region55: #{cnn_forward_impl.1} parent=5 // pred_region
        %s4865 = ssub.s32 %s16, 2
        // Predicated region
        $region57: #{cnn_forward_impl.1} parent=55 // pred_check
          %p4866 = pneg %p197
        $region58: #{cnn_forward_impl.1} parent=55 // pred_check_branch
          %4868 = sbr.rel (%p4866) target = $region60
        $region59: #{cnn_forward_impl.1} parent=55 // pred_region
          %s4869 = sand.u32 %s182, 1
          %s4870 = scalar_lea.sflag [#allocation9], %s4869
          %s4871 = sand.u32 %s182, 1
          %s4872 = smul.addr %s4871, 4
          %s4873 = scalar_lea.vmem [#allocation8], %s4872
          %4874 = dma.done %s4870, 64
        $region60: #{cnn_forward_impl.1} parent=55 // pred_fallthru
          _
      $region56: #{cnn_forward_impl.1} parent=5 // pred_fallthru
        _
    $region6: #{cnn_forward_impl.1} parent=1 // loop_footer
      %s20 = sadd.s32 1, %s16
    $region7: #{cnn_forward_impl.1} parent=1 // loop_footer_branch
      %15 = sbr.rel target = $region3
    $region8: #{cnn_forward_impl.1} parent=1 // loop_exit
      _
    %4875 = vsyncpa [#allocation9], 1
    %s4876 = scalar_lea.sflag [#allocation9], 1
    %4877 = vsyncpa %s4876, 1

</llo_original>
